<compile_context>
chip_gen: v7x
topology: tpu7x:2x2x1
jax: 0.10.0
libtpu: 0.0.40
codegen_flags: <defaults>
</compile_context>

<pallas_src>
import jax
import jax.numpy as jnp
from jax.experimental import pallas as pl
from jax.experimental.pallas import tpu as pltpu


# ----------------------------------------------------------------------------
# Fused kernel factory
# ----------------------------------------------------------------------------
def make_encoder_kernel(n_layers, N, H, Do, Dn):
    HDo = H * Do
    HDn = H * Dn
    NEG = -1e30
    BF16 = jnp.bfloat16

    def kernel(*refs):
        nfeat_ref, efeat_ref, adj_ref, expand_ref, mean_n_ref = refs[:5]
        layer_refs = refs[5:-1]          # per layer: w_all, w_fij, bias, attn_edge, gamma, beta
        out_ref = refs[-1]

        adj = adj_ref[...]                                   # (src, dst) f32
        neg3 = jnp.where(adj > 0, 0.0, NEG)[:, :, None]      # (src, dst, 1)
        adj3 = adj[:, :, None]
        expand = expand_ref[...]                             # bf16 (H, H*Dn)   head -> per-head block
        mean_n = mean_n_ref[...]                             # bf16 (H*Dn, Dn)  head-mean (nodes)

        def conv(x, e2d, w_all, w_fij, bias, attn_edge, want_edge):
            # single fused node projection: [f_ni | f_nj | h_src]; bf16 operands, f32 accum
            proj = jnp.dot(x.astype(BF16), w_all,
                           preferred_element_type=jnp.float32)               # (N, 2*HDo+HDn)
            f_ni = proj[:, :HDo] + bias        # bias folded here (N rows, not N^2 rows)
            f_nj = proj[:, HDo:2 * HDo]
            h_src = proj[:, 2 * HDo:]                                        # (N, HDn) f32

            f_fij = jnp.dot(e2d, w_fij, preferred_element_type=jnp.float32)  # (N*N, HDo)
            f3 = f_ni[:, None, :] + f_nj[None, :, :] + f_fij.reshape(N, N, HDo)
            f3 = jnp.maximum(f3, 0.01 * f3)    # LeakyReLU(0.01): mul + max only
            f2 = f3.reshape(N * N, HDo).astype(BF16)

            # merged matmul: attention logits + (optionally) edge head-mean, one MXU push
            if want_edge:
                le = jnp.dot(f2, attn_edge, preferred_element_type=jnp.float32)   # (N*N, H+Do)
                logits = le[:, :H]
                edge_out = le[:, H:].astype(BF16)   # post-LeakyReLU head-mean, as in DGL EGATConv
            else:
                logits = jnp.dot(f2, attn_edge[:, :H],
                                 preferred_element_type=jnp.float32)              # (N*N, H)
                edge_out = None

            # masked edge-softmax over in-edges of each dst (axis 0 = src), f32 math
            l3 = logits.reshape(N, N, H) + neg3                                   # (src, dst, H)
            m = jnp.max(l3, axis=0, keepdims=True)                                # (1, dst, H)
            p = jnp.exp(l3 - m) * adj3
            denom = jnp.maximum(jnp.sum(p, axis=0, keepdims=True), 1e-30)
            a3 = p * pl.reciprocal(denom, approx=True)                            # (src, dst, H)

            # weighted aggregation without per-head lane slices / transposes:
            # a_big[s, d, h*Dn+n] = a3[s, d, h]  (one matmul), multiply by h_src, sum over src
            a_big = jnp.dot(a3.reshape(N * N, H).astype(BF16), expand,
                            preferred_element_type=jnp.float32)                   # (N*N, HDn)
            weighted = a_big.reshape(N, N, HDn) * h_src[:, None, :]               # (src, dst, HDn)
            node_all = jnp.sum(weighted, axis=0)                                  # (dst, HDn)
            node_out = jnp.dot(node_all.astype(BF16), mean_n,
                               preferred_element_type=jnp.float32)                # (dst, Dn)
            return node_out, edge_out

        x = nfeat_ref[...]                 # f32 (N, Dn)
        init = x
        e2d = efeat_ref[...]               # bf16 (N*N, D_in)

        for l in range(n_layers):
            w_all, w_fij, bias, attn_edge, gamma, beta = (
                r[...] for r in layer_refs[6 * l:6 * l + 6])
            x, e2d = conv(x, e2d, w_all, w_fij, bias, attn_edge, True)
            # TODO(synk): nn.Dropout modelled as deterministic identity.
            # BatchNorm1d forward, training-mode batch statistics (biased var), eps=1e-5, f32
            mu = jnp.mean(x, axis=0, keepdims=True)
            var = jnp.mean(jnp.square(x - mu), axis=0, keepdims=True)
            x = (x - mu) * jax.lax.rsqrt(var + 1e-5) * gamma + beta

        # layers[-1] is applied a second time (as in the PyTorch forward); its edge output
        # is discarded, so it is never computed.
        w_all, w_fij, bias, attn_edge = (
            r[...] for r in layer_refs[6 * (n_layers - 1):6 * (n_layers - 1) + 4])
        x, _ = conv(x, e2d, w_all, w_fij, bias, attn_edge, False)

        out_ref[...] = x + init

    return kernel


# ----------------------------------------------------------------------------
# Wrapper (host-side one-time parameter packing + single pallas_call)
# ----------------------------------------------------------------------------
_VMEM = lambda: pl.BlockSpec(memory_space=pltpu.MemorySpace.VMEM)


def _block_diag_attn(attn):
    """(H, Do) attention weights -> (H*Do, H) block-diagonal matrix."""
    H, Do = attn.shape
    eye = jnp.eye(H, dtype=attn.dtype)
    return (attn[:, :, None] * eye[:, None, :]).reshape(H * Do, H)


def egat_encoder_block(node_feat, edge_feat, adj, layer_params, bn_params):
    """Fused EGATEncoderBlock.forward (batch_norm=True) in a single pallas_call."""
    N, Dn_in = node_feat.shape
    n_layers = len(layer_params)
    H, Do = layer_params[0]["attn"].shape
    Dn = layer_params[0]["w_node"].shape[1] // H
    HDo, HDn = H * Do, H * Dn

    # structured helper matrices (head bookkeeping moved onto the MXU); values exact in bf16
    expand = jnp.kron(jnp.eye(H, dtype=jnp.float32),
                      jnp.ones((1, Dn), jnp.float32)).astype(jnp.bfloat16)        # (H, H*Dn)
    mean_n = (jnp.kron(jnp.ones((H, 1), jnp.float32),
                       jnp.eye(Dn, dtype=jnp.float32)) / H).astype(jnp.bfloat16)  # (H*Dn, Dn)
    mean_e = jnp.kron(jnp.ones((H, 1), jnp.float32),
                      jnp.eye(Do, dtype=jnp.float32)) / H                         # (H*Do, Do)

    packed = []
    for p, bn in zip(layer_params, bn_params):
        w_all = jnp.concatenate([p["w_ni"], p["w_nj"], p["w_node"]],
                                axis=1).astype(jnp.bfloat16)
        # merged RHS: [block_diag(attn) | head-mean]  ->  one matmul over the (N^2, HDo) LHS
        attn_edge = jnp.concatenate([_block_diag_attn(p["attn"]), mean_e],
                                    axis=1).astype(jnp.bfloat16)                  # (HDo, H+Do)
        packed += [w_all, p["w_fij"].astype(jnp.bfloat16), p["bias"],
                   attn_edge, bn["gamma"], bn["beta"]]

    e2d = edge_feat.reshape(N * N, -1).astype(jnp.bfloat16)
    args = [node_feat, e2d, adj, expand, mean_n] + packed

    # explicit VMEM budget (catches v7x's 32 MiB scoped default early at larger N)
    arg_bytes = sum(int(a.size) * a.dtype.itemsize for a in args)
    live_edge = N * N * HDo * 4
    vmem_limit = int(min(96 << 20, max(32 << 20, arg_bytes + 10 * live_edge + (4 << 20))))

    # advisory cost hint so XLA schedules neighbors around the fused call
    per_conv_flops = (2 * N * Dn_in * (2 * HDo + HDn) + 2 * N * N * Dn_in * HDo
                      + 2 * N * N * HDo * (H + Do) + 2 * N * N * H * HDn
                      + 2 * N * HDn * Dn + 6 * N * N * HDo)
    cost = pl.CostEstimate(
        flops=(n_layers + 1) * per_conv_flops,
        transcendentals=(n_layers + 1) * N * N * H,
        bytes_accessed=arg_bytes + N * Dn * 4)

    kernel = make_encoder_kernel(n_layers, N, H, Do, Dn)
    # NOTE: grid=() fully-fused variant; for N >~ 64-128 (earliest on v7x) switch to a
    # dst-tiled grid (dst tile a multiple of 8, marked "parallel") and/or a graph-batch axis.
    return pl.pallas_call(
        kernel,
        out_shape=jax.ShapeDtypeStruct((N, Dn), jnp.float32),
        in_specs=[_VMEM()] * len(args),
        out_specs=_VMEM(),
        compiler_params=pltpu.CompilerParams(vmem_limit_bytes=vmem_limit),
        cost_estimate=cost,
    )(*args)


# ----------------------------------------------------------------------------
# Deterministic parameter init (xavier-uniform like DGL's reset_parameters)
# ----------------------------------------------------------------------------
def init_egat_params(key, in_dim, out_node, out_edge, heads):
    ks = jax.random.split(key, 5)

    def xavier(k, shape):
        s = (6.0 / (shape[0] + shape[1])) ** 0.5
        return jax.random.uniform(k, shape, jnp.float32, -s, s)

    return dict(
        w_ni=xavier(ks[0], (in_dim, heads * out_edge)),
        w_nj=xavier(ks[1], (in_dim, heads * out_edge)),
        w_fij=xavier(ks[2], (in_dim, heads * out_edge)),
        w_node=xavier(ks[3], (in_dim, heads * out_node)),
        attn=xavier(ks[4], (heads, out_edge)),
        bias=jnp.zeros((1, heads * out_edge), jnp.float32),
    )


if __name__ == "__main__":
    hidden_dim = 32
    out_dim = 32          # must equal hidden_dim for the residual / BN to chain (as in the module)
    n_layers = 2
    num_heads = 4
    N = 16                # number of graph nodes

    key = jax.random.PRNGKey(0)
    k_node, k_edge, k_adj, k_params = jax.random.split(key, 4)

    node_feat = jax.random.normal(k_node, (N, hidden_dim), jnp.float32)
    edge_feat = jax.random.normal(k_edge, (N, N, hidden_dim), jnp.float32)
    adj = (jax.random.uniform(k_adj, (N, N)) < 0.4).astype(jnp.float32)
    adj = jnp.maximum(adj, jnp.eye(N, dtype=jnp.float32))  # self loops -> every dst has >=1 in-edge

    pkeys = jax.random.split(k_params, n_layers)
    layer_params = [init_egat_params(pkeys[i], hidden_dim, out_dim, out_dim, num_heads)
                    for i in range(n_layers)]
    bn_params = [dict(gamma=jnp.ones((1, hidden_dim), jnp.float32),
                      beta=jnp.zeros((1, hidden_dim), jnp.float32))
                 for _ in range(n_layers)]

    out = egat_encoder_block(node_feat, edge_feat, adj, layer_params, bn_params)
    out = jax.block_until_ready(out)

    assert out.shape == (N, hidden_dim), out.shape
    assert bool(jnp.all(jnp.isfinite(out)))
    print("KERNEL_OK")
</pallas_src>

<mosaic_0001>
module attributes {stable_mosaic.version = 11 : i64} {
  func.func @kernel(%arg0: memref<16x32xf32, #tpu.memory_space<vmem>>, %arg1: memref<256x32xbf16, #tpu.memory_space<vmem>>, %arg2: memref<16x16xf32, #tpu.memory_space<vmem>>, %arg3: memref<4x128xbf16, #tpu.memory_space<vmem>>, %arg4: memref<128x32xbf16, #tpu.memory_space<vmem>>, %arg5: memref<32x384xbf16, #tpu.memory_space<vmem>>, %arg6: memref<32x128xbf16, #tpu.memory_space<vmem>>, %arg7: memref<1x128xf32, #tpu.memory_space<vmem>>, %arg8: memref<128x36xbf16, #tpu.memory_space<vmem>>, %arg9: memref<1x32xf32, #tpu.memory_space<vmem>>, %arg10: memref<1x32xf32, #tpu.memory_space<vmem>>, %arg11: memref<32x384xbf16, #tpu.memory_space<vmem>>, %arg12: memref<32x128xbf16, #tpu.memory_space<vmem>>, %arg13: memref<1x128xf32, #tpu.memory_space<vmem>>, %arg14: memref<128x36xbf16, #tpu.memory_space<vmem>>, %arg15: memref<1x32xf32, #tpu.memory_space<vmem>>, %arg16: memref<1x32xf32, #tpu.memory_space<vmem>>, %arg17: memref<16x32xf32, #tpu.memory_space<vmem>>) attributes {dimension_semantics = [], scalar_prefetch = 0 : i64, scratch_operands = 0 : i64, tpu.core_type = #tpu.core_type<tc>} {
    %c0 = arith.constant 0 : index
    %c0_0 = arith.constant 0 : index
    %0 = vector.load %arg2[%c0, %c0_0] : memref<16x16xf32, #tpu.memory_space<vmem>>, vector<16x16xf32>
    %cst = arith.constant 0.000000e+00 : f32
    %1 = vector.broadcast %cst : f32 to vector<16x16xf32>
    %2 = arith.cmpf ogt, %0, %1 : vector<16x16xf32>
    %cst_1 = arith.constant 0.000000e+00 : f32
    %cst_2 = arith.constant -1.000000e+30 : f32
    %3 = vector.broadcast %cst_1 : f32 to vector<16x16xf32>
    %4 = vector.broadcast %cst_2 : f32 to vector<16x16xf32>
    %5 = arith.select %2, %3, %4 : vector<16x16xi1>, vector<16x16xf32>
    %6 = vector.shape_cast %5 : vector<16x16xf32> to vector<16x16x1xf32>
    %7 = vector.shape_cast %0 : vector<16x16xf32> to vector<16x16x1xf32>
    %c0_3 = arith.constant 0 : index
    %c0_4 = arith.constant 0 : index
    %8 = vector.load %arg3[%c0_3, %c0_4] : memref<4x128xbf16, #tpu.memory_space<vmem>>, vector<4x128xbf16>
    %c0_5 = arith.constant 0 : index
    %c0_6 = arith.constant 0 : index
    %9 = vector.load %arg4[%c0_5, %c0_6] : memref<128x32xbf16, #tpu.memory_space<vmem>>, vector<128x32xbf16>
    %c0_7 = arith.constant 0 : index
    %c0_8 = arith.constant 0 : index
    %10 = vector.load %arg0[%c0_7, %c0_8] : memref<16x32xf32, #tpu.memory_space<vmem>>, vector<16x32xf32>
    %c0_9 = arith.constant 0 : index
    %c0_10 = arith.constant 0 : index
    %11 = vector.load %arg1[%c0_9, %c0_10] : memref<256x32xbf16, #tpu.memory_space<vmem>>, vector<256x32xbf16>
    %c0_11 = arith.constant 0 : index
    %c0_12 = arith.constant 0 : index
    %12 = vector.load %arg5[%c0_11, %c0_12] : memref<32x384xbf16, #tpu.memory_space<vmem>>, vector<32x384xbf16>
    %c0_13 = arith.constant 0 : index
    %c0_14 = arith.constant 0 : index
    %13 = vector.load %arg6[%c0_13, %c0_14] : memref<32x128xbf16, #tpu.memory_space<vmem>>, vector<32x128xbf16>
    %c0_15 = arith.constant 0 : index
    %c0_16 = arith.constant 0 : index
    %14 = vector.load %arg7[%c0_15, %c0_16] : memref<1x128xf32, #tpu.memory_space<vmem>>, vector<1x128xf32>
    %c0_17 = arith.constant 0 : index
    %c0_18 = arith.constant 0 : index
    %15 = vector.load %arg8[%c0_17, %c0_18] : memref<128x36xbf16, #tpu.memory_space<vmem>>, vector<128x36xbf16>
    %c0_19 = arith.constant 0 : index
    %c0_20 = arith.constant 0 : index
    %16 = vector.load %arg9[%c0_19, %c0_20] : memref<1x32xf32, #tpu.memory_space<vmem>>, vector<1x32xf32>
    %c0_21 = arith.constant 0 : index
    %c0_22 = arith.constant 0 : index
    %17 = vector.load %arg10[%c0_21, %c0_22] : memref<1x32xf32, #tpu.memory_space<vmem>>, vector<1x32xf32>
    %18 = arith.truncf %10 : vector<16x32xf32> to vector<16x32xbf16>
    %cst_23 = arith.constant dense<0.000000e+00> : vector<16x384xf32>
    %19 = tpu.matmul %18, %12, %cst_23 {dimension_numbers = #tpu.dot_dimension_numbers<[1], [0], [0], [1], [0, 0, 1, 1], [], []>} : vector<16x32xbf16>, vector<32x384xbf16>, vector<16x384xf32> -> vector<16x384xf32>
    %20 = vector.extract_strided_slice %19 {offsets = [0, 0], sizes = [16, 128], strides = [1, 1]} : vector<16x384xf32> to vector<16x128xf32>
    %21 = vector.broadcast %14 : vector<1x128xf32> to vector<16x128xf32>
    %22 = arith.addf %20, %21 : vector<16x128xf32>
    %23 = vector.extract_strided_slice %19 {offsets = [0, 128], sizes = [16, 128], strides = [1, 1]} : vector<16x384xf32> to vector<16x128xf32>
    %24 = vector.extract_strided_slice %19 {offsets = [0, 256], sizes = [16, 128], strides = [1, 1]} : vector<16x384xf32> to vector<16x128xf32>
    %cst_24 = arith.constant dense<0.000000e+00> : vector<256x128xf32>
    %25 = tpu.matmul %11, %13, %cst_24 {dimension_numbers = #tpu.dot_dimension_numbers<[1], [0], [0], [1], [0, 0, 1, 1], [], []>} : vector<256x32xbf16>, vector<32x128xbf16>, vector<256x128xf32> -> vector<256x128xf32>
    %26 = vector.shape_cast %22 : vector<16x128xf32> to vector<16x1x128xf32>
    %27 = vector.shape_cast %23 : vector<16x128xf32> to vector<1x16x128xf32>
    %28 = vector.broadcast %26 : vector<16x1x128xf32> to vector<16x16x128xf32>
    %29 = vector.broadcast %27 : vector<1x16x128xf32> to vector<16x16x128xf32>
    %30 = arith.addf %28, %29 : vector<16x16x128xf32>
    %31 = vector.shape_cast %25 : vector<256x128xf32> to vector<16x16x128xf32>
    %32 = arith.addf %30, %31 : vector<16x16x128xf32>
    %cst_25 = arith.constant 0.00999999977 : f32
    %33 = vector.broadcast %cst_25 : f32 to vector<16x16x128xf32>
    %34 = arith.mulf %33, %32 : vector<16x16x128xf32>
    %35 = arith.maximumf %32, %34 : vector<16x16x128xf32>
    %36 = vector.shape_cast %35 : vector<16x16x128xf32> to vector<256x128xf32>
    %37 = arith.truncf %36 : vector<256x128xf32> to vector<256x128xbf16>
    %cst_26 = arith.constant dense<0.000000e+00> : vector<256x36xf32>
    %38 = tpu.matmul %37, %15, %cst_26 {dimension_numbers = #tpu.dot_dimension_numbers<[1], [0], [0], [1], [0, 0, 1, 1], [], []>} : vector<256x128xbf16>, vector<128x36xbf16>, vector<256x36xf32> -> vector<256x36xf32>
    %39 = vector.extract_strided_slice %38 {offsets = [0, 0], sizes = [256, 4], strides = [1, 1]} : vector<256x36xf32> to vector<256x4xf32>
    %40 = vector.extract_strided_slice %38 {offsets = [0, 4], sizes = [256, 32], strides = [1, 1]} : vector<256x36xf32> to vector<256x32xf32>
    %41 = arith.truncf %40 : vector<256x32xf32> to vector<256x32xbf16>
    %42 = vector.shape_cast %39 : vector<256x4xf32> to vector<16x16x4xf32>
    %43 = vector.broadcast %6 : vector<16x16x1xf32> to vector<16x16x4xf32>
    %44 = arith.addf %42, %43 : vector<16x16x4xf32>
    %cst_27 = arith.constant dense<0xFF800000> : vector<16x4xf32>
    %45 = vector.multi_reduction <maximumf>, %44, %cst_27 [0] : vector<16x16x4xf32> to vector<16x4xf32>
    %46 = vector.shape_cast %45 : vector<16x4xf32> to vector<1x16x4xf32>
    %47 = vector.broadcast %46 : vector<1x16x4xf32> to vector<16x16x4xf32>
    %48 = arith.subf %44, %47 : vector<16x16x4xf32>
    %49 = math.exp %48 : vector<16x16x4xf32>
    %50 = vector.broadcast %7 : vector<16x16x1xf32> to vector<16x16x4xf32>
    %51 = arith.mulf %49, %50 : vector<16x16x4xf32>
    %cst_28 = arith.constant dense<0.000000e+00> : vector<16x4xf32>
    %52 = vector.multi_reduction <add>, %51, %cst_28 [0] : vector<16x16x4xf32> to vector<16x4xf32>
    %53 = vector.shape_cast %52 : vector<16x4xf32> to vector<1x16x4xf32>
    %cst_29 = arith.constant 1.000000e-30 : f32
    %54 = vector.broadcast %cst_29 : f32 to vector<1x16x4xf32>
    %55 = arith.maximumf %53, %54 : vector<1x16x4xf32>
    %56 = tpu.reciprocal %55 {approx = true} : vector<1x16x4xf32> -> vector<1x16x4xf32>
    %57 = vector.broadcast %56 : vector<1x16x4xf32> to vector<16x16x4xf32>
    %58 = arith.mulf %51, %57 : vector<16x16x4xf32>
    %59 = vector.shape_cast %58 : vector<16x16x4xf32> to vector<256x4xf32>
    %60 = arith.truncf %59 : vector<256x4xf32> to vector<256x4xbf16>
    %cst_30 = arith.constant dense<0.000000e+00> : vector<256x128xf32>
    %61 = tpu.matmul %60, %8, %cst_30 {dimension_numbers = #tpu.dot_dimension_numbers<[1], [0], [0], [1], [0, 0, 1, 1], [], []>} : vector<256x4xbf16>, vector<4x128xbf16>, vector<256x128xf32> -> vector<256x128xf32>
    %62 = vector.shape_cast %61 : vector<256x128xf32> to vector<16x16x128xf32>
    %63 = vector.shape_cast %24 : vector<16x128xf32> to vector<16x1x128xf32>
    %64 = vector.broadcast %63 : vector<16x1x128xf32> to vector<16x16x128xf32>
    %65 = arith.mulf %62, %64 : vector<16x16x128xf32>
    %cst_31 = arith.constant dense<0.000000e+00> : vector<16x128xf32>
    %66 = vector.multi_reduction <add>, %65, %cst_31 [0] : vector<16x16x128xf32> to vector<16x128xf32>
    %67 = arith.truncf %66 : vector<16x128xf32> to vector<16x128xbf16>
    %cst_32 = arith.constant dense<0.000000e+00> : vector<16x32xf32>
    %68 = tpu.matmul %67, %9, %cst_32 {dimension_numbers = #tpu.dot_dimension_numbers<[1], [0], [0], [1], [0, 0, 1, 1], [], []>} : vector<16x128xbf16>, vector<128x32xbf16>, vector<16x32xf32> -> vector<16x32xf32>
    %cst_33 = arith.constant dense<0.000000e+00> : vector<32xf32>
    %69 = vector.multi_reduction <add>, %68, %cst_33 [0] : vector<16x32xf32> to vector<32xf32>
    %70 = vector.shape_cast %69 : vector<32xf32> to vector<1x32xf32>
    %cst_34 = arith.constant 1.600000e+01 : f32
    %71 = vector.broadcast %cst_34 : f32 to vector<1x32xf32>
    %72 = arith.divf %70, %71 : vector<1x32xf32>
    %73 = vector.broadcast %72 : vector<1x32xf32> to vector<16x32xf32>
    %74 = arith.subf %68, %73 : vector<16x32xf32>
    %75 = arith.mulf %74, %74 : vector<16x32xf32>
    %cst_35 = arith.constant dense<0.000000e+00> : vector<32xf32>
    %76 = vector.multi_reduction <add>, %75, %cst_35 [0] : vector<16x32xf32> to vector<32xf32>
    %77 = vector.shape_cast %76 : vector<32xf32> to vector<1x32xf32>
    %cst_36 = arith.constant 1.600000e+01 : f32
    %78 = vector.broadcast %cst_36 : f32 to vector<1x32xf32>
    %79 = arith.divf %77, %78 : vector<1x32xf32>
    %80 = vector.broadcast %72 : vector<1x32xf32> to vector<16x32xf32>
    %81 = arith.subf %68, %80 : vector<16x32xf32>
    %cst_37 = arith.constant 9.99999974E-6 : f32
    %82 = vector.broadcast %cst_37 : f32 to vector<1x32xf32>
    %83 = arith.addf %79, %82 : vector<1x32xf32>
    %84 = math.rsqrt %83 : vector<1x32xf32>
    %85 = vector.broadcast %84 : vector<1x32xf32> to vector<16x32xf32>
    %86 = arith.mulf %81, %85 : vector<16x32xf32>
    %87 = vector.broadcast %16 : vector<1x32xf32> to vector<16x32xf32>
    %88 = arith.mulf %86, %87 : vector<16x32xf32>
    %89 = vector.broadcast %17 : vector<1x32xf32> to vector<16x32xf32>
    %90 = arith.addf %88, %89 : vector<16x32xf32>
    %c0_38 = arith.constant 0 : index
    %c0_39 = arith.constant 0 : index
    %91 = vector.load %arg11[%c0_38, %c0_39] : memref<32x384xbf16, #tpu.memory_space<vmem>>, vector<32x384xbf16>
    %c0_40 = arith.constant 0 : index
    %c0_41 = arith.constant 0 : index
    %92 = vector.load %arg12[%c0_40, %c0_41] : memref<32x128xbf16, #tpu.memory_space<vmem>>, vector<32x128xbf16>
    %c0_42 = arith.constant 0 : index
    %c0_43 = arith.constant 0 : index
    %93 = vector.load %arg13[%c0_42, %c0_43] : memref<1x128xf32, #tpu.memory_space<vmem>>, vector<1x128xf32>
    %c0_44 = arith.constant 0 : index
    %c0_45 = arith.constant 0 : index
    %94 = vector.load %arg14[%c0_44, %c0_45] : memref<128x36xbf16, #tpu.memory_space<vmem>>, vector<128x36xbf16>
    %c0_46 = arith.constant 0 : index
    %c0_47 = arith.constant 0 : index
    %95 = vector.load %arg15[%c0_46, %c0_47] : memref<1x32xf32, #tpu.memory_space<vmem>>, vector<1x32xf32>
    %c0_48 = arith.constant 0 : index
    %c0_49 = arith.constant 0 : index
    %96 = vector.load %arg16[%c0_48, %c0_49] : memref<1x32xf32, #tpu.memory_space<vmem>>, vector<1x32xf32>
    %97 = arith.truncf %90 : vector<16x32xf32> to vector<16x32xbf16>
    %cst_50 = arith.constant dense<0.000000e+00> : vector<16x384xf32>
    %98 = tpu.matmul %97, %91, %cst_50 {dimension_numbers = #tpu.dot_dimension_numbers<[1], [0], [0], [1], [0, 0, 1, 1], [], []>} : vector<16x32xbf16>, vector<32x384xbf16>, vector<16x384xf32> -> vector<16x384xf32>
    %99 = vector.extract_strided_slice %98 {offsets = [0, 0], sizes = [16, 128], strides = [1, 1]} : vector<16x384xf32> to vector<16x128xf32>
    %100 = vector.broadcast %93 : vector<1x128xf32> to vector<16x128xf32>
    %101 = arith.addf %99, %100 : vector<16x128xf32>
    %102 = vector.extract_strided_slice %98 {offsets = [0, 128], sizes = [16, 128], strides = [1, 1]} : vector<16x384xf32> to vector<16x128xf32>
    %103 = vector.extract_strided_slice %98 {offsets = [0, 256], sizes = [16, 128], strides = [1, 1]} : vector<16x384xf32> to vector<16x128xf32>
    %cst_51 = arith.constant dense<0.000000e+00> : vector<256x128xf32>
    %104 = tpu.matmul %41, %92, %cst_51 {dimension_numbers = #tpu.dot_dimension_numbers<[1], [0], [0], [1], [0, 0, 1, 1], [], []>} : vector<256x32xbf16>, vector<32x128xbf16>, vector<256x128xf32> -> vector<256x128xf32>
    %105 = vector.shape_cast %101 : vector<16x128xf32> to vector<16x1x128xf32>
    %106 = vector.shape_cast %102 : vector<16x128xf32> to vector<1x16x128xf32>
    %107 = vector.broadcast %105 : vector<16x1x128xf32> to vector<16x16x128xf32>
    %108 = vector.broadcast %106 : vector<1x16x128xf32> to vector<16x16x128xf32>
    %109 = arith.addf %107, %108 : vector<16x16x128xf32>
    %110 = vector.shape_cast %104 : vector<256x128xf32> to vector<16x16x128xf32>
    %111 = arith.addf %109, %110 : vector<16x16x128xf32>
    %cst_52 = arith.constant 0.00999999977 : f32
    %112 = vector.broadcast %cst_52 : f32 to vector<16x16x128xf32>
    %113 = arith.mulf %112, %111 : vector<16x16x128xf32>
    %114 = arith.maximumf %111, %113 : vector<16x16x128xf32>
    %115 = vector.shape_cast %114 : vector<16x16x128xf32> to vector<256x128xf32>
    %116 = arith.truncf %115 : vector<256x128xf32> to vector<256x128xbf16>
    %cst_53 = arith.constant dense<0.000000e+00> : vector<256x36xf32>
    %117 = tpu.matmul %116, %94, %cst_53 {dimension_numbers = #tpu.dot_dimension_numbers<[1], [0], [0], [1], [0, 0, 1, 1], [], []>} : vector<256x128xbf16>, vector<128x36xbf16>, vector<256x36xf32> -> vector<256x36xf32>
    %118 = vector.extract_strided_slice %117 {offsets = [0, 0], sizes = [256, 4], strides = [1, 1]} : vector<256x36xf32> to vector<256x4xf32>
    %119 = vector.extract_strided_slice %117 {offsets = [0, 4], sizes = [256, 32], strides = [1, 1]} : vector<256x36xf32> to vector<256x32xf32>
    %120 = arith.truncf %119 : vector<256x32xf32> to vector<256x32xbf16>
    %121 = vector.shape_cast %118 : vector<256x4xf32> to vector<16x16x4xf32>
    %122 = vector.broadcast %6 : vector<16x16x1xf32> to vector<16x16x4xf32>
    %123 = arith.addf %121, %122 : vector<16x16x4xf32>
    %cst_54 = arith.constant dense<0xFF800000> : vector<16x4xf32>
    %124 = vector.multi_reduction <maximumf>, %123, %cst_54 [0] : vector<16x16x4xf32> to vector<16x4xf32>
    %125 = vector.shape_cast %124 : vector<16x4xf32> to vector<1x16x4xf32>
    %126 = vector.broadcast %125 : vector<1x16x4xf32> to vector<16x16x4xf32>
    %127 = arith.subf %123, %126 : vector<16x16x4xf32>
    %128 = math.exp %127 : vector<16x16x4xf32>
    %129 = vector.broadcast %7 : vector<16x16x1xf32> to vector<16x16x4xf32>
    %130 = arith.mulf %128, %129 : vector<16x16x4xf32>
    %cst_55 = arith.constant dense<0.000000e+00> : vector<16x4xf32>
    %131 = vector.multi_reduction <add>, %130, %cst_55 [0] : vector<16x16x4xf32> to vector<16x4xf32>
    %132 = vector.shape_cast %131 : vector<16x4xf32> to vector<1x16x4xf32>
    %cst_56 = arith.constant 1.000000e-30 : f32
    %133 = vector.broadcast %cst_56 : f32 to vector<1x16x4xf32>
    %134 = arith.maximumf %132, %133 : vector<1x16x4xf32>
    %135 = tpu.reciprocal %134 {approx = true} : vector<1x16x4xf32> -> vector<1x16x4xf32>
    %136 = vector.broadcast %135 : vector<1x16x4xf32> to vector<16x16x4xf32>
    %137 = arith.mulf %130, %136 : vector<16x16x4xf32>
    %138 = vector.shape_cast %137 : vector<16x16x4xf32> to vector<256x4xf32>
    %139 = arith.truncf %138 : vector<256x4xf32> to vector<256x4xbf16>
    %cst_57 = arith.constant dense<0.000000e+00> : vector<256x128xf32>
    %140 = tpu.matmul %139, %8, %cst_57 {dimension_numbers = #tpu.dot_dimension_numbers<[1], [0], [0], [1], [0, 0, 1, 1], [], []>} : vector<256x4xbf16>, vector<4x128xbf16>, vector<256x128xf32> -> vector<256x128xf32>
    %141 = vector.shape_cast %140 : vector<256x128xf32> to vector<16x16x128xf32>
    %142 = vector.shape_cast %103 : vector<16x128xf32> to vector<16x1x128xf32>
    %143 = vector.broadcast %142 : vector<16x1x128xf32> to vector<16x16x128xf32>
    %144 = arith.mulf %141, %143 : vector<16x16x128xf32>
    %cst_58 = arith.constant dense<0.000000e+00> : vector<16x128xf32>
    %145 = vector.multi_reduction <add>, %144, %cst_58 [0] : vector<16x16x128xf32> to vector<16x128xf32>
    %146 = arith.truncf %145 : vector<16x128xf32> to vector<16x128xbf16>
    %cst_59 = arith.constant dense<0.000000e+00> : vector<16x32xf32>
    %147 = tpu.matmul %146, %9, %cst_59 {dimension_numbers = #tpu.dot_dimension_numbers<[1], [0], [0], [1], [0, 0, 1, 1], [], []>} : vector<16x128xbf16>, vector<128x32xbf16>, vector<16x32xf32> -> vector<16x32xf32>
    %cst_60 = arith.constant dense<0.000000e+00> : vector<32xf32>
    %148 = vector.multi_reduction <add>, %147, %cst_60 [0] : vector<16x32xf32> to vector<32xf32>
    %149 = vector.shape_cast %148 : vector<32xf32> to vector<1x32xf32>
    %cst_61 = arith.constant 1.600000e+01 : f32
    %150 = vector.broadcast %cst_61 : f32 to vector<1x32xf32>
    %151 = arith.divf %149, %150 : vector<1x32xf32>
    %152 = vector.broadcast %151 : vector<1x32xf32> to vector<16x32xf32>
    %153 = arith.subf %147, %152 : vector<16x32xf32>
    %154 = arith.mulf %153, %153 : vector<16x32xf32>
    %cst_62 = arith.constant dense<0.000000e+00> : vector<32xf32>
    %155 = vector.multi_reduction <add>, %154, %cst_62 [0] : vector<16x32xf32> to vector<32xf32>
    %156 = vector.shape_cast %155 : vector<32xf32> to vector<1x32xf32>
    %cst_63 = arith.constant 1.600000e+01 : f32
    %157 = vector.broadcast %cst_63 : f32 to vector<1x32xf32>
    %158 = arith.divf %156, %157 : vector<1x32xf32>
    %159 = vector.broadcast %151 : vector<1x32xf32> to vector<16x32xf32>
    %160 = arith.subf %147, %159 : vector<16x32xf32>
    %cst_64 = arith.constant 9.99999974E-6 : f32
    %161 = vector.broadcast %cst_64 : f32 to vector<1x32xf32>
    %162 = arith.addf %158, %161 : vector<1x32xf32>
    %163 = math.rsqrt %162 : vector<1x32xf32>
    %164 = vector.broadcast %163 : vector<1x32xf32> to vector<16x32xf32>
    %165 = arith.mulf %160, %164 : vector<16x32xf32>
    %166 = vector.broadcast %95 : vector<1x32xf32> to vector<16x32xf32>
    %167 = arith.mulf %165, %166 : vector<16x32xf32>
    %168 = vector.broadcast %96 : vector<1x32xf32> to vector<16x32xf32>
    %169 = arith.addf %167, %168 : vector<16x32xf32>
    %c0_65 = arith.constant 0 : index
    %c0_66 = arith.constant 0 : index
    %170 = vector.load %arg11[%c0_65, %c0_66] : memref<32x384xbf16, #tpu.memory_space<vmem>>, vector<32x384xbf16>
    %c0_67 = arith.constant 0 : index
    %c0_68 = arith.constant 0 : index
    %171 = vector.load %arg12[%c0_67, %c0_68] : memref<32x128xbf16, #tpu.memory_space<vmem>>, vector<32x128xbf16>
    %c0_69 = arith.constant 0 : index
    %c0_70 = arith.constant 0 : index
    %172 = vector.load %arg13[%c0_69, %c0_70] : memref<1x128xf32, #tpu.memory_space<vmem>>, vector<1x128xf32>
    %c0_71 = arith.constant 0 : index
    %c0_72 = arith.constant 0 : index
    %173 = vector.load %arg14[%c0_71, %c0_72] : memref<128x36xbf16, #tpu.memory_space<vmem>>, vector<128x36xbf16>
    %174 = arith.truncf %169 : vector<16x32xf32> to vector<16x32xbf16>
    %cst_73 = arith.constant dense<0.000000e+00> : vector<16x384xf32>
    %175 = tpu.matmul %174, %170, %cst_73 {dimension_numbers = #tpu.dot_dimension_numbers<[1], [0], [0], [1], [0, 0, 1, 1], [], []>} : vector<16x32xbf16>, vector<32x384xbf16>, vector<16x384xf32> -> vector<16x384xf32>
    %176 = vector.extract_strided_slice %175 {offsets = [0, 0], sizes = [16, 128], strides = [1, 1]} : vector<16x384xf32> to vector<16x128xf32>
    %177 = vector.broadcast %172 : vector<1x128xf32> to vector<16x128xf32>
    %178 = arith.addf %176, %177 : vector<16x128xf32>
    %179 = vector.extract_strided_slice %175 {offsets = [0, 128], sizes = [16, 128], strides = [1, 1]} : vector<16x384xf32> to vector<16x128xf32>
    %180 = vector.extract_strided_slice %175 {offsets = [0, 256], sizes = [16, 128], strides = [1, 1]} : vector<16x384xf32> to vector<16x128xf32>
    %cst_74 = arith.constant dense<0.000000e+00> : vector<256x128xf32>
    %181 = tpu.matmul %120, %171, %cst_74 {dimension_numbers = #tpu.dot_dimension_numbers<[1], [0], [0], [1], [0, 0, 1, 1], [], []>} : vector<256x32xbf16>, vector<32x128xbf16>, vector<256x128xf32> -> vector<256x128xf32>
    %182 = vector.shape_cast %178 : vector<16x128xf32> to vector<16x1x128xf32>
    %183 = vector.shape_cast %179 : vector<16x128xf32> to vector<1x16x128xf32>
    %184 = vector.broadcast %182 : vector<16x1x128xf32> to vector<16x16x128xf32>
    %185 = vector.broadcast %183 : vector<1x16x128xf32> to vector<16x16x128xf32>
    %186 = arith.addf %184, %185 : vector<16x16x128xf32>
    %187 = vector.shape_cast %181 : vector<256x128xf32> to vector<16x16x128xf32>
    %188 = arith.addf %186, %187 : vector<16x16x128xf32>
    %cst_75 = arith.constant 0.00999999977 : f32
    %189 = vector.broadcast %cst_75 : f32 to vector<16x16x128xf32>
    %190 = arith.mulf %189, %188 : vector<16x16x128xf32>
    %191 = arith.maximumf %188, %190 : vector<16x16x128xf32>
    %192 = vector.shape_cast %191 : vector<16x16x128xf32> to vector<256x128xf32>
    %193 = arith.truncf %192 : vector<256x128xf32> to vector<256x128xbf16>
    %194 = vector.extract_strided_slice %173 {offsets = [0, 0], sizes = [128, 4], strides = [1, 1]} : vector<128x36xbf16> to vector<128x4xbf16>
    %cst_76 = arith.constant dense<0.000000e+00> : vector<256x4xf32>
    %195 = tpu.matmul %193, %194, %cst_76 {dimension_numbers = #tpu.dot_dimension_numbers<[1], [0], [0], [1], [0, 0, 1, 1], [], []>} : vector<256x128xbf16>, vector<128x4xbf16>, vector<256x4xf32> -> vector<256x4xf32>
    %196 = vector.shape_cast %195 : vector<256x4xf32> to vector<16x16x4xf32>
    %197 = vector.broadcast %6 : vector<16x16x1xf32> to vector<16x16x4xf32>
    %198 = arith.addf %196, %197 : vector<16x16x4xf32>
    %cst_77 = arith.constant dense<0xFF800000> : vector<16x4xf32>
    %199 = vector.multi_reduction <maximumf>, %198, %cst_77 [0] : vector<16x16x4xf32> to vector<16x4xf32>
    %200 = vector.shape_cast %199 : vector<16x4xf32> to vector<1x16x4xf32>
    %201 = vector.broadcast %200 : vector<1x16x4xf32> to vector<16x16x4xf32>
    %202 = arith.subf %198, %201 : vector<16x16x4xf32>
    %203 = math.exp %202 : vector<16x16x4xf32>
    %204 = vector.broadcast %7 : vector<16x16x1xf32> to vector<16x16x4xf32>
    %205 = arith.mulf %203, %204 : vector<16x16x4xf32>
    %cst_78 = arith.constant dense<0.000000e+00> : vector<16x4xf32>
    %206 = vector.multi_reduction <add>, %205, %cst_78 [0] : vector<16x16x4xf32> to vector<16x4xf32>
    %207 = vector.shape_cast %206 : vector<16x4xf32> to vector<1x16x4xf32>
    %cst_79 = arith.constant 1.000000e-30 : f32
    %208 = vector.broadcast %cst_79 : f32 to vector<1x16x4xf32>
    %209 = arith.maximumf %207, %208 : vector<1x16x4xf32>
    %210 = tpu.reciprocal %209 {approx = true} : vector<1x16x4xf32> -> vector<1x16x4xf32>
    %211 = vector.broadcast %210 : vector<1x16x4xf32> to vector<16x16x4xf32>
    %212 = arith.mulf %205, %211 : vector<16x16x4xf32>
    %213 = vector.shape_cast %212 : vector<16x16x4xf32> to vector<256x4xf32>
    %214 = arith.truncf %213 : vector<256x4xf32> to vector<256x4xbf16>
    %cst_80 = arith.constant dense<0.000000e+00> : vector<256x128xf32>
    %215 = tpu.matmul %214, %8, %cst_80 {dimension_numbers = #tpu.dot_dimension_numbers<[1], [0], [0], [1], [0, 0, 1, 1], [], []>} : vector<256x4xbf16>, vector<4x128xbf16>, vector<256x128xf32> -> vector<256x128xf32>
    %216 = vector.shape_cast %215 : vector<256x128xf32> to vector<16x16x128xf32>
    %217 = vector.shape_cast %180 : vector<16x128xf32> to vector<16x1x128xf32>
    %218 = vector.broadcast %217 : vector<16x1x128xf32> to vector<16x16x128xf32>
    %219 = arith.mulf %216, %218 : vector<16x16x128xf32>
    %cst_81 = arith.constant dense<0.000000e+00> : vector<16x128xf32>
    %220 = vector.multi_reduction <add>, %219, %cst_81 [0] : vector<16x16x128xf32> to vector<16x128xf32>
    %221 = arith.truncf %220 : vector<16x128xf32> to vector<16x128xbf16>
    %cst_82 = arith.constant dense<0.000000e+00> : vector<16x32xf32>
    %222 = tpu.matmul %221, %9, %cst_82 {dimension_numbers = #tpu.dot_dimension_numbers<[1], [0], [0], [1], [0, 0, 1, 1], [], []>} : vector<16x128xbf16>, vector<128x32xbf16>, vector<16x32xf32> -> vector<16x32xf32>
    %223 = arith.addf %222, %10 : vector<16x32xf32>
    %c0_83 = arith.constant 0 : index
    %c0_84 = arith.constant 0 : index
    %224 = vector.load %arg17[%c0_83, %c0_84] : memref<16x32xf32, #tpu.memory_space<vmem>>, vector<16x32xf32>
    tpu.vector_store %arg17[%c0_83, %c0_84], %223 {strides = array<i32>} : memref<16x32xf32, #tpu.memory_space<vmem>>, vector<16x32xf32>,
    return
  }
}

</mosaic_0001>

<llo_original>
// kernel: tpu_custom_call.1
$region0: #{tpu_custom_call.1}
  #allocation0 [shape = 'u32[]', space=smem, size = 0x4, offset = 0x4, fixed_abs, tag = 'smem constant byte address 0x4 - core index']
  #allocation1 [shape = 'u32[144,128]{1,0:T(1,128)}', space=vmem, size = 0x12000, scoped, tag = 'internal scratch']
  %s0 = inlined_call_operand.vmem [shape: f32[16,32], index: 0, kind: input, shape index: {}]
  %s1 = inlined_call_operand.vmem [shape: bf16[256,32], index: 1, kind: input, shape index: {}]
  %s2 = inlined_call_operand.vmem [shape: f32[16,16], index: 2, kind: input, shape index: {}]
  %s3 = inlined_call_operand.vmem [shape: bf16[4,128], index: 3, kind: input, shape index: {}]
  %s4 = inlined_call_operand.vmem [shape: bf16[128,32], index: 4, kind: input, shape index: {}]
  %s5 = inlined_call_operand.vmem [shape: bf16[32,384], index: 5, kind: input, shape index: {}]
  %s6 = inlined_call_operand.vmem [shape: bf16[32,128], index: 6, kind: input, shape index: {}]
  %s7 = inlined_call_operand.vmem [shape: f32[1,128], index: 7, kind: input, shape index: {}]
  %s8 = inlined_call_operand.vmem [shape: bf16[128,36], index: 8, kind: input, shape index: {}]
  %s9 = inlined_call_operand.vmem [shape: f32[1,32], index: 9, kind: input, shape index: {}]
  %s10 = inlined_call_operand.vmem [shape: f32[1,32], index: 10, kind: input, shape index: {}]
  %s11 = inlined_call_operand.vmem [shape: bf16[32,384], index: 11, kind: input, shape index: {}]
  %s12 = inlined_call_operand.vmem [shape: bf16[32,128], index: 12, kind: input, shape index: {}]
  %s13 = inlined_call_operand.vmem [shape: f32[1,128], index: 13, kind: input, shape index: {}]
  %s14 = inlined_call_operand.vmem [shape: bf16[128,36], index: 14, kind: input, shape index: {}]
  %s15 = inlined_call_operand.vmem [shape: f32[1,32], index: 15, kind: input, shape index: {}]
  %s16 = inlined_call_operand.vmem [shape: f32[1,32], index: 16, kind: input, shape index: {}]
  %s17 = inlined_call_operand.hbm [shape: f32[16,32], index: 17, kind: output, shape index: {}]
  %s18 = sld [smem:[#allocation0]]
  $region78: #{tpu_custom_call.1} parent=0
    _
  %s20 = ssub.s32 1, %s18
  %s21 = scalar_select 0, %s20, %s18
  $region1: #{tpu_custom_call.1} parent=0
    #allocation2 [shape = 'u8[8192]{0}', space=vmem, size = 0x2000, scoped, tag = 'output window, operand 0, single buffered']
    #allocation3 [shape = 's32[1]{0}', space=sflag, size = 0x4, scoped, tag = 'scoped memory for tpu_custom_call.1']
    %22 = vsyncpa [#allocation3], 0
    // Predicated region
    $region2: #{tpu_custom_call.1} parent=1 // pred_check
      _
    $region3: #{tpu_custom_call.1} parent=1 // pred_check_branch
      %24 = sbr.rel (0) target = $region5
    $region4: #{tpu_custom_call.1} parent=1 // pred_region
      _
    $region5: #{tpu_custom_call.1} parent=1 // pred_fallthru
      _
    // Predicated region
    $region6: #{tpu_custom_call.1} parent=1 // pred_check
      _
    $region7: #{tpu_custom_call.1} parent=1 // pred_check_branch
      %26 = sbr.rel (0) target = $region9
    $region8: #{tpu_custom_call.1} parent=1 // pred_region
      _
    $region9: #{tpu_custom_call.1} parent=1 // pred_fallthru
      _
    // Predicated region
    $region10: #{tpu_custom_call.1} parent=1 // pred_check
      _
    $region11: #{tpu_custom_call.1} parent=1 // pred_check_branch
      %28 = sbr.rel (0) target = $region13
    $region12: #{tpu_custom_call.1} parent=1 // pred_region
      _
    $region13: #{tpu_custom_call.1} parent=1 // pred_fallthru
      _
    // Predicated region
    $region14: #{tpu_custom_call.1} parent=1 // pred_check
      _
    $region15: #{tpu_custom_call.1} parent=1 // pred_check_branch
      %30 = sbr.rel (0) target = $region17
    $region16: #{tpu_custom_call.1} parent=1 // pred_region
      _
    $region17: #{tpu_custom_call.1} parent=1 // pred_fallthru
      _
    // Predicated region
    $region18: #{tpu_custom_call.1} parent=1 // pred_check
      _
    $region19: #{tpu_custom_call.1} parent=1 // pred_check_branch
      %32 = sbr.rel (0) target = $region21
    $region20: #{tpu_custom_call.1} parent=1 // pred_region
      _
    $region21: #{tpu_custom_call.1} parent=1 // pred_fallthru
      _
    // Predicated region
    $region22: #{tpu_custom_call.1} parent=1 // pred_check
      _
    $region23: #{tpu_custom_call.1} parent=1 // pred_check_branch
      %34 = sbr.rel (0) target = $region25
    $region24: #{tpu_custom_call.1} parent=1 // pred_region
      _
    $region25: #{tpu_custom_call.1} parent=1 // pred_fallthru
      _
    // Predicated region
    $region26: #{tpu_custom_call.1} parent=1 // pred_check
      _
    $region27: #{tpu_custom_call.1} parent=1 // pred_check_branch
      %36 = sbr.rel (0) target = $region29
    $region28: #{tpu_custom_call.1} parent=1 // pred_region
      _
    $region29: #{tpu_custom_call.1} parent=1 // pred_fallthru
      _
    // Predicated region
    $region30: #{tpu_custom_call.1} parent=1 // pred_check
      _
    $region31: #{tpu_custom_call.1} parent=1 // pred_check_branch
      %38 = sbr.rel (0) target = $region33
    $region32: #{tpu_custom_call.1} parent=1 // pred_region
      _
    $region33: #{tpu_custom_call.1} parent=1 // pred_fallthru
      _
    // Predicated region
    $region34: #{tpu_custom_call.1} parent=1 // pred_check
      _
    $region35: #{tpu_custom_call.1} parent=1 // pred_check_branch
      %40 = sbr.rel (0) target = $region37
    $region36: #{tpu_custom_call.1} parent=1 // pred_region
      _
    $region37: #{tpu_custom_call.1} parent=1 // pred_fallthru
      _
    // Predicated region
    $region38: #{tpu_custom_call.1} parent=1 // pred_check
      _
    $region39: #{tpu_custom_call.1} parent=1 // pred_check_branch
      %42 = sbr.rel (0) target = $region41
    $region40: #{tpu_custom_call.1} parent=1 // pred_region
      _
    $region41: #{tpu_custom_call.1} parent=1 // pred_fallthru
      _
    // Predicated region
    $region42: #{tpu_custom_call.1} parent=1 // pred_check
      _
    $region43: #{tpu_custom_call.1} parent=1 // pred_check_branch
      %44 = sbr.rel (0) target = $region45
    $region44: #{tpu_custom_call.1} parent=1 // pred_region
      _
    $region45: #{tpu_custom_call.1} parent=1 // pred_fallthru
      _
    // Predicated region
    $region46: #{tpu_custom_call.1} parent=1 // pred_check
      _
    $region47: #{tpu_custom_call.1} parent=1 // pred_check_branch
      %46 = sbr.rel (0) target = $region49
    $region48: #{tpu_custom_call.1} parent=1 // pred_region
      _
    $region49: #{tpu_custom_call.1} parent=1 // pred_fallthru
      _
    // Predicated region
    $region50: #{tpu_custom_call.1} parent=1 // pred_check
      _
    $region51: #{tpu_custom_call.1} parent=1 // pred_check_branch
      %48 = sbr.rel (0) target = $region53
    $region52: #{tpu_custom_call.1} parent=1 // pred_region
      _
    $region53: #{tpu_custom_call.1} parent=1 // pred_fallthru
      _
    // Predicated region
    $region54: #{tpu_custom_call.1} parent=1 // pred_check
      _
    $region55: #{tpu_custom_call.1} parent=1 // pred_check_branch
      %50 = sbr.rel (0) target = $region57
    $region56: #{tpu_custom_call.1} parent=1 // pred_region
      _
    $region57: #{tpu_custom_call.1} parent=1 // pred_fallthru
      _
    // Predicated region
    $region58: #{tpu_custom_call.1} parent=1 // pred_check
      _
    $region59: #{tpu_custom_call.1} parent=1 // pred_check_branch
      %52 = sbr.rel (0) target = $region61
    $region60: #{tpu_custom_call.1} parent=1 // pred_region
      _
    $region61: #{tpu_custom_call.1} parent=1 // pred_fallthru
      _
    // Predicated region
    $region62: #{tpu_custom_call.1} parent=1 // pred_check
      _
    $region63: #{tpu_custom_call.1} parent=1 // pred_check_branch
      %54 = sbr.rel (0) target = $region65
    $region64: #{tpu_custom_call.1} parent=1 // pred_region
      _
    $region65: #{tpu_custom_call.1} parent=1 // pred_fallthru
      _
    // Predicated region
    $region66: #{tpu_custom_call.1} parent=1 // pred_check
      _
    $region67: #{tpu_custom_call.1} parent=1 // pred_check_branch
      %56 = sbr.rel (0) target = $region69
    $region68: #{tpu_custom_call.1} parent=1 // pred_region
      _
    $region69: #{tpu_custom_call.1} parent=1 // pred_fallthru
      _
    %v58 = vld [vmem:[%s2] sm:$0xff]
    %v59 = vld [vmem:[%s2 + $0x8] sm:$0xff]
    %vm60 = vcmp.gt.f32.partialorder %v58, 0.0
    %vm61 = vcmp.gt.f32.partialorder %v59, 0.0
    %v62 = vsel %vm60, 0.0, -1e+30
    %v63 = vsel %vm61, 0.0, -1e+30
    %v64 = vlaneseq
    %v65 = vshrl.u32 %v64, 7
    %v66 = vsub.s32 0, %v65
    %v67 = vrot.slane %v62, %v66
    %69 = vbcast.lane.b32.xlu0 %v67, 256
    %v70 = vpop.permute.xlu0 %69
    %s72 = sor.u32 256, 8
    %73 = vbcast.lane.b32.xlu0 %v67, %s72
    %v74 = vpop.permute.xlu0 %73
    %v75 = vlaneseq
    %v76 = vshrl.u32 %v75, 7
    %v77 = vsub.s32 1, %v76
    %v78 = vrot.slane %v62, %v77
    %80 = vbcast.lane.b32.xlu0 %v78, 256
    %v81 = vpop.permute.xlu0 %80
    %s83 = sor.u32 256, 8
    %84 = vbcast.lane.b32.xlu0 %v78, %s83
    %v85 = vpop.permute.xlu0 %84
    %v86 = vlaneseq
    %v87 = vshrl.u32 %v86, 7
    %v88 = vsub.s32 2, %v87
    %v89 = vrot.slane %v62, %v88
    %91 = vbcast.lane.b32.xlu0 %v89, 256
    %v92 = vpop.permute.xlu0 %91
    %s94 = sor.u32 256, 8
    %95 = vbcast.lane.b32.xlu0 %v89, %s94
    %v96 = vpop.permute.xlu0 %95
    %v97 = vlaneseq
    %v98 = vshrl.u32 %v97, 7
    %v99 = vsub.s32 3, %v98
    %v100 = vrot.slane %v62, %v99
    %102 = vbcast.lane.b32.xlu0 %v100, 256
    %v103 = vpop.permute.xlu0 %102
    %s105 = sor.u32 256, 8
    %106 = vbcast.lane.b32.xlu0 %v100, %s105
    %v107 = vpop.permute.xlu0 %106
    %v108 = vlaneseq
    %v109 = vshrl.u32 %v108, 7
    %v110 = vsub.s32 4, %v109
    %v111 = vrot.slane %v62, %v110
    %113 = vbcast.lane.b32.xlu0 %v111, 256
    %v114 = vpop.permute.xlu0 %113
    %s116 = sor.u32 256, 8
    %117 = vbcast.lane.b32.xlu0 %v111, %s116
    %v118 = vpop.permute.xlu0 %117
    %v119 = vlaneseq
    %v120 = vshrl.u32 %v119, 7
    %v121 = vsub.s32 5, %v120
    %v122 = vrot.slane %v62, %v121
    %124 = vbcast.lane.b32.xlu0 %v122, 256
    %v125 = vpop.permute.xlu0 %124
    %s127 = sor.u32 256, 8
    %128 = vbcast.lane.b32.xlu0 %v122, %s127
    %v129 = vpop.permute.xlu0 %128
    %v130 = vlaneseq
    %v131 = vshrl.u32 %v130, 7
    %v132 = vsub.s32 6, %v131
    %v133 = vrot.slane %v62, %v132
    %135 = vbcast.lane.b32.xlu0 %v133, 256
    %v136 = vpop.permute.xlu0 %135
    %s138 = sor.u32 256, 8
    %139 = vbcast.lane.b32.xlu0 %v133, %s138
    %v140 = vpop.permute.xlu0 %139
    %v141 = vlaneseq
    %v142 = vshrl.u32 %v141, 7
    %v143 = vsub.s32 7, %v142
    %v144 = vrot.slane %v62, %v143
    %146 = vbcast.lane.b32.xlu0 %v144, 256
    %v147 = vpop.permute.xlu0 %146
    %s149 = sor.u32 256, 8
    %150 = vbcast.lane.b32.xlu0 %v144, %s149
    %v151 = vpop.permute.xlu0 %150
    %v152 = vlaneseq
    %v153 = vshrl.u32 %v152, 7
    %v154 = vsub.s32 0, %v153
    %v155 = vrot.slane %v63, %v154
    %157 = vbcast.lane.b32.xlu0 %v155, 256
    %v158 = vpop.permute.xlu0 %157
    %s160 = sor.u32 256, 8
    %161 = vbcast.lane.b32.xlu0 %v155, %s160
    %v162 = vpop.permute.xlu0 %161
    %v163 = vlaneseq
    %v164 = vshrl.u32 %v163, 7
    %v165 = vsub.s32 1, %v164
    %v166 = vrot.slane %v63, %v165
    %168 = vbcast.lane.b32.xlu0 %v166, 256
    %v169 = vpop.permute.xlu0 %168
    %s171 = sor.u32 256, 8
    %172 = vbcast.lane.b32.xlu0 %v166, %s171
    %v173 = vpop.permute.xlu0 %172
    %v174 = vlaneseq
    %v175 = vshrl.u32 %v174, 7
    %v176 = vsub.s32 2, %v175
    %v177 = vrot.slane %v63, %v176
    %179 = vbcast.lane.b32.xlu0 %v177, 256
    %v180 = vpop.permute.xlu0 %179
    %s182 = sor.u32 256, 8
    %183 = vbcast.lane.b32.xlu0 %v177, %s182
    %v184 = vpop.permute.xlu0 %183
    %v185 = vlaneseq
    %v186 = vshrl.u32 %v185, 7
    %v187 = vsub.s32 3, %v186
    %v188 = vrot.slane %v63, %v187
    %190 = vbcast.lane.b32.xlu0 %v188, 256
    %v191 = vpop.permute.xlu0 %190
    %s193 = sor.u32 256, 8
    %194 = vbcast.lane.b32.xlu0 %v188, %s193
    %v195 = vpop.permute.xlu0 %194
    %v196 = vlaneseq
    %v197 = vshrl.u32 %v196, 7
    %v198 = vsub.s32 4, %v197
    %v199 = vrot.slane %v63, %v198
    %201 = vbcast.lane.b32.xlu0 %v199, 256
    %v202 = vpop.permute.xlu0 %201
    %s204 = sor.u32 256, 8
    %205 = vbcast.lane.b32.xlu0 %v199, %s204
    %v206 = vpop.permute.xlu0 %205
    %v207 = vlaneseq
    %v208 = vshrl.u32 %v207, 7
    %v209 = vsub.s32 5, %v208
    %v210 = vrot.slane %v63, %v209
    %212 = vbcast.lane.b32.xlu0 %v210, 256
    %v213 = vpop.permute.xlu0 %212
    %s215 = sor.u32 256, 8
    %216 = vbcast.lane.b32.xlu0 %v210, %s215
    %v217 = vpop.permute.xlu0 %216
    %v218 = vlaneseq
    %v219 = vshrl.u32 %v218, 7
    %v220 = vsub.s32 6, %v219
    %v221 = vrot.slane %v63, %v220
    %223 = vbcast.lane.b32.xlu0 %v221, 256
    %v224 = vpop.permute.xlu0 %223
    %s226 = sor.u32 256, 8
    %227 = vbcast.lane.b32.xlu0 %v221, %s226
    %v228 = vpop.permute.xlu0 %227
    %v229 = vlaneseq
    %v230 = vshrl.u32 %v229, 7
    %v231 = vsub.s32 7, %v230
    %v232 = vrot.slane %v63, %v231
    %234 = vbcast.lane.b32.xlu0 %v232, 256
    %v235 = vpop.permute.xlu0 %234
    %s237 = sor.u32 256, 8
    %238 = vbcast.lane.b32.xlu0 %v232, %s237
    %v239 = vpop.permute.xlu0 %238
    %v240 = vlaneseq
    %v241 = vshrl.u32 %v240, 7
    %v242 = vsub.s32 0, %v241
    %v243 = vrot.slane %v58, %v242
    %245 = vbcast.lane.b32.xlu0 %v243, 256
    %v246 = vpop.permute.xlu0 %245
    %s248 = sor.u32 256, 8
    %249 = vbcast.lane.b32.xlu0 %v243, %s248
    %v250 = vpop.permute.xlu0 %249
    %v251 = vlaneseq
    %v252 = vshrl.u32 %v251, 7
    %v253 = vsub.s32 1, %v252
    %v254 = vrot.slane %v58, %v253
    %256 = vbcast.lane.b32.xlu0 %v254, 256
    %v257 = vpop.permute.xlu0 %256
    %s259 = sor.u32 256, 8
    %260 = vbcast.lane.b32.xlu0 %v254, %s259
    %v261 = vpop.permute.xlu0 %260
    %v262 = vlaneseq
    %v263 = vshrl.u32 %v262, 7
    %v264 = vsub.s32 2, %v263
    %v265 = vrot.slane %v58, %v264
    %267 = vbcast.lane.b32.xlu0 %v265, 256
    %v268 = vpop.permute.xlu0 %267
    %s270 = sor.u32 256, 8
    %271 = vbcast.lane.b32.xlu0 %v265, %s270
    %v272 = vpop.permute.xlu0 %271
    %v273 = vlaneseq
    %v274 = vshrl.u32 %v273, 7
    %v275 = vsub.s32 3, %v274
    %v276 = vrot.slane %v58, %v275
    %278 = vbcast.lane.b32.xlu0 %v276, 256
    %v279 = vpop.permute.xlu0 %278
    %s281 = sor.u32 256, 8
    %282 = vbcast.lane.b32.xlu0 %v276, %s281
    %v283 = vpop.permute.xlu0 %282
    %v284 = vlaneseq
    %v285 = vshrl.u32 %v284, 7
    %v286 = vsub.s32 4, %v285
    %v287 = vrot.slane %v58, %v286
    %289 = vbcast.lane.b32.xlu0 %v287, 256
    %v290 = vpop.permute.xlu0 %289
    %s292 = sor.u32 256, 8
    %293 = vbcast.lane.b32.xlu0 %v287, %s292
    %v294 = vpop.permute.xlu0 %293
    %v295 = vlaneseq
    %v296 = vshrl.u32 %v295, 7
    %v297 = vsub.s32 5, %v296
    %v298 = vrot.slane %v58, %v297
    %300 = vbcast.lane.b32.xlu0 %v298, 256
    %v301 = vpop.permute.xlu0 %300
    %s303 = sor.u32 256, 8
    %304 = vbcast.lane.b32.xlu0 %v298, %s303
    %v305 = vpop.permute.xlu0 %304
    %v306 = vlaneseq
    %v307 = vshrl.u32 %v306, 7
    %v308 = vsub.s32 6, %v307
    %v309 = vrot.slane %v58, %v308
    %311 = vbcast.lane.b32.xlu0 %v309, 256
    %v312 = vpop.permute.xlu0 %311
    %s314 = sor.u32 256, 8
    %315 = vbcast.lane.b32.xlu0 %v309, %s314
    %v316 = vpop.permute.xlu0 %315
    %v317 = vlaneseq
    %v318 = vshrl.u32 %v317, 7
    %v319 = vsub.s32 7, %v318
    %v320 = vrot.slane %v58, %v319
    %322 = vbcast.lane.b32.xlu0 %v320, 256
    %v323 = vpop.permute.xlu0 %322
    %s325 = sor.u32 256, 8
    %326 = vbcast.lane.b32.xlu0 %v320, %s325
    %v327 = vpop.permute.xlu0 %326
    %v328 = vlaneseq
    %v329 = vshrl.u32 %v328, 7
    %v330 = vsub.s32 0, %v329
    %v331 = vrot.slane %v59, %v330
    %333 = vbcast.lane.b32.xlu0 %v331, 256
    %v334 = vpop.permute.xlu0 %333
    %s336 = sor.u32 256, 8
    %337 = vbcast.lane.b32.xlu0 %v331, %s336
    %v338 = vpop.permute.xlu0 %337
    %v339 = vlaneseq
    %v340 = vshrl.u32 %v339, 7
    %v341 = vsub.s32 1, %v340
    %v342 = vrot.slane %v59, %v341
    %344 = vbcast.lane.b32.xlu0 %v342, 256
    %v345 = vpop.permute.xlu0 %344
    %s347 = sor.u32 256, 8
    %348 = vbcast.lane.b32.xlu0 %v342, %s347
    %v349 = vpop.permute.xlu0 %348
    %v350 = vlaneseq
    %v351 = vshrl.u32 %v350, 7
    %v352 = vsub.s32 2, %v351
    %v353 = vrot.slane %v59, %v352
    %355 = vbcast.lane.b32.xlu0 %v353, 256
    %v356 = vpop.permute.xlu0 %355
    %s358 = sor.u32 256, 8
    %359 = vbcast.lane.b32.xlu0 %v353, %s358
    %v360 = vpop.permute.xlu0 %359
    %v361 = vlaneseq
    %v362 = vshrl.u32 %v361, 7
    %v363 = vsub.s32 3, %v362
    %v364 = vrot.slane %v59, %v363
    %366 = vbcast.lane.b32.xlu0 %v364, 256
    %v367 = vpop.permute.xlu0 %366
    %s369 = sor.u32 256, 8
    %370 = vbcast.lane.b32.xlu0 %v364, %s369
    %v371 = vpop.permute.xlu0 %370
    %v372 = vlaneseq
    %v373 = vshrl.u32 %v372, 7
    %v374 = vsub.s32 4, %v373
    %v375 = vrot.slane %v59, %v374
    %377 = vbcast.lane.b32.xlu0 %v375, 256
    %v378 = vpop.permute.xlu0 %377
    %s380 = sor.u32 256, 8
    %381 = vbcast.lane.b32.xlu0 %v375, %s380
    %v382 = vpop.permute.xlu0 %381
    %v383 = vlaneseq
    %v384 = vshrl.u32 %v383, 7
    %v385 = vsub.s32 5, %v384
    %v386 = vrot.slane %v59, %v385
    %388 = vbcast.lane.b32.xlu0 %v386, 256
    %v389 = vpop.permute.xlu0 %388
    %s391 = sor.u32 256, 8
    %392 = vbcast.lane.b32.xlu0 %v386, %s391
    %v393 = vpop.permute.xlu0 %392
    %v394 = vlaneseq
    %v395 = vshrl.u32 %v394, 7
    %v396 = vsub.s32 6, %v395
    %v397 = vrot.slane %v59, %v396
    %399 = vbcast.lane.b32.xlu0 %v397, 256
    %v400 = vpop.permute.xlu0 %399
    %s402 = sor.u32 256, 8
    %403 = vbcast.lane.b32.xlu0 %v397, %s402
    %v404 = vpop.permute.xlu0 %403
    %v405 = vlaneseq
    %v406 = vshrl.u32 %v405, 7
    %v407 = vsub.s32 7, %v406
    %v408 = vrot.slane %v59, %v407
    %410 = vbcast.lane.b32.xlu0 %v408, 256
    %v411 = vpop.permute.xlu0 %410
    %s413 = sor.u32 256, 8
    %414 = vbcast.lane.b32.xlu0 %v408, %s413
    %v415 = vpop.permute.xlu0 %414
    %v416 = vld [vmem:[%s3] sm:$0x3]
    %v417 = vld [vmem:[%s4] sm:$0xf]
    %v418 = vld [vmem:[%s4 + $0x4] sm:$0xf]
    %v419 = vld [vmem:[%s4 + $0x8] sm:$0xf]
    %v420 = vld [vmem:[%s4 + $0xc] sm:$0xf]
    %v421 = vld [vmem:[%s4 + $0x10] sm:$0xf]
    %v422 = vld [vmem:[%s4 + $0x14] sm:$0xf]
    %v423 = vld [vmem:[%s4 + $0x18] sm:$0xf]
    %v424 = vld [vmem:[%s4 + $0x1c] sm:$0xf]
    %v425 = vld [vmem:[%s4 + $0x20] sm:$0xf]
    %v426 = vld [vmem:[%s4 + $0x24] sm:$0xf]
    %v427 = vld [vmem:[%s4 + $0x28] sm:$0xf]
    %v428 = vld [vmem:[%s4 + $0x2c] sm:$0xf]
    %v429 = vld [vmem:[%s4 + $0x30] sm:$0xf]
    %v430 = vld [vmem:[%s4 + $0x34] sm:$0xf]
    %v431 = vld [vmem:[%s4 + $0x38] sm:$0xf]
    %v432 = vld [vmem:[%s4 + $0x3c] sm:$0xf]
    %v433 = vld [vmem:[%s0] sm:$0xff]
    %v434 = vld [vmem:[%s0 + $0x8] sm:$0xff]
    %v435 = vld [vmem:[%s1] sm:$0xf]
    %v436 = vld [vmem:[%s1 + $0x4] sm:$0xf]
    %v437 = vld [vmem:[%s1 + $0x8] sm:$0xf]
    %v438 = vld [vmem:[%s1 + $0xc] sm:$0xf]
    %v439 = vld [vmem:[%s1 + $0x10] sm:$0xf]
    %v440 = vld [vmem:[%s1 + $0x14] sm:$0xf]
    %v441 = vld [vmem:[%s1 + $0x18] sm:$0xf]
    %v442 = vld [vmem:[%s1 + $0x1c] sm:$0xf]
    %v443 = vld [vmem:[%s1 + $0x20] sm:$0xf]
    %v444 = vld [vmem:[%s1 + $0x24] sm:$0xf]
    %v445 = vld [vmem:[%s1 + $0x28] sm:$0xf]
    %v446 = vld [vmem:[%s1 + $0x2c] sm:$0xf]
    %v447 = vld [vmem:[%s1 + $0x30] sm:$0xf]
    %v448 = vld [vmem:[%s1 + $0x34] sm:$0xf]
    %v449 = vld [vmem:[%s1 + $0x38] sm:$0xf]
    %v450 = vld [vmem:[%s1 + $0x3c] sm:$0xf]
    %v451 = vld [vmem:[%s1 + $0x40] sm:$0xf]
    %v452 = vld [vmem:[%s1 + $0x44] sm:$0xf]
    %v453 = vld [vmem:[%s1 + $0x48] sm:$0xf]
    %v454 = vld [vmem:[%s1 + $0x4c] sm:$0xf]
    %v455 = vld [vmem:[%s1 + $0x50] sm:$0xf]
    %v456 = vld [vmem:[%s1 + $0x54] sm:$0xf]
    %v457 = vld [vmem:[%s1 + $0x58] sm:$0xf]
    %v458 = vld [vmem:[%s1 + $0x5c] sm:$0xf]
    %v459 = vld [vmem:[%s1 + $0x60] sm:$0xf]
    %v460 = vld [vmem:[%s1 + $0x64] sm:$0xf]
    %v461 = vld [vmem:[%s1 + $0x68] sm:$0xf]
    %v462 = vld [vmem:[%s1 + $0x6c] sm:$0xf]
    %v463 = vld [vmem:[%s1 + $0x70] sm:$0xf]
    %v464 = vld [vmem:[%s1 + $0x74] sm:$0xf]
    %v465 = vld [vmem:[%s1 + $0x78] sm:$0xf]
    %v466 = vld [vmem:[%s1 + $0x7c] sm:$0xf]
    %v467 = vld [vmem:[%s5] sm:$0xff]
    %v468 = vld [vmem:[%s5 + $0x8] sm:$0xf]
    %v469 = vld [vmem:[%s5 + $0xc] sm:$0xff]
    %v470 = vld [vmem:[%s5 + $0x14] sm:$0xf]
    %v471 = vld [vmem:[%s5 + $0x18] sm:$0xff]
    %v472 = vld [vmem:[%s5 + $0x20] sm:$0xf]
    %v473 = vld [vmem:[%s5 + $0x24] sm:$0xff]
    %v474 = vld [vmem:[%s5 + $0x2c] sm:$0xf]
    %v475 = vld [vmem:[%s6] sm:$0xf]
    %v476 = vld [vmem:[%s6 + $0x4] sm:$0xf]
    %v477 = vld [vmem:[%s6 + $0x8] sm:$0xf]
    %v478 = vld [vmem:[%s6 + $0xc] sm:$0xf]
    %v479 = vld [vmem:[%s7] sm:$0x1]
    %v480 = vld [vmem:[%s8] sm:$0xf]
    %v481 = vld [vmem:[%s8 + $0x4] sm:$0xf]
    %v482 = vld [vmem:[%s8 + $0x8] sm:$0xf]
    %v483 = vld [vmem:[%s8 + $0xc] sm:$0xf]
    %v484 = vld [vmem:[%s8 + $0x10] sm:$0xf]
    %v485 = vld [vmem:[%s8 + $0x14] sm:$0xf]
    %v486 = vld [vmem:[%s8 + $0x18] sm:$0xf]
    %v487 = vld [vmem:[%s8 + $0x1c] sm:$0xf]
    %v488 = vld [vmem:[%s8 + $0x20] sm:$0xf]
    %v489 = vld [vmem:[%s8 + $0x24] sm:$0xf]
    %v490 = vld [vmem:[%s8 + $0x28] sm:$0xf]
    %v491 = vld [vmem:[%s8 + $0x2c] sm:$0xf]
    %v492 = vld [vmem:[%s8 + $0x30] sm:$0xf]
    %v493 = vld [vmem:[%s8 + $0x34] sm:$0xf]
    %v494 = vld [vmem:[%s8 + $0x38] sm:$0xf]
    %v495 = vld [vmem:[%s8 + $0x3c] sm:$0xf]
    %v496 = vld [vmem:[%s9] sm:$0x1]
    %v497 = vld [vmem:[%s10] sm:$0x1]
    %v498 = vpack.c.bf16 %v434, %v433
    %v507 = vunpack.c.l.b16 %v467
    %v508 = vunpack.c.h.b16 %v467
    %v509 = vunpack.c.l.b16 %v468
    %v510 = vunpack.c.l.b16 %v469
    %v511 = vunpack.c.h.b16 %v469
    %v512 = vunpack.c.l.b16 %v470
    %v513 = vunpack.c.l.b16 %v471
    %v514 = vunpack.c.h.b16 %v471
    %v515 = vunpack.c.l.b16 %v472
    %v516 = vunpack.c.l.b16 %v473
    %v517 = vunpack.c.h.b16 %v473
    %v518 = vunpack.c.l.b16 %v474
    %v519 = vpack.c.b16 %v510, %v507
    %v520 = vpack.c.b16 %v511, %v508
    %v521 = vpack.c.b16 %v512, %v509
    %v522 = vpack.c.b16 %v516, %v513
    %v523 = vpack.c.b16 %v517, %v514
    %v524 = vpack.c.b16 %v518, %v515
    %vm531 = vcmask 261120
    %v533 = vsel %vm531, %v498, 0
    %535 = vmatprep.subr.bf16.mxu0 %v520
    %536 = vmatpush1.bf16.msra.mxu0 %v519
    %537 = vmatprep.subr.bf16.mxu0 %v523
    %538 = vmatpush1.bf16.msra.mxu0 %v522
    %539 = vmatprep.subr.bf16.mxu0 0
    %540 = vmatpush1.bf16.msra.mxu0 0
    %541 = vmatprep.subr.bf16.mxu0 0
    %542 = vmatpush1.bf16.msra.mxu0 0
    %543 = vmatprep.subr.bf16.mxu0 0
    %544 = vmatpush1.bf16.msra.mxu0 0
    %545 = vmatprep.subr.bf16.mxu0 0
    %546 = vmatpush1.bf16.msra.mxu0 0
    %547 = vmatprep.subr.bf16.mxu0 0
    %548 = vmatpush1.bf16.msra.mxu0 0
    %549 = vmatprep.subr.bf16.mxu0 0
    %550 = vmatpush1.bf16.msra.mxu0 0
    %551 = vmatprep.subr.bf16.mxu0 0
    %552 = vmatpush1.bf16.msra.mxu0 0
    %553 = vmatprep.subr.bf16.mxu0 0
    %554 = vmatpush1.bf16.msra.mxu0 0
    %555 = vmatprep.subr.bf16.mxu0 0
    %556 = vmatpush1.bf16.msra.mxu0 0
    %557 = vmatprep.subr.bf16.mxu0 0
    %558 = vmatpush1.bf16.msra.mxu0 0
    %559 = vmatprep.subr.bf16.mxu0 0
    %560 = vmatpush1.bf16.msra.mxu0 0
    %561 = vmatprep.subr.bf16.mxu0 0
    %562 = vmatpush1.bf16.msra.mxu0 0
    %563 = vmatprep.subr.bf16.mxu0 0
    %564 = vmatpush1.bf16.msra.mxu0 0
    %565 = vmatprep.subr.bf16.mxu0 0
    %566 = vmatpush1.bf16.msra.mxu0 0
    %567 = vmatprep.mubr.bf16.mxu0 0
    %568 = vmatmul.mubr.bf16.gmra.mrb[0].mxu0 %v533
    %v569 = vpop.f32.mrb[0].mxu0
    %v570 = vadd.f32 0.0, %v569
    %v571 = vpop.f32.mrb[0].mxu0
    %v572 = vadd.f32 0.0, %v571
    %v573 = vpop.f32.mrb[0].mxu0
    %v574 = vadd.f32 0.0, %v573
    %v575 = vpop.f32.mrb[0].mxu0
    %v576 = vadd.f32 0.0, %v575
    %577 = vdwg.mxu0
    %578 = vmatprep.subr.bf16.mxu0 0
    %579 = vmatpush1.bf16.msra.mxu0 %v521
    %580 = vmatprep.subr.bf16.mxu0 0
    %581 = vmatpush1.bf16.msra.mxu0 %v524
    %582 = vmatprep.subr.bf16.mxu0 0
    %583 = vmatpush1.bf16.msra.mxu0 0
    %584 = vmatprep.subr.bf16.mxu0 0
    %585 = vmatpush1.bf16.msra.mxu0 0
    %586 = vmatprep.subr.bf16.mxu0 0
    %587 = vmatpush1.bf16.msra.mxu0 0
    %588 = vmatprep.subr.bf16.mxu0 0
    %589 = vmatpush1.bf16.msra.mxu0 0
    %590 = vmatprep.subr.bf16.mxu0 0
    %591 = vmatpush1.bf16.msra.mxu0 0
    %592 = vmatprep.subr.bf16.mxu0 0
    %593 = vmatpush1.bf16.msra.mxu0 0
    %594 = vmatprep.subr.bf16.mxu0 0
    %595 = vmatpush1.bf16.msra.mxu0 0
    %596 = vmatprep.subr.bf16.mxu0 0
    %597 = vmatpush1.bf16.msra.mxu0 0
    %598 = vmatprep.subr.bf16.mxu0 0
    %599 = vmatpush1.bf16.msra.mxu0 0
    %600 = vmatprep.subr.bf16.mxu0 0
    %601 = vmatpush1.bf16.msra.mxu0 0
    %602 = vmatprep.subr.bf16.mxu0 0
    %603 = vmatpush1.bf16.msra.mxu0 0
    %604 = vmatprep.subr.bf16.mxu0 0
    %605 = vmatpush1.bf16.msra.mxu0 0
    %606 = vmatprep.subr.bf16.mxu0 0
    %607 = vmatpush1.bf16.msra.mxu0 0
    %608 = vmatprep.subr.bf16.mxu0 0
    %609 = vmatpush1.bf16.msra.mxu0 0
    %610 = vmatprep.mubr.bf16.mxu0 0
    %611 = vmatmul.mubr.bf16.gmra.mrb[0].mxu0 %v533
    %v612 = vpop.f32.mrb[0].mxu0
    %v613 = vadd.f32 0.0, %v612
    %v614 = vpop.f32.mrb[0].mxu0
    %v615 = vpop.f32.mrb[0].mxu0
    %v616 = vadd.f32 0.0, %v615
    %v617 = vpop.f32.mrb[0].mxu0
    %618 = vdwg.mxu0
    %v620 = vlaneseq
    %v621 = vshrl.u32 %v620, 7
    %v622 = vsub.s32 0, %v621
    %v623 = vrot.slane %v479, %v622
    %v625 = vadd.f32 %v570, %v623
    %v626 = vadd.f32 %v574, %v623
    %v659 = vunpack.c.l.b16 %v435
    %v660 = vunpack.c.l.b16 %v436
    %v661 = vunpack.c.l.b16 %v437
    %v662 = vunpack.c.l.b16 %v438
    %v663 = vunpack.c.l.b16 %v439
    %v664 = vunpack.c.l.b16 %v440
    %v665 = vunpack.c.l.b16 %v441
    %v666 = vunpack.c.l.b16 %v442
    %v667 = vunpack.c.l.b16 %v443
    %v668 = vunpack.c.l.b16 %v444
    %v669 = vunpack.c.l.b16 %v445
    %v670 = vunpack.c.l.b16 %v446
    %v671 = vunpack.c.l.b16 %v447
    %v672 = vunpack.c.l.b16 %v448
    %v673 = vunpack.c.l.b16 %v449
    %v674 = vunpack.c.l.b16 %v450
    %v675 = vunpack.c.l.b16 %v451
    %v676 = vunpack.c.l.b16 %v452
    %v677 = vunpack.c.l.b16 %v453
    %v678 = vunpack.c.l.b16 %v454
    %v679 = vunpack.c.l.b16 %v455
    %v680 = vunpack.c.l.b16 %v456
    %v681 = vunpack.c.l.b16 %v457
    %v682 = vunpack.c.l.b16 %v458
    %v683 = vunpack.c.l.b16 %v459
    %v684 = vunpack.c.l.b16 %v460
    %v685 = vunpack.c.l.b16 %v461
    %v686 = vunpack.c.l.b16 %v462
    %v687 = vunpack.c.l.b16 %v463
    %v688 = vunpack.c.l.b16 %v464
    %v689 = vunpack.c.l.b16 %v465
    %v690 = vunpack.c.l.b16 %v466
    %v691 = vpack.c.b16 %v660, %v659
    %v692 = vpack.c.b16 %v662, %v661
    %v693 = vpack.c.b16 %v664, %v663
    %v694 = vpack.c.b16 %v666, %v665
    %v695 = vpack.c.b16 %v668, %v667
    %v696 = vpack.c.b16 %v670, %v669
    %v697 = vpack.c.b16 %v672, %v671
    %v698 = vpack.c.b16 %v674, %v673
    %v699 = vpack.c.b16 %v676, %v675
    %v700 = vpack.c.b16 %v678, %v677
    %v701 = vpack.c.b16 %v680, %v679
    %v702 = vpack.c.b16 %v682, %v681
    %v703 = vpack.c.b16 %v684, %v683
    %v704 = vpack.c.b16 %v686, %v685
    %v705 = vpack.c.b16 %v688, %v687
    %v706 = vpack.c.b16 %v690, %v689
    %v711 = vunpack.c.l.b16 %v475
    %v712 = vunpack.c.l.b16 %v476
    %v713 = vunpack.c.l.b16 %v477
    %v714 = vunpack.c.l.b16 %v478
    %v715 = vpack.c.b16 %v712, %v711
    %v716 = vpack.c.b16 %v714, %v713
    %v720 = vsel %vm531, %v691, 0
    %v723 = vsel %vm531, %v692, 0
    %v726 = vsel %vm531, %v693, 0
    %v729 = vsel %vm531, %v694, 0
    %v732 = vsel %vm531, %v695, 0
    %v735 = vsel %vm531, %v696, 0
    %v738 = vsel %vm531, %v697, 0
    %v741 = vsel %vm531, %v698, 0
    %v744 = vsel %vm531, %v699, 0
    %v747 = vsel %vm531, %v700, 0
    %v750 = vsel %vm531, %v701, 0
    %v753 = vsel %vm531, %v702, 0
    %v756 = vsel %vm531, %v703, 0
    %v759 = vsel %vm531, %v704, 0
    %v762 = vsel %vm531, %v705, 0
    %v765 = vsel %vm531, %v706, 0
    %767 = vmatprep.subr.bf16.mxu0 0
    %768 = vmatpush1.bf16.msra.mxu0 %v715
    %769 = vmatprep.subr.bf16.mxu0 0
    %770 = vmatpush1.bf16.msra.mxu0 %v716
    %771 = vmatprep.subr.bf16.mxu0 0
    %772 = vmatpush1.bf16.msra.mxu0 0
    %773 = vmatprep.subr.bf16.mxu0 0
    %774 = vmatpush1.bf16.msra.mxu0 0
    %775 = vmatprep.subr.bf16.mxu0 0
    %776 = vmatpush1.bf16.msra.mxu0 0
    %777 = vmatprep.subr.bf16.mxu0 0
    %778 = vmatpush1.bf16.msra.mxu0 0
    %779 = vmatprep.subr.bf16.mxu0 0
    %780 = vmatpush1.bf16.msra.mxu0 0
    %781 = vmatprep.subr.bf16.mxu0 0
    %782 = vmatpush1.bf16.msra.mxu0 0
    %783 = vmatprep.subr.bf16.mxu0 0
    %784 = vmatpush1.bf16.msra.mxu0 0
    %785 = vmatprep.subr.bf16.mxu0 0
    %786 = vmatpush1.bf16.msra.mxu0 0
    %787 = vmatprep.subr.bf16.mxu0 0
    %788 = vmatpush1.bf16.msra.mxu0 0
    %789 = vmatprep.subr.bf16.mxu0 0
    %790 = vmatpush1.bf16.msra.mxu0 0
    %791 = vmatprep.subr.bf16.mxu0 0
    %792 = vmatpush1.bf16.msra.mxu0 0
    %793 = vmatprep.subr.bf16.mxu0 0
    %794 = vmatpush1.bf16.msra.mxu0 0
    %795 = vmatprep.subr.bf16.mxu0 0
    %796 = vmatpush1.bf16.msra.mxu0 0
    %797 = vmatprep.subr.bf16.mxu0 0
    %798 = vmatpush1.bf16.msra.mxu0 0
    %799 = vmatprep.mubr.bf16.mxu0 0
    %800 = vmatmul.mubr.bf16.gmra.mrb[0].mxu0 %v720
    %v801 = vpop.f32.mrb[0].mxu0
    %v802 = vadd.f32 0.0, %v801
    %v803 = vpop.f32.mrb[0].mxu0
    %v804 = vpop.f32.mrb[0].mxu0
    %v805 = vadd.f32 0.0, %v804
    %v806 = vpop.f32.mrb[0].mxu0
    %807 = vmatprep.mubr.bf16.mxu0 0
    %808 = vmatmul.mubr.bf16.gmra.mrb[0].mxu0 %v723
    %v809 = vpop.f32.mrb[0].mxu0
    %v810 = vadd.f32 0.0, %v809
    %v811 = vpop.f32.mrb[0].mxu0
    %v812 = vpop.f32.mrb[0].mxu0
    %v813 = vadd.f32 0.0, %v812
    %v814 = vpop.f32.mrb[0].mxu0
    %815 = vmatprep.mubr.bf16.mxu0 0
    %816 = vmatmul.mubr.bf16.gmra.mrb[0].mxu0 %v726
    %v817 = vpop.f32.mrb[0].mxu0
    %v818 = vadd.f32 0.0, %v817
    %v819 = vpop.f32.mrb[0].mxu0
    %v820 = vpop.f32.mrb[0].mxu0
    %v821 = vadd.f32 0.0, %v820
    %v822 = vpop.f32.mrb[0].mxu0
    %823 = vmatprep.mubr.bf16.mxu0 0
    %824 = vmatmul.mubr.bf16.gmra.mrb[0].mxu0 %v729
    %v825 = vpop.f32.mrb[0].mxu0
    %v826 = vadd.f32 0.0, %v825
    %v827 = vpop.f32.mrb[0].mxu0
    %v828 = vpop.f32.mrb[0].mxu0
    %v829 = vadd.f32 0.0, %v828
    %v830 = vpop.f32.mrb[0].mxu0
    %831 = vmatprep.mubr.bf16.mxu0 0
    %832 = vmatmul.mubr.bf16.gmra.mrb[0].mxu0 %v732
    %v833 = vpop.f32.mrb[0].mxu0
    %v834 = vadd.f32 0.0, %v833
    %v835 = vpop.f32.mrb[0].mxu0
    %v836 = vpop.f32.mrb[0].mxu0
    %v837 = vadd.f32 0.0, %v836
    %v838 = vpop.f32.mrb[0].mxu0
    %839 = vmatprep.mubr.bf16.mxu0 0
    %840 = vmatmul.mubr.bf16.gmra.mrb[0].mxu0 %v735
    %v841 = vpop.f32.mrb[0].mxu0
    %v842 = vadd.f32 0.0, %v841
    %v843 = vpop.f32.mrb[0].mxu0
    %v844 = vpop.f32.mrb[0].mxu0
    %v845 = vadd.f32 0.0, %v844
    %v846 = vpop.f32.mrb[0].mxu0
    %847 = vmatprep.mubr.bf16.mxu0 0
    %848 = vmatmul.mubr.bf16.gmra.mrb[0].mxu0 %v738
    %v849 = vpop.f32.mrb[0].mxu0
    %v850 = vadd.f32 0.0, %v849
    %v851 = vpop.f32.mrb[0].mxu0
    %v852 = vpop.f32.mrb[0].mxu0
    %v853 = vadd.f32 0.0, %v852
    %v854 = vpop.f32.mrb[0].mxu0
    %855 = vmatprep.mubr.bf16.mxu0 0
    %856 = vmatmul.mubr.bf16.gmra.mrb[0].mxu0 %v741
    %v857 = vpop.f32.mrb[0].mxu0
    %v858 = vadd.f32 0.0, %v857
    %v859 = vpop.f32.mrb[0].mxu0
    %v860 = vpop.f32.mrb[0].mxu0
    %v861 = vadd.f32 0.0, %v860
    %v862 = vpop.f32.mrb[0].mxu0
    %863 = vmatprep.mubr.bf16.mxu0 0
    %864 = vmatmul.mubr.bf16.gmra.mrb[0].mxu0 %v744
    %v865 = vpop.f32.mrb[0].mxu0
    %v866 = vadd.f32 0.0, %v865
    %v867 = vpop.f32.mrb[0].mxu0
    %v868 = vpop.f32.mrb[0].mxu0
    %v869 = vadd.f32 0.0, %v868
    %v870 = vpop.f32.mrb[0].mxu0
    %871 = vmatprep.mubr.bf16.mxu0 0
    %872 = vmatmul.mubr.bf16.gmra.mrb[0].mxu0 %v747
    %v873 = vpop.f32.mrb[0].mxu0
    %v874 = vadd.f32 0.0, %v873
    %v875 = vpop.f32.mrb[0].mxu0
    %v876 = vpop.f32.mrb[0].mxu0
    %v877 = vadd.f32 0.0, %v876
    %v878 = vpop.f32.mrb[0].mxu0
    %879 = vmatprep.mubr.bf16.mxu0 0
    %880 = vmatmul.mubr.bf16.gmra.mrb[0].mxu0 %v750
    %v881 = vpop.f32.mrb[0].mxu0
    %v882 = vadd.f32 0.0, %v881
    %v883 = vpop.f32.mrb[0].mxu0
    %v884 = vpop.f32.mrb[0].mxu0
    %v885 = vadd.f32 0.0, %v884
    %v886 = vpop.f32.mrb[0].mxu0
    %887 = vmatprep.mubr.bf16.mxu0 0
    %888 = vmatmul.mubr.bf16.gmra.mrb[0].mxu0 %v753
    %v889 = vpop.f32.mrb[0].mxu0
    %v890 = vadd.f32 0.0, %v889
    %v891 = vpop.f32.mrb[0].mxu0
    %v892 = vpop.f32.mrb[0].mxu0
    %v893 = vadd.f32 0.0, %v892
    %v894 = vpop.f32.mrb[0].mxu0
    %895 = vmatprep.mubr.bf16.mxu0 0
    %896 = vmatmul.mubr.bf16.gmra.mrb[0].mxu0 %v756
    %v897 = vpop.f32.mrb[0].mxu0
    %v898 = vadd.f32 0.0, %v897
    %v899 = vpop.f32.mrb[0].mxu0
    %v900 = vpop.f32.mrb[0].mxu0
    %v901 = vadd.f32 0.0, %v900
    %v902 = vpop.f32.mrb[0].mxu0
    %903 = vmatprep.mubr.bf16.mxu0 0
    %904 = vmatmul.mubr.bf16.gmra.mrb[0].mxu0 %v759
    %v905 = vpop.f32.mrb[0].mxu0
    %v906 = vadd.f32 0.0, %v905
    %v907 = vpop.f32.mrb[0].mxu0
    %v908 = vpop.f32.mrb[0].mxu0
    %v909 = vadd.f32 0.0, %v908
    %v910 = vpop.f32.mrb[0].mxu0
    %911 = vmatprep.mubr.bf16.mxu0 0
    %912 = vmatmul.mubr.bf16.gmra.mrb[0].mxu0 %v762
    %v913 = vpop.f32.mrb[0].mxu0
    %v914 = vadd.f32 0.0, %v913
    %v915 = vpop.f32.mrb[0].mxu0
    %v916 = vpop.f32.mrb[0].mxu0
    %v917 = vadd.f32 0.0, %v916
    %v918 = vpop.f32.mrb[0].mxu0
    %919 = vmatprep.mubr.bf16.mxu0 0
    %920 = vmatmul.mubr.bf16.gmra.mrb[0].mxu0 %v765
    %v921 = vpop.f32.mrb[0].mxu0
    %v922 = vadd.f32 0.0, %v921
    %v923 = vpop.f32.mrb[0].mxu0
    %v924 = vpop.f32.mrb[0].mxu0
    %v925 = vadd.f32 0.0, %v924
    %v926 = vpop.f32.mrb[0].mxu0
    %927 = vdwg.mxu0
    %v930 = vcombine.high %v625, %v625
    %v932 = vunpack.c.l.s4 1966171168
    %v933 = vunpack.c.0.s8 %v932
    %v934 = vlaneseq
    %v935 = vshrl.u32 %v934, 7
    %v936 = vsub.s32 %v933, %v935
    %v937 = vrot.slane %v625, %v936
    %v939 = vunpack.c.l.s4 1966171168
    %v940 = vunpack.c.0.s8 %v939
    %v941 = vlaneseq
    %v942 = vshrl.u32 %v941, 7
    %v943 = vsub.s32 %v940, %v942
    %v944 = vrot.slane %v930, %v943
    %v945 = vcombine.high %v937, %v937
    %v946 = vcombine.high %v944, %v944
    %v948 = vunpack.c.l.s4 1966171168
    %v949 = vunpack.c.0.s8 %v948
    %v950 = vlaneseq
    %v951 = vshrl.u32 %v950, 7
    %v952 = vsub.s32 %v949, %v951
    %v953 = vrot.slane %v937, %v952
    %v955 = vunpack.c.l.s4 1966171168
    %v956 = vunpack.c.0.s8 %v955
    %v957 = vlaneseq
    %v958 = vshrl.u32 %v957, 7
    %v959 = vsub.s32 %v956, %v958
    %v960 = vrot.slane %v944, %v959
    %v962 = vunpack.c.l.s4 1966171168
    %v963 = vunpack.c.0.s8 %v962
    %v964 = vlaneseq
    %v965 = vshrl.u32 %v964, 7
    %v966 = vsub.s32 %v963, %v965
    %v967 = vrot.slane %v945, %v966
    %v969 = vunpack.c.l.s4 1966171168
    %v970 = vunpack.c.0.s8 %v969
    %v971 = vlaneseq
    %v972 = vshrl.u32 %v971, 7
    %v973 = vsub.s32 %v970, %v972
    %v974 = vrot.slane %v946, %v973
    %v975 = vcombine.high %v953, %v953
    %v976 = vcombine.high %v960, %v960
    %v977 = vcombine.high %v967, %v967
    %v978 = vcombine.high %v974, %v974
    %v979 = vcombine.high %v626, %v626
    %v981 = vunpack.c.l.s4 1966171168
    %v982 = vunpack.c.0.s8 %v981
    %v983 = vlaneseq
    %v984 = vshrl.u32 %v983, 7
    %v985 = vsub.s32 %v982, %v984
    %v986 = vrot.slane %v626, %v985
    %v988 = vunpack.c.l.s4 1966171168
    %v989 = vunpack.c.0.s8 %v988
    %v990 = vlaneseq
    %v991 = vshrl.u32 %v990, 7
    %v992 = vsub.s32 %v989, %v991
    %v993 = vrot.slane %v979, %v992
    %v994 = vcombine.high %v986, %v986
    %v995 = vcombine.high %v993, %v993
    %v997 = vunpack.c.l.s4 1966171168
    %v998 = vunpack.c.0.s8 %v997
    %v999 = vlaneseq
    %v1000 = vshrl.u32 %v999, 7
    %v1001 = vsub.s32 %v998, %v1000
    %v1002 = vrot.slane %v986, %v1001
    %v1004 = vunpack.c.l.s4 1966171168
    %v1005 = vunpack.c.0.s8 %v1004
    %v1006 = vlaneseq
    %v1007 = vshrl.u32 %v1006, 7
    %v1008 = vsub.s32 %v1005, %v1007
    %v1009 = vrot.slane %v993, %v1008
    %v1011 = vunpack.c.l.s4 1966171168
    %v1012 = vunpack.c.0.s8 %v1011
    %v1013 = vlaneseq
    %v1014 = vshrl.u32 %v1013, 7
    %v1015 = vsub.s32 %v1012, %v1014
    %v1016 = vrot.slane %v994, %v1015
    %v1018 = vunpack.c.l.s4 1966171168
    %v1019 = vunpack.c.0.s8 %v1018
    %v1020 = vlaneseq
    %v1021 = vshrl.u32 %v1020, 7
    %v1022 = vsub.s32 %v1019, %v1021
    %v1023 = vrot.slane %v995, %v1022
    %v1024 = vcombine.high %v1002, %v1002
    %v1025 = vcombine.high %v1009, %v1009
    %v1026 = vcombine.high %v1016, %v1016
    %v1027 = vcombine.high %v1023, %v1023
    %v1028 = vlaneseq
    %v1029 = vshrl.u32 %v1028, 7
    %v1030 = vsub.s32 0, %v1029
    %v1031 = vrot.slane %v953, %v1030
    %v1032 = vlaneseq
    %v1033 = vshrl.u32 %v1032, 7
    %v1034 = vsub.s32 0, %v1033
    %v1035 = vrot.slane %v967, %v1034
    %v1036 = vlaneseq
    %v1037 = vshrl.u32 %v1036, 7
    %v1038 = vsub.s32 0, %v1037
    %v1039 = vrot.slane %v975, %v1038
    %v1040 = vlaneseq
    %v1041 = vshrl.u32 %v1040, 7
    %v1042 = vsub.s32 0, %v1041
    %v1043 = vrot.slane %v977, %v1042
    %v1044 = vlaneseq
    %v1045 = vshrl.u32 %v1044, 7
    %v1046 = vsub.s32 0, %v1045
    %v1047 = vrot.slane %v960, %v1046
    %v1048 = vlaneseq
    %v1049 = vshrl.u32 %v1048, 7
    %v1050 = vsub.s32 0, %v1049
    %v1051 = vrot.slane %v974, %v1050
    %v1052 = vlaneseq
    %v1053 = vshrl.u32 %v1052, 7
    %v1054 = vsub.s32 0, %v1053
    %v1055 = vrot.slane %v976, %v1054
    %v1056 = vlaneseq
    %v1057 = vshrl.u32 %v1056, 7
    %v1058 = vsub.s32 0, %v1057
    %v1059 = vrot.slane %v978, %v1058
    %v1060 = vlaneseq
    %v1061 = vshrl.u32 %v1060, 7
    %v1062 = vsub.s32 0, %v1061
    %v1063 = vrot.slane %v1002, %v1062
    %v1064 = vlaneseq
    %v1065 = vshrl.u32 %v1064, 7
    %v1066 = vsub.s32 0, %v1065
    %v1067 = vrot.slane %v1016, %v1066
    %v1068 = vlaneseq
    %v1069 = vshrl.u32 %v1068, 7
    %v1070 = vsub.s32 0, %v1069
    %v1071 = vrot.slane %v1024, %v1070
    %v1072 = vlaneseq
    %v1073 = vshrl.u32 %v1072, 7
    %v1074 = vsub.s32 0, %v1073
    %v1075 = vrot.slane %v1026, %v1074
    %v1076 = vlaneseq
    %v1077 = vshrl.u32 %v1076, 7
    %v1078 = vsub.s32 0, %v1077
    %v1079 = vrot.slane %v1009, %v1078
    %v1080 = vlaneseq
    %v1081 = vshrl.u32 %v1080, 7
    %v1082 = vsub.s32 0, %v1081
    %v1083 = vrot.slane %v1023, %v1082
    %v1084 = vlaneseq
    %v1085 = vshrl.u32 %v1084, 7
    %v1086 = vsub.s32 0, %v1085
    %v1087 = vrot.slane %v1025, %v1086
    %v1088 = vlaneseq
    %v1089 = vshrl.u32 %v1088, 7
    %v1090 = vsub.s32 0, %v1089
    %v1091 = vrot.slane %v1027, %v1090
    %v1108 = vadd.f32 %v1031, %v572
    %v1109 = vadd.f32 %v1031, %v576
    %v1110 = vadd.f32 %v1035, %v572
    %v1111 = vadd.f32 %v1035, %v576
    %v1112 = vadd.f32 %v1039, %v572
    %v1113 = vadd.f32 %v1039, %v576
    %v1114 = vadd.f32 %v1043, %v572
    %v1115 = vadd.f32 %v1043, %v576
    %v1116 = vadd.f32 %v1047, %v572
    %v1117 = vadd.f32 %v1047, %v576
    %v1118 = vadd.f32 %v1051, %v572
    %v1119 = vadd.f32 %v1051, %v576
    %v1120 = vadd.f32 %v1055, %v572
    %v1121 = vadd.f32 %v1055, %v576
    %v1122 = vadd.f32 %v1059, %v572
    %v1123 = vadd.f32 %v1059, %v576
    %v1124 = vadd.f32 %v1063, %v572
    %v1125 = vadd.f32 %v1063, %v576
    %v1126 = vadd.f32 %v1067, %v572
    %v1127 = vadd.f32 %v1067, %v576
    %v1128 = vadd.f32 %v1071, %v572
    %v1129 = vadd.f32 %v1071, %v576
    %v1130 = vadd.f32 %v1075, %v572
    %v1131 = vadd.f32 %v1075, %v576
    %v1132 = vadd.f32 %v1079, %v572
    %v1133 = vadd.f32 %v1079, %v576
    %v1134 = vadd.f32 %v1083, %v572
    %v1135 = vadd.f32 %v1083, %v576
    %v1136 = vadd.f32 %v1087, %v572
    %v1137 = vadd.f32 %v1087, %v576
    %v1138 = vadd.f32 %v1091, %v572
    %v1139 = vadd.f32 %v1091, %v576
    %v1140 = vadd.f32 %v1108, %v802
    %v1141 = vadd.f32 %v1109, %v805
    %v1142 = vadd.f32 %v1110, %v810
    %v1143 = vadd.f32 %v1111, %v813
    %v1144 = vadd.f32 %v1112, %v818
    %v1145 = vadd.f32 %v1113, %v821
    %v1146 = vadd.f32 %v1114, %v826
    %v1147 = vadd.f32 %v1115, %v829
    %v1148 = vadd.f32 %v1116, %v834
    %v1149 = vadd.f32 %v1117, %v837
    %v1150 = vadd.f32 %v1118, %v842
    %v1151 = vadd.f32 %v1119, %v845
    %v1152 = vadd.f32 %v1120, %v850
    %v1153 = vadd.f32 %v1121, %v853
    %v1154 = vadd.f32 %v1122, %v858
    %v1155 = vadd.f32 %v1123, %v861
    %v1156 = vadd.f32 %v1124, %v866
    %v1157 = vadd.f32 %v1125, %v869
    %v1158 = vadd.f32 %v1126, %v874
    %v1159 = vadd.f32 %v1127, %v877
    %v1160 = vadd.f32 %v1128, %v882
    %v1161 = vadd.f32 %v1129, %v885
    %v1162 = vadd.f32 %v1130, %v890
    %v1163 = vadd.f32 %v1131, %v893
    %v1164 = vadd.f32 %v1132, %v898
    %v1165 = vadd.f32 %v1133, %v901
    %v1166 = vadd.f32 %v1134, %v906
    %v1167 = vadd.f32 %v1135, %v909
    %v1168 = vadd.f32 %v1136, %v914
    %v1169 = vadd.f32 %v1137, %v917
    %v1170 = vadd.f32 %v1138, %v922
    %v1171 = vadd.f32 %v1139, %v925
    %v1172 = vmul.f32 %v1140, 0.01
    %v1173 = vmul.f32 %v1141, 0.01
    %v1174 = vmul.f32 %v1142, 0.01
    %v1175 = vmul.f32 %v1143, 0.01
    %v1176 = vmul.f32 %v1144, 0.01
    %v1177 = vmul.f32 %v1145, 0.01
    %v1178 = vmul.f32 %v1146, 0.01
    %v1179 = vmul.f32 %v1147, 0.01
    %v1180 = vmul.f32 %v1148, 0.01
    %v1181 = vmul.f32 %v1149, 0.01
    %v1182 = vmul.f32 %v1150, 0.01
    %v1183 = vmul.f32 %v1151, 0.01
    %v1184 = vmul.f32 %v1152, 0.01
    %v1185 = vmul.f32 %v1153, 0.01
    %v1186 = vmul.f32 %v1154, 0.01
    %v1187 = vmul.f32 %v1155, 0.01
    %v1188 = vmul.f32 %v1156, 0.01
    %v1189 = vmul.f32 %v1157, 0.01
    %v1190 = vmul.f32 %v1158, 0.01
    %v1191 = vmul.f32 %v1159, 0.01
    %v1192 = vmul.f32 %v1160, 0.01
    %v1193 = vmul.f32 %v1161, 0.01
    %v1194 = vmul.f32 %v1162, 0.01
    %v1195 = vmul.f32 %v1163, 0.01
    %v1196 = vmul.f32 %v1164, 0.01
    %v1197 = vmul.f32 %v1165, 0.01
    %v1198 = vmul.f32 %v1166, 0.01
    %v1199 = vmul.f32 %v1167, 0.01
    %v1200 = vmul.f32 %v1168, 0.01
    %v1201 = vmul.f32 %v1169, 0.01
    %v1202 = vmul.f32 %v1170, 0.01
    %v1203 = vmul.f32 %v1171, 0.01
    %v1204 = vmax.f32 %v1140, %v1172
    %v1205 = vmax.f32 %v1141, %v1173
    %v1206 = vmax.f32 %v1142, %v1174
    %v1207 = vmax.f32 %v1143, %v1175
    %v1208 = vmax.f32 %v1144, %v1176
    %v1209 = vmax.f32 %v1145, %v1177
    %v1210 = vmax.f32 %v1146, %v1178
    %v1211 = vmax.f32 %v1147, %v1179
    %v1212 = vmax.f32 %v1148, %v1180
    %v1213 = vmax.f32 %v1149, %v1181
    %v1214 = vmax.f32 %v1150, %v1182
    %v1215 = vmax.f32 %v1151, %v1183
    %v1216 = vmax.f32 %v1152, %v1184
    %v1217 = vmax.f32 %v1153, %v1185
    %v1218 = vmax.f32 %v1154, %v1186
    %v1219 = vmax.f32 %v1155, %v1187
    %v1220 = vmax.f32 %v1156, %v1188
    %v1221 = vmax.f32 %v1157, %v1189
    %v1222 = vmax.f32 %v1158, %v1190
    %v1223 = vmax.f32 %v1159, %v1191
    %v1224 = vmax.f32 %v1160, %v1192
    %v1225 = vmax.f32 %v1161, %v1193
    %v1226 = vmax.f32 %v1162, %v1194
    %v1227 = vmax.f32 %v1163, %v1195
    %v1228 = vmax.f32 %v1164, %v1196
    %v1229 = vmax.f32 %v1165, %v1197
    %v1230 = vmax.f32 %v1166, %v1198
    %v1231 = vmax.f32 %v1167, %v1199
    %v1232 = vmax.f32 %v1168, %v1200
    %v1233 = vmax.f32 %v1169, %v1201
    %v1234 = vmax.f32 %v1170, %v1202
    %v1235 = vmax.f32 %v1171, %v1203
    %v1236 = vpack.c.bf16 %v1205, %v1204
    %v1237 = vpack.c.bf16 %v1207, %v1206
    %v1238 = vpack.c.bf16 %v1209, %v1208
    %v1239 = vpack.c.bf16 %v1211, %v1210
    %v1240 = vpack.c.bf16 %v1213, %v1212
    %v1241 = vpack.c.bf16 %v1215, %v1214
    %v1242 = vpack.c.bf16 %v1217, %v1216
    %v1243 = vpack.c.bf16 %v1219, %v1218
    %v1244 = vpack.c.bf16 %v1221, %v1220
    %v1245 = vpack.c.bf16 %v1223, %v1222
    %v1246 = vpack.c.bf16 %v1225, %v1224
    %v1247 = vpack.c.bf16 %v1227, %v1226
    %v1248 = vpack.c.bf16 %v1229, %v1228
    %v1249 = vpack.c.bf16 %v1231, %v1230
    %v1250 = vpack.c.bf16 %v1233, %v1232
    %v1251 = vpack.c.bf16 %v1235, %v1234
    %v1268 = vunpack.c.l.b16 %v480
    %v1269 = vunpack.c.l.b16 %v481
    %v1270 = vunpack.c.l.b16 %v482
    %v1271 = vunpack.c.l.b16 %v483
    %v1272 = vunpack.c.l.b16 %v484
    %v1273 = vunpack.c.l.b16 %v485
    %v1274 = vunpack.c.l.b16 %v486
    %v1275 = vunpack.c.l.b16 %v487
    %v1276 = vunpack.c.l.b16 %v488
    %v1277 = vunpack.c.l.b16 %v489
    %v1278 = vunpack.c.l.b16 %v490
    %v1279 = vunpack.c.l.b16 %v491
    %v1280 = vunpack.c.l.b16 %v492
    %v1281 = vunpack.c.l.b16 %v493
    %v1282 = vunpack.c.l.b16 %v494
    %v1283 = vunpack.c.l.b16 %v495
    %v1284 = vpack.c.b16 %v1269, %v1268
    %v1285 = vpack.c.b16 %v1271, %v1270
    %v1286 = vpack.c.b16 %v1273, %v1272
    %v1287 = vpack.c.b16 %v1275, %v1274
    %v1288 = vpack.c.b16 %v1277, %v1276
    %v1289 = vpack.c.b16 %v1279, %v1278
    %v1290 = vpack.c.b16 %v1281, %v1280
    %v1291 = vpack.c.b16 %v1283, %v1282
    %1300 = vmatprep.subr.bf16.mxu0 0
    %1301 = vmatpush1.bf16.msra.mxu0 %v1284
    %1302 = vmatprep.subr.bf16.mxu0 0
    %1303 = vmatpush1.bf16.msra.mxu0 %v1285
    %1304 = vmatprep.subr.bf16.mxu0 0
    %1305 = vmatpush1.bf16.msra.mxu0 %v1286
    %1306 = vmatprep.subr.bf16.mxu0 0
    %1307 = vmatpush1.bf16.msra.mxu0 %v1287
    %1308 = vmatprep.subr.bf16.mxu0 0
    %1309 = vmatpush1.bf16.msra.mxu0 %v1288
    %1310 = vmatprep.subr.bf16.mxu0 0
    %1311 = vmatpush1.bf16.msra.mxu0 %v1289
    %1312 = vmatprep.subr.bf16.mxu0 0
    %1313 = vmatpush1.bf16.msra.mxu0 %v1290
    %1314 = vmatprep.subr.bf16.mxu0 0
    %1315 = vmatpush1.bf16.msra.mxu0 %v1291
    %1316 = vmatprep.subr.bf16.mxu0 0
    %1317 = vmatpush1.bf16.msra.mxu0 0
    %1318 = vmatprep.subr.bf16.mxu0 0
    %1319 = vmatpush1.bf16.msra.mxu0 0
    %1320 = vmatprep.subr.bf16.mxu0 0
    %1321 = vmatpush1.bf16.msra.mxu0 0
    %1322 = vmatprep.subr.bf16.mxu0 0
    %1323 = vmatpush1.bf16.msra.mxu0 0
    %1324 = vmatprep.subr.bf16.mxu0 0
    %1325 = vmatpush1.bf16.msra.mxu0 0
    %1326 = vmatprep.subr.bf16.mxu0 0
    %1327 = vmatpush1.bf16.msra.mxu0 0
    %1328 = vmatprep.subr.bf16.mxu0 0
    %1329 = vmatpush1.bf16.msra.mxu0 0
    %1330 = vmatprep.subr.bf16.mxu0 0
    %1331 = vmatpush1.bf16.msra.mxu0 0
    %1332 = vmatprep.mubr.bf16.mxu0 0
    %1333 = vmatmul.mubr.bf16.gmra.mrb[0].mxu0 %v1236
    %v1334 = vpop.f32.mrb[0].mxu0
    %v1335 = vadd.f32 0.0, %v1334
    %v1336 = vpop.f32.mrb[0].mxu0
    %v1337 = vpop.f32.mrb[0].mxu0
    %v1338 = vadd.f32 0.0, %v1337
    %v1339 = vpop.f32.mrb[0].mxu0
    %1340 = vmatprep.mubr.bf16.mxu0 0
    %1341 = vmatmul.mubr.bf16.gmra.mrb[0].mxu0 %v1237
    %v1342 = vpop.f32.mrb[0].mxu0
    %v1343 = vadd.f32 0.0, %v1342
    %v1344 = vpop.f32.mrb[0].mxu0
    %v1345 = vpop.f32.mrb[0].mxu0
    %v1346 = vadd.f32 0.0, %v1345
    %v1347 = vpop.f32.mrb[0].mxu0
    %1348 = vmatprep.mubr.bf16.mxu0 0
    %1349 = vmatmul.mubr.bf16.gmra.mrb[0].mxu0 %v1238
    %v1350 = vpop.f32.mrb[0].mxu0
    %v1351 = vadd.f32 0.0, %v1350
    %v1352 = vpop.f32.mrb[0].mxu0
    %v1353 = vpop.f32.mrb[0].mxu0
    %v1354 = vadd.f32 0.0, %v1353
    %v1355 = vpop.f32.mrb[0].mxu0
    %1356 = vmatprep.mubr.bf16.mxu0 0
    %1357 = vmatmul.mubr.bf16.gmra.mrb[0].mxu0 %v1239
    %v1358 = vpop.f32.mrb[0].mxu0
    %v1359 = vadd.f32 0.0, %v1358
    %v1360 = vpop.f32.mrb[0].mxu0
    %v1361 = vpop.f32.mrb[0].mxu0
    %v1362 = vadd.f32 0.0, %v1361
    %v1363 = vpop.f32.mrb[0].mxu0
    %1364 = vmatprep.mubr.bf16.mxu0 0
    %1365 = vmatmul.mubr.bf16.gmra.mrb[0].mxu0 %v1240
    %v1366 = vpop.f32.mrb[0].mxu0
    %v1367 = vadd.f32 0.0, %v1366
    %v1368 = vpop.f32.mrb[0].mxu0
    %v1369 = vpop.f32.mrb[0].mxu0
    %v1370 = vadd.f32 0.0, %v1369
    %v1371 = vpop.f32.mrb[0].mxu0
    %1372 = vmatprep.mubr.bf16.mxu0 0
    %1373 = vmatmul.mubr.bf16.gmra.mrb[0].mxu0 %v1241
    %v1374 = vpop.f32.mrb[0].mxu0
    %v1375 = vadd.f32 0.0, %v1374
    %v1376 = vpop.f32.mrb[0].mxu0
    %v1377 = vpop.f32.mrb[0].mxu0
    %v1378 = vadd.f32 0.0, %v1377
    %v1379 = vpop.f32.mrb[0].mxu0
    %1380 = vmatprep.mubr.bf16.mxu0 0
    %1381 = vmatmul.mubr.bf16.gmra.mrb[0].mxu0 %v1242
    %v1382 = vpop.f32.mrb[0].mxu0
    %v1383 = vadd.f32 0.0, %v1382
    %v1384 = vpop.f32.mrb[0].mxu0
    %v1385 = vpop.f32.mrb[0].mxu0
    %v1386 = vadd.f32 0.0, %v1385
    %v1387 = vpop.f32.mrb[0].mxu0
    %1388 = vmatprep.mubr.bf16.mxu0 0
    %1389 = vmatmul.mubr.bf16.gmra.mrb[0].mxu0 %v1243
    %v1390 = vpop.f32.mrb[0].mxu0
    %v1391 = vadd.f32 0.0, %v1390
    %v1392 = vpop.f32.mrb[0].mxu0
    %v1393 = vpop.f32.mrb[0].mxu0
    %v1394 = vadd.f32 0.0, %v1393
    %v1395 = vpop.f32.mrb[0].mxu0
    %1396 = vmatprep.mubr.bf16.mxu0 0
    %1397 = vmatmul.mubr.bf16.gmra.mrb[0].mxu0 %v1244
    %v1398 = vpop.f32.mrb[0].mxu0
    %v1399 = vadd.f32 0.0, %v1398
    %v1400 = vpop.f32.mrb[0].mxu0
    %v1401 = vpop.f32.mrb[0].mxu0
    %v1402 = vadd.f32 0.0, %v1401
    %v1403 = vpop.f32.mrb[0].mxu0
    %1404 = vmatprep.mubr.bf16.mxu0 0
    %1405 = vmatmul.mubr.bf16.gmra.mrb[0].mxu0 %v1245
    %v1406 = vpop.f32.mrb[0].mxu0
    %v1407 = vadd.f32 0.0, %v1406
    %v1408 = vpop.f32.mrb[0].mxu0
    %v1409 = vpop.f32.mrb[0].mxu0
    %v1410 = vadd.f32 0.0, %v1409
    %v1411 = vpop.f32.mrb[0].mxu0
    %1412 = vmatprep.mubr.bf16.mxu0 0
    %1413 = vmatmul.mubr.bf16.gmra.mrb[0].mxu0 %v1246
    %v1414 = vpop.f32.mrb[0].mxu0
    %v1415 = vadd.f32 0.0, %v1414
    %v1416 = vpop.f32.mrb[0].mxu0
    %v1417 = vpop.f32.mrb[0].mxu0
    %v1418 = vadd.f32 0.0, %v1417
    %v1419 = vpop.f32.mrb[0].mxu0
    %1420 = vmatprep.mubr.bf16.mxu0 0
    %1421 = vmatmul.mubr.bf16.gmra.mrb[0].mxu0 %v1247
    %v1422 = vpop.f32.mrb[0].mxu0
    %v1423 = vadd.f32 0.0, %v1422
    %v1424 = vpop.f32.mrb[0].mxu0
    %v1425 = vpop.f32.mrb[0].mxu0
    %v1426 = vadd.f32 0.0, %v1425
    %v1427 = vpop.f32.mrb[0].mxu0
    %1428 = vmatprep.mubr.bf16.mxu0 0
    %1429 = vmatmul.mubr.bf16.gmra.mrb[0].mxu0 %v1248
    %v1430 = vpop.f32.mrb[0].mxu0
    %v1431 = vadd.f32 0.0, %v1430
    %v1432 = vpop.f32.mrb[0].mxu0
    %v1433 = vpop.f32.mrb[0].mxu0
    %v1434 = vadd.f32 0.0, %v1433
    %v1435 = vpop.f32.mrb[0].mxu0
    %1436 = vmatprep.mubr.bf16.mxu0 0
    %1437 = vmatmul.mubr.bf16.gmra.mrb[0].mxu0 %v1249
    %v1438 = vpop.f32.mrb[0].mxu0
    %v1439 = vadd.f32 0.0, %v1438
    %v1440 = vpop.f32.mrb[0].mxu0
    %v1441 = vpop.f32.mrb[0].mxu0
    %v1442 = vadd.f32 0.0, %v1441
    %v1443 = vpop.f32.mrb[0].mxu0
    %1444 = vmatprep.mubr.bf16.mxu0 0
    %1445 = vmatmul.mubr.bf16.gmra.mrb[0].mxu0 %v1250
    %v1446 = vpop.f32.mrb[0].mxu0
    %v1447 = vadd.f32 0.0, %v1446
    %v1448 = vpop.f32.mrb[0].mxu0
    %v1449 = vpop.f32.mrb[0].mxu0
    %v1450 = vadd.f32 0.0, %v1449
    %v1451 = vpop.f32.mrb[0].mxu0
    %1452 = vmatprep.mubr.bf16.mxu0 0
    %1453 = vmatmul.mubr.bf16.gmra.mrb[0].mxu0 %v1251
    %v1454 = vpop.f32.mrb[0].mxu0
    %v1455 = vadd.f32 0.0, %v1454
    %v1456 = vpop.f32.mrb[0].mxu0
    %v1457 = vpop.f32.mrb[0].mxu0
    %v1458 = vadd.f32 0.0, %v1457
    %v1459 = vpop.f32.mrb[0].mxu0
    %1460 = vdwg.mxu0
    %v1461 = vpack.c.bf16 %v1338, %v1335
    %v1462 = vpack.c.bf16 %v1346, %v1343
    %v1463 = vpack.c.bf16 %v1354, %v1351
    %v1464 = vpack.c.bf16 %v1362, %v1359
    %v1465 = vpack.c.bf16 %v1370, %v1367
    %v1466 = vpack.c.bf16 %v1378, %v1375
    %v1467 = vpack.c.bf16 %v1386, %v1383
    %v1468 = vpack.c.bf16 %v1394, %v1391
    %v1469 = vpack.c.bf16 %v1402, %v1399
    %v1470 = vpack.c.bf16 %v1410, %v1407
    %v1471 = vpack.c.bf16 %v1418, %v1415
    %v1472 = vpack.c.bf16 %v1426, %v1423
    %v1473 = vpack.c.bf16 %v1434, %v1431
    %v1474 = vpack.c.bf16 %v1442, %v1439
    %v1475 = vpack.c.bf16 %v1450, %v1447
    %v1476 = vpack.c.bf16 %v1458, %v1455
    %v1477 = vadd.f32 %v1335, %v70
    %v1478 = vadd.f32 %v1338, %v74
    %v1479 = vadd.f32 %v1343, %v81
    %v1480 = vadd.f32 %v1346, %v85
    %v1481 = vadd.f32 %v1351, %v92
    %v1482 = vadd.f32 %v1354, %v96
    %v1483 = vadd.f32 %v1359, %v103
    %v1484 = vadd.f32 %v1362, %v107
    %v1485 = vadd.f32 %v1367, %v114
    %v1486 = vadd.f32 %v1370, %v118
    %v1487 = vadd.f32 %v1375, %v125
    %v1488 = vadd.f32 %v1378, %v129
    %v1489 = vadd.f32 %v1383, %v136
    %v1490 = vadd.f32 %v1386, %v140
    %v1491 = vadd.f32 %v1391, %v147
    %v1492 = vadd.f32 %v1394, %v151
    %v1493 = vadd.f32 %v1399, %v158
    %v1494 = vadd.f32 %v1402, %v162
    %v1495 = vadd.f32 %v1407, %v169
    %v1496 = vadd.f32 %v1410, %v173
    %v1497 = vadd.f32 %v1415, %v180
    %v1498 = vadd.f32 %v1418, %v184
    %v1499 = vadd.f32 %v1423, %v191
    %v1500 = vadd.f32 %v1426, %v195
    %v1501 = vadd.f32 %v1431, %v202
    %v1502 = vadd.f32 %v1434, %v206
    %v1503 = vadd.f32 %v1439, %v213
    %v1504 = vadd.f32 %v1442, %v217
    %v1505 = vadd.f32 %v1447, %v224
    %v1506 = vadd.f32 %v1450, %v228
    %v1507 = vadd.f32 %v1455, %v235
    %v1508 = vadd.f32 %v1458, %v239
    %vm1509 = vcmask 31744
    %v1510 = vsel %vm1509, %v1477, -inf
    %v1511 = vsel %vm1509, %v1479, -inf
    %v1512 = vsel %vm1509, %v1481, -inf
    %v1513 = vmax.f32 %v1510, %v1512
    %v1514 = vsel %vm1509, %v1483, -inf
    %v1515 = vmax.f32 %v1511, %v1514
    %v1516 = vsel %vm1509, %v1485, -inf
    %v1517 = vmax.f32 %v1513, %v1516
    %v1518 = vsel %vm1509, %v1487, -inf
    %v1519 = vmax.f32 %v1515, %v1518
    %v1520 = vsel %vm1509, %v1489, -inf
    %v1521 = vmax.f32 %v1517, %v1520
    %v1522 = vsel %vm1509, %v1491, -inf
    %v1523 = vmax.f32 %v1519, %v1522
    %v1524 = vsel %vm1509, %v1493, -inf
    %v1525 = vmax.f32 %v1521, %v1524
    %v1526 = vsel %vm1509, %v1495, -inf
    %v1527 = vmax.f32 %v1523, %v1526
    %v1528 = vsel %vm1509, %v1497, -inf
    %v1529 = vmax.f32 %v1525, %v1528
    %v1530 = vsel %vm1509, %v1499, -inf
    %v1531 = vmax.f32 %v1527, %v1530
    %v1532 = vsel %vm1509, %v1501, -inf
    %v1533 = vmax.f32 %v1529, %v1532
    %v1534 = vsel %vm1509, %v1503, -inf
    %v1535 = vmax.f32 %v1531, %v1534
    %v1536 = vsel %vm1509, %v1505, -inf
    %v1537 = vmax.f32 %v1533, %v1536
    %v1538 = vsel %vm1509, %v1507, -inf
    %v1539 = vmax.f32 %v1535, %v1538
    %v1540 = vmax.f32 %v1537, %v1539
    %v1541 = vsel %vm1509, %v1478, -inf
    %v1542 = vsel %vm1509, %v1480, -inf
    %v1543 = vsel %vm1509, %v1482, -inf
    %v1544 = vmax.f32 %v1541, %v1543
    %v1545 = vsel %vm1509, %v1484, -inf
    %v1546 = vmax.f32 %v1542, %v1545
    %v1547 = vsel %vm1509, %v1486, -inf
    %v1548 = vmax.f32 %v1544, %v1547
    %v1549 = vsel %vm1509, %v1488, -inf
    %v1550 = vmax.f32 %v1546, %v1549
    %v1551 = vsel %vm1509, %v1490, -inf
    %v1552 = vmax.f32 %v1548, %v1551
    %v1553 = vsel %vm1509, %v1492, -inf
    %v1554 = vmax.f32 %v1550, %v1553
    %v1555 = vsel %vm1509, %v1494, -inf
    %v1556 = vmax.f32 %v1552, %v1555
    %v1557 = vsel %vm1509, %v1496, -inf
    %v1558 = vmax.f32 %v1554, %v1557
    %v1559 = vsel %vm1509, %v1498, -inf
    %v1560 = vmax.f32 %v1556, %v1559
    %v1561 = vsel %vm1509, %v1500, -inf
    %v1562 = vmax.f32 %v1558, %v1561
    %v1563 = vsel %vm1509, %v1502, -inf
    %v1564 = vmax.f32 %v1560, %v1563
    %v1565 = vsel %vm1509, %v1504, -inf
    %v1566 = vmax.f32 %v1562, %v1565
    %v1567 = vsel %vm1509, %v1506, -inf
    %v1568 = vmax.f32 %v1564, %v1567
    %v1569 = vsel %vm1509, %v1508, -inf
    %v1570 = vmax.f32 %v1566, %v1569
    %v1571 = vmax.f32 %v1568, %v1570
    %v1572 = vsub.f32 %v1477, %v1540
    %v1573 = vsub.f32 %v1478, %v1571
    %v1574 = vsub.f32 %v1479, %v1540
    %v1575 = vsub.f32 %v1480, %v1571
    %v1576 = vsub.f32 %v1481, %v1540
    %v1577 = vsub.f32 %v1482, %v1571
    %v1578 = vsub.f32 %v1483, %v1540
    %v1579 = vsub.f32 %v1484, %v1571
    %v1580 = vsub.f32 %v1485, %v1540
    %v1581 = vsub.f32 %v1486, %v1571
    %v1582 = vsub.f32 %v1487, %v1540
    %v1583 = vsub.f32 %v1488, %v1571
    %v1584 = vsub.f32 %v1489, %v1540
    %v1585 = vsub.f32 %v1490, %v1571
    %v1586 = vsub.f32 %v1491, %v1540
    %v1587 = vsub.f32 %v1492, %v1571
    %v1588 = vsub.f32 %v1493, %v1540
    %v1589 = vsub.f32 %v1494, %v1571
    %v1590 = vsub.f32 %v1495, %v1540
    %v1591 = vsub.f32 %v1496, %v1571
    %v1592 = vsub.f32 %v1497, %v1540
    %v1593 = vsub.f32 %v1498, %v1571
    %v1594 = vsub.f32 %v1499, %v1540
    %v1595 = vsub.f32 %v1500, %v1571
    %v1596 = vsub.f32 %v1501, %v1540
    %v1597 = vsub.f32 %v1502, %v1571
    %v1598 = vsub.f32 %v1503, %v1540
    %v1599 = vsub.f32 %v1504, %v1571
    %v1600 = vsub.f32 %v1505, %v1540
    %v1601 = vsub.f32 %v1506, %v1571
    %v1602 = vsub.f32 %v1507, %v1540
    %v1603 = vsub.f32 %v1508, %v1571
    %v1604 = vmul.f32 %v1572, 1.442695
    %v1605 = vpow.pop %v1604
    %v1606 = vmul.f32 %v1573, 1.442695
    %v1607 = vpow.pop %v1606
    %v1608 = vmul.f32 %v1574, 1.442695
    %v1609 = vpow.pop %v1608
    %v1610 = vmul.f32 %v1575, 1.442695
    %v1611 = vpow.pop %v1610
    %v1612 = vmul.f32 %v1576, 1.442695
    %v1613 = vpow.pop %v1612
    %v1614 = vmul.f32 %v1577, 1.442695
    %v1615 = vpow.pop %v1614
    %v1616 = vmul.f32 %v1578, 1.442695
    %v1617 = vpow.pop %v1616
    %v1618 = vmul.f32 %v1579, 1.442695
    %v1619 = vpow.pop %v1618
    %v1620 = vmul.f32 %v1580, 1.442695
    %v1621 = vpow.pop %v1620
    %v1622 = vmul.f32 %v1581, 1.442695
    %v1623 = vpow.pop %v1622
    %v1624 = vmul.f32 %v1582, 1.442695
    %v1625 = vpow.pop %v1624
    %v1626 = vmul.f32 %v1583, 1.442695
    %v1627 = vpow.pop %v1626
    %v1628 = vmul.f32 %v1584, 1.442695
    %v1629 = vpow.pop %v1628
    %v1630 = vmul.f32 %v1585, 1.442695
    %v1631 = vpow.pop %v1630
    %v1632 = vmul.f32 %v1586, 1.442695
    %v1633 = vpow.pop %v1632
    %v1634 = vmul.f32 %v1587, 1.442695
    %v1635 = vpow.pop %v1634
    %v1636 = vmul.f32 %v1588, 1.442695
    %v1637 = vpow.pop %v1636
    %v1638 = vmul.f32 %v1589, 1.442695
    %v1639 = vpow.pop %v1638
    %v1640 = vmul.f32 %v1590, 1.442695
    %v1641 = vpow.pop %v1640
    %v1642 = vmul.f32 %v1591, 1.442695
    %v1643 = vpow.pop %v1642
    %v1644 = vmul.f32 %v1592, 1.442695
    %v1645 = vpow.pop %v1644
    %v1646 = vmul.f32 %v1593, 1.442695
    %v1647 = vpow.pop %v1646
    %v1648 = vmul.f32 %v1594, 1.442695
    %v1649 = vpow.pop %v1648
    %v1650 = vmul.f32 %v1595, 1.442695
    %v1651 = vpow.pop %v1650
    %v1652 = vmul.f32 %v1596, 1.442695
    %v1653 = vpow.pop %v1652
    %v1654 = vmul.f32 %v1597, 1.442695
    %v1655 = vpow.pop %v1654
    %v1656 = vmul.f32 %v1598, 1.442695
    %v1657 = vpow.pop %v1656
    %v1658 = vmul.f32 %v1599, 1.442695
    %v1659 = vpow.pop %v1658
    %v1660 = vmul.f32 %v1600, 1.442695
    %v1661 = vpow.pop %v1660
    %v1662 = vmul.f32 %v1601, 1.442695
    %v1663 = vpow.pop %v1662
    %v1664 = vmul.f32 %v1602, 1.442695
    %v1665 = vpow.pop %v1664
    %v1666 = vmul.f32 %v1603, 1.442695
    %v1667 = vpow.pop %v1666
    %v1668 = vmul.f32 %v1605, %v246
    %v1669 = vmul.f32 %v1607, %v250
    %v1670 = vmul.f32 %v1609, %v257
    %v1671 = vmul.f32 %v1611, %v261
    %v1672 = vmul.f32 %v1613, %v268
    %v1673 = vmul.f32 %v1615, %v272
    %v1674 = vmul.f32 %v1617, %v279
    %v1675 = vmul.f32 %v1619, %v283
    %v1676 = vmul.f32 %v1621, %v290
    %v1677 = vmul.f32 %v1623, %v294
    %v1678 = vmul.f32 %v1625, %v301
    %v1679 = vmul.f32 %v1627, %v305
    %v1680 = vmul.f32 %v1629, %v312
    %v1681 = vmul.f32 %v1631, %v316
    %v1682 = vmul.f32 %v1633, %v323
    %v1683 = vmul.f32 %v1635, %v327
    %v1684 = vmul.f32 %v1637, %v334
    %v1685 = vmul.f32 %v1639, %v338
    %v1686 = vmul.f32 %v1641, %v345
    %v1687 = vmul.f32 %v1643, %v349
    %v1688 = vmul.f32 %v1645, %v356
    %v1689 = vmul.f32 %v1647, %v360
    %v1690 = vmul.f32 %v1649, %v367
    %v1691 = vmul.f32 %v1651, %v371
    %v1692 = vmul.f32 %v1653, %v378
    %v1693 = vmul.f32 %v1655, %v382
    %v1694 = vmul.f32 %v1657, %v389
    %v1695 = vmul.f32 %v1659, %v393
    %v1696 = vmul.f32 %v1661, %v400
    %v1697 = vmul.f32 %v1663, %v404
    %v1698 = vmul.f32 %v1665, %v411
    %v1699 = vmul.f32 %v1667, %v415
    %v1700 = vsel %vm1509, %v1668, 0.0
    %v1701 = vsel %vm1509, %v1670, 0.0
    %v1702 = vadd.f32 %v1700, %v1701
    %v1703 = vsel %vm1509, %v1672, 0.0
    %v1704 = vadd.f32 %v1702, %v1703
    %v1705 = vsel %vm1509, %v1674, 0.0
    %v1706 = vadd.f32 %v1704, %v1705
    %v1707 = vsel %vm1509, %v1676, 0.0
    %v1708 = vadd.f32 %v1706, %v1707
    %v1709 = vsel %vm1509, %v1678, 0.0
    %v1710 = vadd.f32 %v1708, %v1709
    %v1711 = vsel %vm1509, %v1680, 0.0
    %v1712 = vadd.f32 %v1710, %v1711
    %v1713 = vsel %vm1509, %v1682, 0.0
    %v1714 = vadd.f32 %v1712, %v1713
    %v1715 = vsel %vm1509, %v1684, 0.0
    %v1716 = vadd.f32 %v1714, %v1715
    %v1717 = vsel %vm1509, %v1686, 0.0
    %v1718 = vadd.f32 %v1716, %v1717
    %v1719 = vsel %vm1509, %v1688, 0.0
    %v1720 = vadd.f32 %v1718, %v1719
    %v1721 = vsel %vm1509, %v1690, 0.0
    %v1722 = vadd.f32 %v1720, %v1721
    %v1723 = vsel %vm1509, %v1692, 0.0
    %v1724 = vadd.f32 %v1722, %v1723
    %v1725 = vsel %vm1509, %v1694, 0.0
    %v1726 = vadd.f32 %v1724, %v1725
    %v1727 = vsel %vm1509, %v1696, 0.0
    %v1728 = vadd.f32 %v1726, %v1727
    %v1729 = vsel %vm1509, %v1698, 0.0
    %v1730 = vadd.f32 %v1728, %v1729
    %v1731 = vsel %vm1509, %v1669, 0.0
    %v1732 = vsel %vm1509, %v1671, 0.0
    %v1733 = vadd.f32 %v1731, %v1732
    %v1734 = vsel %vm1509, %v1673, 0.0
    %v1735 = vadd.f32 %v1733, %v1734
    %v1736 = vsel %vm1509, %v1675, 0.0
    %v1737 = vadd.f32 %v1735, %v1736
    %v1738 = vsel %vm1509, %v1677, 0.0
    %v1739 = vadd.f32 %v1737, %v1738
    %v1740 = vsel %vm1509, %v1679, 0.0
    %v1741 = vadd.f32 %v1739, %v1740
    %v1742 = vsel %vm1509, %v1681, 0.0
    %v1743 = vadd.f32 %v1741, %v1742
    %v1744 = vsel %vm1509, %v1683, 0.0
    %v1745 = vadd.f32 %v1743, %v1744
    %v1746 = vsel %vm1509, %v1685, 0.0
    %v1747 = vadd.f32 %v1745, %v1746
    %v1748 = vsel %vm1509, %v1687, 0.0
    %v1749 = vadd.f32 %v1747, %v1748
    %v1750 = vsel %vm1509, %v1689, 0.0
    %v1751 = vadd.f32 %v1749, %v1750
    %v1752 = vsel %vm1509, %v1691, 0.0
    %v1753 = vadd.f32 %v1751, %v1752
    %v1754 = vsel %vm1509, %v1693, 0.0
    %v1755 = vadd.f32 %v1753, %v1754
    %v1756 = vsel %vm1509, %v1695, 0.0
    %v1757 = vadd.f32 %v1755, %v1756
    %v1758 = vsel %vm1509, %v1697, 0.0
    %v1759 = vadd.f32 %v1757, %v1758
    %v1760 = vsel %vm1509, %v1699, 0.0
    %v1761 = vadd.f32 %v1759, %v1760
    %v1762 = vmax.f32 %v1730, 1e-30
    %v1763 = vmax.f32 %v1761, 1e-30
    %v1764 = vrcp.pop %v1762
    %v1765 = vrcp.pop %v1763
    %v1766 = vmul.f32 %v1668, %v1764
    %v1767 = vmul.f32 %v1669, %v1765
    %v1768 = vmul.f32 %v1670, %v1764
    %v1769 = vmul.f32 %v1671, %v1765
    %v1770 = vmul.f32 %v1672, %v1764
    %v1771 = vmul.f32 %v1673, %v1765
    %v1772 = vmul.f32 %v1674, %v1764
    %v1773 = vmul.f32 %v1675, %v1765
    %v1774 = vmul.f32 %v1676, %v1764
    %v1775 = vmul.f32 %v1677, %v1765
    %v1776 = vmul.f32 %v1678, %v1764
    %v1777 = vmul.f32 %v1679, %v1765
    %v1778 = vmul.f32 %v1680, %v1764
    %v1779 = vmul.f32 %v1681, %v1765
    %v1780 = vmul.f32 %v1682, %v1764
    %v1781 = vmul.f32 %v1683, %v1765
    %v1782 = vmul.f32 %v1684, %v1764
    %v1783 = vmul.f32 %v1685, %v1765
    %v1784 = vmul.f32 %v1686, %v1764
    %v1785 = vmul.f32 %v1687, %v1765
    %v1786 = vmul.f32 %v1688, %v1764
    %v1787 = vmul.f32 %v1689, %v1765
    %v1788 = vmul.f32 %v1690, %v1764
    %v1789 = vmul.f32 %v1691, %v1765
    %v1790 = vmul.f32 %v1692, %v1764
    %v1791 = vmul.f32 %v1693, %v1765
    %v1792 = vmul.f32 %v1694, %v1764
    %v1793 = vmul.f32 %v1695, %v1765
    %v1794 = vmul.f32 %v1696, %v1764
    %v1795 = vmul.f32 %v1697, %v1765
    %v1796 = vmul.f32 %v1698, %v1764
    %v1797 = vmul.f32 %v1699, %v1765
    %v1798 = vpack.c.bf16 %v1767, %v1766
    %v1799 = vpack.c.bf16 %v1769, %v1768
    %v1800 = vpack.c.bf16 %v1771, %v1770
    %v1801 = vpack.c.bf16 %v1773, %v1772
    %v1802 = vpack.c.bf16 %v1775, %v1774
    %v1803 = vpack.c.bf16 %v1777, %v1776
    %v1804 = vpack.c.bf16 %v1779, %v1778
    %v1805 = vpack.c.bf16 %v1781, %v1780
    %v1806 = vpack.c.bf16 %v1783, %v1782
    %v1807 = vpack.c.bf16 %v1785, %v1784
    %v1808 = vpack.c.bf16 %v1787, %v1786
    %v1809 = vpack.c.bf16 %v1789, %v1788
    %v1810 = vpack.c.bf16 %v1791, %v1790
    %v1811 = vpack.c.bf16 %v1793, %v1792
    %v1812 = vpack.c.bf16 %v1795, %v1794
    %v1813 = vpack.c.bf16 %v1797, %v1796
    %v1815 = vsel %vm1509, %v1798, 0
    %v1818 = vsel %vm1509, %v1799, 0
    %v1821 = vsel %vm1509, %v1800, 0
    %v1824 = vsel %vm1509, %v1801, 0
    %v1827 = vsel %vm1509, %v1802, 0
    %v1830 = vsel %vm1509, %v1803, 0
    %v1833 = vsel %vm1509, %v1804, 0
    %v1836 = vsel %vm1509, %v1805, 0
    %v1839 = vsel %vm1509, %v1806, 0
    %v1842 = vsel %vm1509, %v1807, 0
    %v1845 = vsel %vm1509, %v1808, 0
    %v1848 = vsel %vm1509, %v1809, 0
    %v1851 = vsel %vm1509, %v1810, 0
    %v1854 = vsel %vm1509, %v1811, 0
    %v1857 = vsel %vm1509, %v1812, 0
    %v1860 = vsel %vm1509, %v1813, 0
    %vm1862 = vcmask 1041408
    %v1864 = vsel %vm1862, %v416, 0
    %1866 = vmatprep.subr.bf16.mxu0 0
    %1867 = vmatpush1.bf16.msra.mxu0 %v1864
    %1868 = vmatprep.subr.bf16.mxu0 0
    %1869 = vmatpush1.bf16.msra.mxu0 0
    %1870 = vmatprep.subr.bf16.mxu0 0
    %1871 = vmatpush1.bf16.msra.mxu0 0
    %1872 = vmatprep.subr.bf16.mxu0 0
    %1873 = vmatpush1.bf16.msra.mxu0 0
    %1874 = vmatprep.subr.bf16.mxu0 0
    %1875 = vmatpush1.bf16.msra.mxu0 0
    %1876 = vmatprep.subr.bf16.mxu0 0
    %1877 = vmatpush1.bf16.msra.mxu0 0
    %1878 = vmatprep.subr.bf16.mxu0 0
    %1879 = vmatpush1.bf16.msra.mxu0 0
    %1880 = vmatprep.subr.bf16.mxu0 0
    %1881 = vmatpush1.bf16.msra.mxu0 0
    %1882 = vmatprep.subr.bf16.mxu0 0
    %1883 = vmatpush1.bf16.msra.mxu0 0
    %1884 = vmatprep.subr.bf16.mxu0 0
    %1885 = vmatpush1.bf16.msra.mxu0 0
    %1886 = vmatprep.subr.bf16.mxu0 0
    %1887 = vmatpush1.bf16.msra.mxu0 0
    %1888 = vmatprep.subr.bf16.mxu0 0
    %1889 = vmatpush1.bf16.msra.mxu0 0
    %1890 = vmatprep.subr.bf16.mxu0 0
    %1891 = vmatpush1.bf16.msra.mxu0 0
    %1892 = vmatprep.subr.bf16.mxu0 0
    %1893 = vmatpush1.bf16.msra.mxu0 0
    %1894 = vmatprep.subr.bf16.mxu0 0
    %1895 = vmatpush1.bf16.msra.mxu0 0
    %1896 = vmatprep.subr.bf16.mxu0 0
    %1897 = vmatpush1.bf16.msra.mxu0 0
    %1898 = vmatprep.mubr.bf16.mxu0 0
    %1899 = vmatmul.mubr.bf16.gmra.mrb[0].mxu0 %v1815
    %v1900 = vpop.f32.mrb[0].mxu0
    %v1901 = vadd.f32 0.0, %v1900
    %v1902 = vpop.f32.mrb[0].mxu0
    %v1903 = vpop.f32.mrb[0].mxu0
    %v1904 = vadd.f32 0.0, %v1903
    %v1905 = vpop.f32.mrb[0].mxu0
    %1906 = vmatprep.mubr.bf16.mxu0 0
    %1907 = vmatmul.mubr.bf16.gmra.mrb[0].mxu0 %v1818
    %v1908 = vpop.f32.mrb[0].mxu0
    %v1909 = vadd.f32 0.0, %v1908
    %v1910 = vpop.f32.mrb[0].mxu0
    %v1911 = vpop.f32.mrb[0].mxu0
    %v1912 = vadd.f32 0.0, %v1911
    %v1913 = vpop.f32.mrb[0].mxu0
    %1914 = vmatprep.mubr.bf16.mxu0 0
    %1915 = vmatmul.mubr.bf16.gmra.mrb[0].mxu0 %v1821
    %v1916 = vpop.f32.mrb[0].mxu0
    %v1917 = vadd.f32 0.0, %v1916
    %v1918 = vpop.f32.mrb[0].mxu0
    %v1919 = vpop.f32.mrb[0].mxu0
    %v1920 = vadd.f32 0.0, %v1919
    %v1921 = vpop.f32.mrb[0].mxu0
    %1922 = vmatprep.mubr.bf16.mxu0 0
    %1923 = vmatmul.mubr.bf16.gmra.mrb[0].mxu0 %v1824
    %v1924 = vpop.f32.mrb[0].mxu0
    %v1925 = vadd.f32 0.0, %v1924
    %v1926 = vpop.f32.mrb[0].mxu0
    %v1927 = vpop.f32.mrb[0].mxu0
    %v1928 = vadd.f32 0.0, %v1927
    %v1929 = vpop.f32.mrb[0].mxu0
    %1930 = vmatprep.mubr.bf16.mxu0 0
    %1931 = vmatmul.mubr.bf16.gmra.mrb[0].mxu0 %v1827
    %v1932 = vpop.f32.mrb[0].mxu0
    %v1933 = vadd.f32 0.0, %v1932
    %v1934 = vpop.f32.mrb[0].mxu0
    %v1935 = vpop.f32.mrb[0].mxu0
    %v1936 = vadd.f32 0.0, %v1935
    %v1937 = vpop.f32.mrb[0].mxu0
    %1938 = vmatprep.mubr.bf16.mxu0 0
    %1939 = vmatmul.mubr.bf16.gmra.mrb[0].mxu0 %v1830
    %v1940 = vpop.f32.mrb[0].mxu0
    %v1941 = vadd.f32 0.0, %v1940
    %v1942 = vpop.f32.mrb[0].mxu0
    %v1943 = vpop.f32.mrb[0].mxu0
    %v1944 = vadd.f32 0.0, %v1943
    %v1945 = vpop.f32.mrb[0].mxu0
    %1946 = vmatprep.mubr.bf16.mxu0 0
    %1947 = vmatmul.mubr.bf16.gmra.mrb[0].mxu0 %v1833
    %v1948 = vpop.f32.mrb[0].mxu0
    %v1949 = vadd.f32 0.0, %v1948
    %v1950 = vpop.f32.mrb[0].mxu0
    %v1951 = vpop.f32.mrb[0].mxu0
    %v1952 = vadd.f32 0.0, %v1951
    %v1953 = vpop.f32.mrb[0].mxu0
    %1954 = vmatprep.mubr.bf16.mxu0 0
    %1955 = vmatmul.mubr.bf16.gmra.mrb[0].mxu0 %v1836
    %v1956 = vpop.f32.mrb[0].mxu0
    %v1957 = vadd.f32 0.0, %v1956
    %v1958 = vpop.f32.mrb[0].mxu0
    %v1959 = vpop.f32.mrb[0].mxu0
    %v1960 = vadd.f32 0.0, %v1959
    %v1961 = vpop.f32.mrb[0].mxu0
    %1962 = vmatprep.mubr.bf16.mxu0 0
    %1963 = vmatmul.mubr.bf16.gmra.mrb[0].mxu0 %v1839
    %v1964 = vpop.f32.mrb[0].mxu0
    %v1965 = vadd.f32 0.0, %v1964
    %v1966 = vpop.f32.mrb[0].mxu0
    %v1967 = vpop.f32.mrb[0].mxu0
    %v1968 = vadd.f32 0.0, %v1967
    %v1969 = vpop.f32.mrb[0].mxu0
    %1970 = vmatprep.mubr.bf16.mxu0 0
    %1971 = vmatmul.mubr.bf16.gmra.mrb[0].mxu0 %v1842
    %v1972 = vpop.f32.mrb[0].mxu0
    %v1973 = vadd.f32 0.0, %v1972
    %v1974 = vpop.f32.mrb[0].mxu0
    %v1975 = vpop.f32.mrb[0].mxu0
    %v1976 = vadd.f32 0.0, %v1975
    %v1977 = vpop.f32.mrb[0].mxu0
    %1978 = vmatprep.mubr.bf16.mxu0 0
    %1979 = vmatmul.mubr.bf16.gmra.mrb[0].mxu0 %v1845
    %v1980 = vpop.f32.mrb[0].mxu0
    %v1981 = vadd.f32 0.0, %v1980
    %v1982 = vpop.f32.mrb[0].mxu0
    %v1983 = vpop.f32.mrb[0].mxu0
    %v1984 = vadd.f32 0.0, %v1983
    %v1985 = vpop.f32.mrb[0].mxu0
    %1986 = vmatprep.mubr.bf16.mxu0 0
    %1987 = vmatmul.mubr.bf16.gmra.mrb[0].mxu0 %v1848
    %v1988 = vpop.f32.mrb[0].mxu0
    %v1989 = vadd.f32 0.0, %v1988
    %v1990 = vpop.f32.mrb[0].mxu0
    %v1991 = vpop.f32.mrb[0].mxu0
    %v1992 = vadd.f32 0.0, %v1991
    %v1993 = vpop.f32.mrb[0].mxu0
    %1994 = vmatprep.mubr.bf16.mxu0 0
    %1995 = vmatmul.mubr.bf16.gmra.mrb[0].mxu0 %v1851
    %v1996 = vpop.f32.mrb[0].mxu0
    %v1997 = vadd.f32 0.0, %v1996
    %v1998 = vpop.f32.mrb[0].mxu0
    %v1999 = vpop.f32.mrb[0].mxu0
    %v2000 = vadd.f32 0.0, %v1999
    %v2001 = vpop.f32.mrb[0].mxu0
    %2002 = vmatprep.mubr.bf16.mxu0 0
    %2003 = vmatmul.mubr.bf16.gmra.mrb[0].mxu0 %v1854
    %v2004 = vpop.f32.mrb[0].mxu0
    %v2005 = vadd.f32 0.0, %v2004
    %v2006 = vpop.f32.mrb[0].mxu0
    %v2007 = vpop.f32.mrb[0].mxu0
    %v2008 = vadd.f32 0.0, %v2007
    %v2009 = vpop.f32.mrb[0].mxu0
    %2010 = vmatprep.mubr.bf16.mxu0 0
    %2011 = vmatmul.mubr.bf16.gmra.mrb[0].mxu0 %v1857
    %v2012 = vpop.f32.mrb[0].mxu0
    %v2013 = vadd.f32 0.0, %v2012
    %v2014 = vpop.f32.mrb[0].mxu0
    %v2015 = vpop.f32.mrb[0].mxu0
    %v2016 = vadd.f32 0.0, %v2015
    %v2017 = vpop.f32.mrb[0].mxu0
    %2018 = vmatprep.mubr.bf16.mxu0 0
    %2019 = vmatmul.mubr.bf16.gmra.mrb[0].mxu0 %v1860
    %v2020 = vpop.f32.mrb[0].mxu0
    %v2021 = vadd.f32 0.0, %v2020
    %v2022 = vpop.f32.mrb[0].mxu0
    %v2023 = vpop.f32.mrb[0].mxu0
    %v2024 = vadd.f32 0.0, %v2023
    %v2025 = vpop.f32.mrb[0].mxu0
    %2026 = vdwg.mxu0
    %v2029 = vcombine.high %v613, %v613
    %v2031 = vunpack.c.l.s4 1966171168
    %v2032 = vunpack.c.0.s8 %v2031
    %v2033 = vlaneseq
    %v2034 = vshrl.u32 %v2033, 7
    %v2035 = vsub.s32 %v2032, %v2034
    %v2036 = vrot.slane %v613, %v2035
    %v2038 = vunpack.c.l.s4 1966171168
    %v2039 = vunpack.c.0.s8 %v2038
    %v2040 = vlaneseq
    %v2041 = vshrl.u32 %v2040, 7
    %v2042 = vsub.s32 %v2039, %v2041
    %v2043 = vrot.slane %v2029, %v2042
    %v2044 = vcombine.high %v2036, %v2036
    %v2045 = vcombine.high %v2043, %v2043
    %v2047 = vunpack.c.l.s4 1966171168
    %v2048 = vunpack.c.0.s8 %v2047
    %v2049 = vlaneseq
    %v2050 = vshrl.u32 %v2049, 7
    %v2051 = vsub.s32 %v2048, %v2050
    %v2052 = vrot.slane %v2036, %v2051
    %v2054 = vunpack.c.l.s4 1966171168
    %v2055 = vunpack.c.0.s8 %v2054
    %v2056 = vlaneseq
    %v2057 = vshrl.u32 %v2056, 7
    %v2058 = vsub.s32 %v2055, %v2057
    %v2059 = vrot.slane %v2043, %v2058
    %v2061 = vunpack.c.l.s4 1966171168
    %v2062 = vunpack.c.0.s8 %v2061
    %v2063 = vlaneseq
    %v2064 = vshrl.u32 %v2063, 7
    %v2065 = vsub.s32 %v2062, %v2064
    %v2066 = vrot.slane %v2044, %v2065
    %v2068 = vunpack.c.l.s4 1966171168
    %v2069 = vunpack.c.0.s8 %v2068
    %v2070 = vlaneseq
    %v2071 = vshrl.u32 %v2070, 7
    %v2072 = vsub.s32 %v2069, %v2071
    %v2073 = vrot.slane %v2045, %v2072
    %v2074 = vcombine.high %v2052, %v2052
    %v2075 = vcombine.high %v2059, %v2059
    %v2076 = vcombine.high %v2066, %v2066
    %v2077 = vcombine.high %v2073, %v2073
    %v2078 = vcombine.high %v616, %v616
    %v2080 = vunpack.c.l.s4 1966171168
    %v2081 = vunpack.c.0.s8 %v2080
    %v2082 = vlaneseq
    %v2083 = vshrl.u32 %v2082, 7
    %v2084 = vsub.s32 %v2081, %v2083
    %v2085 = vrot.slane %v616, %v2084
    %v2087 = vunpack.c.l.s4 1966171168
    %v2088 = vunpack.c.0.s8 %v2087
    %v2089 = vlaneseq
    %v2090 = vshrl.u32 %v2089, 7
    %v2091 = vsub.s32 %v2088, %v2090
    %v2092 = vrot.slane %v2078, %v2091
    %v2093 = vcombine.high %v2085, %v2085
    %v2094 = vcombine.high %v2092, %v2092
    %v2096 = vunpack.c.l.s4 1966171168
    %v2097 = vunpack.c.0.s8 %v2096
    %v2098 = vlaneseq
    %v2099 = vshrl.u32 %v2098, 7
    %v2100 = vsub.s32 %v2097, %v2099
    %v2101 = vrot.slane %v2085, %v2100
    %v2103 = vunpack.c.l.s4 1966171168
    %v2104 = vunpack.c.0.s8 %v2103
    %v2105 = vlaneseq
    %v2106 = vshrl.u32 %v2105, 7
    %v2107 = vsub.s32 %v2104, %v2106
    %v2108 = vrot.slane %v2092, %v2107
    %v2110 = vunpack.c.l.s4 1966171168
    %v2111 = vunpack.c.0.s8 %v2110
    %v2112 = vlaneseq
    %v2113 = vshrl.u32 %v2112, 7
    %v2114 = vsub.s32 %v2111, %v2113
    %v2115 = vrot.slane %v2093, %v2114
    %v2117 = vunpack.c.l.s4 1966171168
    %v2118 = vunpack.c.0.s8 %v2117
    %v2119 = vlaneseq
    %v2120 = vshrl.u32 %v2119, 7
    %v2121 = vsub.s32 %v2118, %v2120
    %v2122 = vrot.slane %v2094, %v2121
    %v2123 = vcombine.high %v2101, %v2101
    %v2124 = vcombine.high %v2108, %v2108
    %v2125 = vcombine.high %v2115, %v2115
    %v2126 = vcombine.high %v2122, %v2122
    %v2127 = vlaneseq
    %v2128 = vshrl.u32 %v2127, 7
    %v2129 = vsub.s32 0, %v2128
    %v2130 = vrot.slane %v2052, %v2129
    %v2131 = vlaneseq
    %v2132 = vshrl.u32 %v2131, 7
    %v2133 = vsub.s32 0, %v2132
    %v2134 = vrot.slane %v2066, %v2133
    %v2135 = vlaneseq
    %v2136 = vshrl.u32 %v2135, 7
    %v2137 = vsub.s32 0, %v2136
    %v2138 = vrot.slane %v2074, %v2137
    %v2139 = vlaneseq
    %v2140 = vshrl.u32 %v2139, 7
    %v2141 = vsub.s32 0, %v2140
    %v2142 = vrot.slane %v2076, %v2141
    %v2143 = vlaneseq
    %v2144 = vshrl.u32 %v2143, 7
    %v2145 = vsub.s32 0, %v2144
    %v2146 = vrot.slane %v2059, %v2145
    %v2147 = vlaneseq
    %v2148 = vshrl.u32 %v2147, 7
    %v2149 = vsub.s32 0, %v2148
    %v2150 = vrot.slane %v2073, %v2149
    %v2151 = vlaneseq
    %v2152 = vshrl.u32 %v2151, 7
    %v2153 = vsub.s32 0, %v2152
    %v2154 = vrot.slane %v2075, %v2153
    %v2155 = vlaneseq
    %v2156 = vshrl.u32 %v2155, 7
    %v2157 = vsub.s32 0, %v2156
    %v2158 = vrot.slane %v2077, %v2157
    %v2159 = vlaneseq
    %v2160 = vshrl.u32 %v2159, 7
    %v2161 = vsub.s32 0, %v2160
    %v2162 = vrot.slane %v2101, %v2161
    %v2163 = vlaneseq
    %v2164 = vshrl.u32 %v2163, 7
    %v2165 = vsub.s32 0, %v2164
    %v2166 = vrot.slane %v2115, %v2165
    %v2167 = vlaneseq
    %v2168 = vshrl.u32 %v2167, 7
    %v2169 = vsub.s32 0, %v2168
    %v2170 = vrot.slane %v2123, %v2169
    %v2171 = vlaneseq
    %v2172 = vshrl.u32 %v2171, 7
    %v2173 = vsub.s32 0, %v2172
    %v2174 = vrot.slane %v2125, %v2173
    %v2175 = vlaneseq
    %v2176 = vshrl.u32 %v2175, 7
    %v2177 = vsub.s32 0, %v2176
    %v2178 = vrot.slane %v2108, %v2177
    %v2179 = vlaneseq
    %v2180 = vshrl.u32 %v2179, 7
    %v2181 = vsub.s32 0, %v2180
    %v2182 = vrot.slane %v2122, %v2181
    %v2183 = vlaneseq
    %v2184 = vshrl.u32 %v2183, 7
    %v2185 = vsub.s32 0, %v2184
    %v2186 = vrot.slane %v2124, %v2185
    %v2187 = vlaneseq
    %v2188 = vshrl.u32 %v2187, 7
    %v2189 = vsub.s32 0, %v2188
    %v2190 = vrot.slane %v2126, %v2189
    %v2207 = vmul.f32 %v1901, %v2130
    %v2208 = vmul.f32 %v1904, %v2130
    %v2209 = vmul.f32 %v1909, %v2134
    %v2210 = vmul.f32 %v1912, %v2134
    %v2211 = vmul.f32 %v1917, %v2138
    %v2212 = vmul.f32 %v1920, %v2138
    %v2213 = vmul.f32 %v1925, %v2142
    %v2214 = vmul.f32 %v1928, %v2142
    %v2215 = vmul.f32 %v1933, %v2146
    %v2216 = vmul.f32 %v1936, %v2146
    %v2217 = vmul.f32 %v1941, %v2150
    %v2218 = vmul.f32 %v1944, %v2150
    %v2219 = vmul.f32 %v1949, %v2154
    %v2220 = vmul.f32 %v1952, %v2154
    %v2221 = vmul.f32 %v1957, %v2158
    %v2222 = vmul.f32 %v1960, %v2158
    %v2223 = vmul.f32 %v1965, %v2162
    %v2224 = vmul.f32 %v1968, %v2162
    %v2225 = vmul.f32 %v1973, %v2166
    %v2226 = vmul.f32 %v1976, %v2166
    %v2227 = vmul.f32 %v1981, %v2170
    %v2228 = vmul.f32 %v1984, %v2170
    %v2229 = vmul.f32 %v1989, %v2174
    %v2230 = vmul.f32 %v1992, %v2174
    %v2231 = vmul.f32 %v1997, %v2178
    %v2232 = vmul.f32 %v2000, %v2178
    %v2233 = vmul.f32 %v2005, %v2182
    %v2234 = vmul.f32 %v2008, %v2182
    %v2235 = vmul.f32 %v2013, %v2186
    %v2236 = vmul.f32 %v2016, %v2186
    %v2237 = vmul.f32 %v2021, %v2190
    %v2238 = vmul.f32 %v2024, %v2190
    %v2239 = vadd.f32 %v2207, %v2209
    %v2240 = vadd.f32 %v2239, %v2211
    %v2241 = vadd.f32 %v2240, %v2213
    %v2242 = vadd.f32 %v2241, %v2215
    %v2243 = vadd.f32 %v2242, %v2217
    %v2244 = vadd.f32 %v2243, %v2219
    %v2245 = vadd.f32 %v2244, %v2221
    %v2246 = vadd.f32 %v2245, %v2223
    %v2247 = vadd.f32 %v2246, %v2225
    %v2248 = vadd.f32 %v2247, %v2227
    %v2249 = vadd.f32 %v2248, %v2229
    %v2250 = vadd.f32 %v2249, %v2231
    %v2251 = vadd.f32 %v2250, %v2233
    %v2252 = vadd.f32 %v2251, %v2235
    %v2253 = vadd.f32 %v2252, %v2237
    %v2254 = vadd.f32 %v2208, %v2210
    %v2255 = vadd.f32 %v2254, %v2212
    %v2256 = vadd.f32 %v2255, %v2214
    %v2257 = vadd.f32 %v2256, %v2216
    %v2258 = vadd.f32 %v2257, %v2218
    %v2259 = vadd.f32 %v2258, %v2220
    %v2260 = vadd.f32 %v2259, %v2222
    %v2261 = vadd.f32 %v2260, %v2224
    %v2262 = vadd.f32 %v2261, %v2226
    %v2263 = vadd.f32 %v2262, %v2228
    %v2264 = vadd.f32 %v2263, %v2230
    %v2265 = vadd.f32 %v2264, %v2232
    %v2266 = vadd.f32 %v2265, %v2234
    %v2267 = vadd.f32 %v2266, %v2236
    %v2268 = vadd.f32 %v2267, %v2238
    %v2269 = vpack.c.bf16 %v2268, %v2253
    %v2286 = vunpack.c.l.b16 %v417
    %v2287 = vunpack.c.l.b16 %v418
    %v2288 = vunpack.c.l.b16 %v419
    %v2289 = vunpack.c.l.b16 %v420
    %v2290 = vunpack.c.l.b16 %v421
    %v2291 = vunpack.c.l.b16 %v422
    %v2292 = vunpack.c.l.b16 %v423
    %v2293 = vunpack.c.l.b16 %v424
    %v2294 = vunpack.c.l.b16 %v425
    %v2295 = vunpack.c.l.b16 %v426
    %v2296 = vunpack.c.l.b16 %v427
    %v2297 = vunpack.c.l.b16 %v428
    %v2298 = vunpack.c.l.b16 %v429
    %v2299 = vunpack.c.l.b16 %v430
    %v2300 = vunpack.c.l.b16 %v431
    %v2301 = vunpack.c.l.b16 %v432
    %v2302 = vpack.c.b16 %v2287, %v2286
    %v2303 = vpack.c.b16 %v2289, %v2288
    %v2304 = vpack.c.b16 %v2291, %v2290
    %v2305 = vpack.c.b16 %v2293, %v2292
    %v2306 = vpack.c.b16 %v2295, %v2294
    %v2307 = vpack.c.b16 %v2297, %v2296
    %v2308 = vpack.c.b16 %v2299, %v2298
    %v2309 = vpack.c.b16 %v2301, %v2300
    %2318 = vmatprep.subr.bf16.mxu0 0
    %2319 = vmatpush1.bf16.msra.mxu0 %v2302
    %2320 = vmatprep.subr.bf16.mxu0 0
    %2321 = vmatpush1.bf16.msra.mxu0 %v2303
    %2322 = vmatprep.subr.bf16.mxu0 0
    %2323 = vmatpush1.bf16.msra.mxu0 %v2304
    %2324 = vmatprep.subr.bf16.mxu0 0
    %2325 = vmatpush1.bf16.msra.mxu0 %v2305
    %2326 = vmatprep.subr.bf16.mxu0 0
    %2327 = vmatpush1.bf16.msra.mxu0 %v2306
    %2328 = vmatprep.subr.bf16.mxu0 0
    %2329 = vmatpush1.bf16.msra.mxu0 %v2307
    %2330 = vmatprep.subr.bf16.mxu0 0
    %2331 = vmatpush1.bf16.msra.mxu0 %v2308
    %2332 = vmatprep.subr.bf16.mxu0 0
    %2333 = vmatpush1.bf16.msra.mxu0 %v2309
    %2334 = vmatprep.subr.bf16.mxu0 0
    %2335 = vmatpush1.bf16.msra.mxu0 0
    %2336 = vmatprep.subr.bf16.mxu0 0
    %2337 = vmatpush1.bf16.msra.mxu0 0
    %2338 = vmatprep.subr.bf16.mxu0 0
    %2339 = vmatpush1.bf16.msra.mxu0 0
    %2340 = vmatprep.subr.bf16.mxu0 0
    %2341 = vmatpush1.bf16.msra.mxu0 0
    %2342 = vmatprep.subr.bf16.mxu0 0
    %2343 = vmatpush1.bf16.msra.mxu0 0
    %2344 = vmatprep.subr.bf16.mxu0 0
    %2345 = vmatpush1.bf16.msra.mxu0 0
    %2346 = vmatprep.subr.bf16.mxu0 0
    %2347 = vmatpush1.bf16.msra.mxu0 0
    %2348 = vmatprep.subr.bf16.mxu0 0
    %2349 = vmatpush1.bf16.msra.mxu0 0
    %2350 = vmatprep.mubr.bf16.mxu0 0
    %2351 = vmatmul.mubr.bf16.gmra.mrb[0].mxu0 %v2269
    %v2352 = vpop.f32.mrb[0].mxu0
    %v2353 = vadd.f32 0.0, %v2352
    %v2354 = vpop.f32.mrb[0].mxu0
    %v2355 = vpop.f32.mrb[0].mxu0
    %v2356 = vadd.f32 0.0, %v2355
    %v2357 = vpop.f32.mrb[0].mxu0
    %2358 = vdwg.mxu0
    %v2359 = vsel %vm531, %v2353, 0.0
    %v2360 = vsel %vm531, %v2356, 0.0
    %v2361 = vadd.f32 %v2359, %v2360
    %v2362 = vrot.slane %v2361, 4
    %v2363 = vadd.f32 %v2361, %v2362
    %v2364 = vrot.slane %v2363, 2
    %v2365 = vadd.f32 %v2363, %v2364
    %v2366 = vrot.slane %v2365, 1
    %v2367 = vadd.f32 %v2365, %v2366
    %v2368 = vrcp.pop 16.0
    %v2369 = vmul.f32 %v2367, %v2368
    %v2370 = vsub.f32 %v2353, %v2369
    %v2371 = vsub.f32 %v2356, %v2369
    %v2372 = vmul.f32 %v2370, %v2370
    %v2373 = vmul.f32 %v2371, %v2371
    %v2374 = vsel %vm531, %v2372, 0.0
    %v2375 = vsel %vm531, %v2373, 0.0
    %v2376 = vadd.f32 %v2374, %v2375
    %v2377 = vrot.slane %v2376, 4
    %v2378 = vadd.f32 %v2376, %v2377
    %v2379 = vrot.slane %v2378, 2
    %v2380 = vadd.f32 %v2378, %v2379
    %v2381 = vrot.slane %v2380, 1
    %v2382 = vadd.f32 %v2380, %v2381
    %v2383 = vmul.f32 %v2382, %v2368
    %v2384 = vadd.f32 %v2383, 1e-05
    %v2385 = vrsqrt.pop %v2384
    %v2386 = vmul.f32 %v2370, %v2385
    %v2387 = vmul.f32 %v2371, %v2385
    %v2389 = vlaneseq
    %v2390 = vshrl.u32 %v2389, 7
    %v2391 = vsub.s32 0, %v2390
    %v2392 = vrot.slane %v496, %v2391
    %v2394 = vmul.f32 %v2386, %v2392
    %v2395 = vmul.f32 %v2387, %v2392
    %v2397 = vlaneseq
    %v2398 = vshrl.u32 %v2397, 7
    %v2399 = vsub.s32 0, %v2398
    %v2400 = vrot.slane %v497, %v2399
    %v2402 = vadd.f32 %v2394, %v2400
    %v2403 = vadd.f32 %v2395, %v2400
    %v2404 = vld [vmem:[%s11] sm:$0xff]
    %v2405 = vld [vmem:[%s11 + $0x8] sm:$0xf]
    %v2406 = vld [vmem:[%s11 + $0xc] sm:$0xff]
    %v2407 = vld [vmem:[%s11 + $0x14] sm:$0xf]
    %v2408 = vld [vmem:[%s11 + $0x18] sm:$0xff]
    %v2409 = vld [vmem:[%s11 + $0x20] sm:$0xf]
    %v2410 = vld [vmem:[%s11 + $0x24] sm:$0xff]
    %v2411 = vld [vmem:[%s11 + $0x2c] sm:$0xf]
    %v2412 = vld [vmem:[%s12] sm:$0xf]
    %v2413 = vld [vmem:[%s12 + $0x4] sm:$0xf]
    %v2414 = vld [vmem:[%s12 + $0x8] sm:$0xf]
    %v2415 = vld [vmem:[%s12 + $0xc] sm:$0xf]
    %v2416 = vld [vmem:[%s13] sm:$0x1]
    %v2417 = vld [vmem:[%s14] sm:$0xf]
    %v2418 = vld [vmem:[%s14 + $0x4] sm:$0xf]
    %v2419 = vld [vmem:[%s14 + $0x8] sm:$0xf]
    %v2420 = vld [vmem:[%s14 + $0xc] sm:$0xf]
    %v2421 = vld [vmem:[%s14 + $0x10] sm:$0xf]
    %v2422 = vld [vmem:[%s14 + $0x14] sm:$0xf]
    %v2423 = vld [vmem:[%s14 + $0x18] sm:$0xf]
    %v2424 = vld [vmem:[%s14 + $0x1c] sm:$0xf]
    %v2425 = vld [vmem:[%s14 + $0x20] sm:$0xf]
    %v2426 = vld [vmem:[%s14 + $0x24] sm:$0xf]
    %v2427 = vld [vmem:[%s14 + $0x28] sm:$0xf]
    %v2428 = vld [vmem:[%s14 + $0x2c] sm:$0xf]
    %v2429 = vld [vmem:[%s14 + $0x30] sm:$0xf]
    %v2430 = vld [vmem:[%s14 + $0x34] sm:$0xf]
    %v2431 = vld [vmem:[%s14 + $0x38] sm:$0xf]
    %v2432 = vld [vmem:[%s14 + $0x3c] sm:$0xf]
    %v2433 = vld [vmem:[%s15] sm:$0x1]
    %v2434 = vld [vmem:[%s16] sm:$0x1]
    %v2435 = vpack.c.bf16 %v2403, %v2402
    %v2444 = vunpack.c.l.b16 %v2404
    %v2445 = vunpack.c.h.b16 %v2404
    %v2446 = vunpack.c.l.b16 %v2405
    %v2447 = vunpack.c.l.b16 %v2406
    %v2448 = vunpack.c.h.b16 %v2406
    %v2449 = vunpack.c.l.b16 %v2407
    %v2450 = vunpack.c.l.b16 %v2408
    %v2451 = vunpack.c.h.b16 %v2408
    %v2452 = vunpack.c.l.b16 %v2409
    %v2453 = vunpack.c.l.b16 %v2410
    %v2454 = vunpack.c.h.b16 %v2410
    %v2455 = vunpack.c.l.b16 %v2411
    %v2456 = vpack.c.b16 %v2447, %v2444
    %v2457 = vpack.c.b16 %v2448, %v2445
    %v2458 = vpack.c.b16 %v2449, %v2446
    %v2459 = vpack.c.b16 %v2453, %v2450
    %v2460 = vpack.c.b16 %v2454, %v2451
    %v2461 = vpack.c.b16 %v2455, %v2452
    %v2469 = vsel %vm531, %v2435, 0
    %2471 = vmatprep.subr.bf16.mxu0 %v2457
    %2472 = vmatpush1.bf16.msra.mxu0 %v2456
    %2473 = vmatprep.subr.bf16.mxu0 %v2460
    %2474 = vmatpush1.bf16.msra.mxu0 %v2459
    %2475 = vmatprep.subr.bf16.mxu0 0
    %2476 = vmatpush1.bf16.msra.mxu0 0
    %2477 = vmatprep.subr.bf16.mxu0 0
    %2478 = vmatpush1.bf16.msra.mxu0 0
    %2479 = vmatprep.subr.bf16.mxu0 0
    %2480 = vmatpush1.bf16.msra.mxu0 0
    %2481 = vmatprep.subr.bf16.mxu0 0
    %2482 = vmatpush1.bf16.msra.mxu0 0
    %2483 = vmatprep.subr.bf16.mxu0 0
    %2484 = vmatpush1.bf16.msra.mxu0 0
    %2485 = vmatprep.subr.bf16.mxu0 0
    %2486 = vmatpush1.bf16.msra.mxu0 0
    %2487 = vmatprep.subr.bf16.mxu0 0
    %2488 = vmatpush1.bf16.msra.mxu0 0
    %2489 = vmatprep.subr.bf16.mxu0 0
    %2490 = vmatpush1.bf16.msra.mxu0 0
    %2491 = vmatprep.subr.bf16.mxu0 0
    %2492 = vmatpush1.bf16.msra.mxu0 0
    %2493 = vmatprep.subr.bf16.mxu0 0
    %2494 = vmatpush1.bf16.msra.mxu0 0
    %2495 = vmatprep.subr.bf16.mxu0 0
    %2496 = vmatpush1.bf16.msra.mxu0 0
    %2497 = vmatprep.subr.bf16.mxu0 0
    %2498 = vmatpush1.bf16.msra.mxu0 0
    %2499 = vmatprep.subr.bf16.mxu0 0
    %2500 = vmatpush1.bf16.msra.mxu0 0
    %2501 = vmatprep.subr.bf16.mxu0 0
    %2502 = vmatpush1.bf16.msra.mxu0 0
    %2503 = vmatprep.mubr.bf16.mxu0 0
    %2504 = vmatmul.mubr.bf16.gmra.mrb[0].mxu0 %v2469
    %v2505 = vpop.f32.mrb[0].mxu0
    %v2506 = vadd.f32 0.0, %v2505
    %v2507 = vpop.f32.mrb[0].mxu0
    %v2508 = vadd.f32 0.0, %v2507
    %v2509 = vpop.f32.mrb[0].mxu0
    %v2510 = vadd.f32 0.0, %v2509
    %v2511 = vpop.f32.mrb[0].mxu0
    %v2512 = vadd.f32 0.0, %v2511
    %2513 = vdwg.mxu0
    %2514 = vmatprep.subr.bf16.mxu0 0
    %2515 = vmatpush1.bf16.msra.mxu0 %v2458
    %2516 = vmatprep.subr.bf16.mxu0 0
    %2517 = vmatpush1.bf16.msra.mxu0 %v2461
    %2518 = vmatprep.subr.bf16.mxu0 0
    %2519 = vmatpush1.bf16.msra.mxu0 0
    %2520 = vmatprep.subr.bf16.mxu0 0
    %2521 = vmatpush1.bf16.msra.mxu0 0
    %2522 = vmatprep.subr.bf16.mxu0 0
    %2523 = vmatpush1.bf16.msra.mxu0 0
    %2524 = vmatprep.subr.bf16.mxu0 0
    %2525 = vmatpush1.bf16.msra.mxu0 0
    %2526 = vmatprep.subr.bf16.mxu0 0
    %2527 = vmatpush1.bf16.msra.mxu0 0
    %2528 = vmatprep.subr.bf16.mxu0 0
    %2529 = vmatpush1.bf16.msra.mxu0 0
    %2530 = vmatprep.subr.bf16.mxu0 0
    %2531 = vmatpush1.bf16.msra.mxu0 0
    %2532 = vmatprep.subr.bf16.mxu0 0
    %2533 = vmatpush1.bf16.msra.mxu0 0
    %2534 = vmatprep.subr.bf16.mxu0 0
    %2535 = vmatpush1.bf16.msra.mxu0 0
    %2536 = vmatprep.subr.bf16.mxu0 0
    %2537 = vmatpush1.bf16.msra.mxu0 0
    %2538 = vmatprep.subr.bf16.mxu0 0
    %2539 = vmatpush1.bf16.msra.mxu0 0
    %2540 = vmatprep.subr.bf16.mxu0 0
    %2541 = vmatpush1.bf16.msra.mxu0 0
    %2542 = vmatprep.subr.bf16.mxu0 0
    %2543 = vmatpush1.bf16.msra.mxu0 0
    %2544 = vmatprep.subr.bf16.mxu0 0
    %2545 = vmatpush1.bf16.msra.mxu0 0
    %2546 = vmatprep.mubr.bf16.mxu0 0
    %2547 = vmatmul.mubr.bf16.gmra.mrb[0].mxu0 %v2469
    %v2548 = vpop.f32.mrb[0].mxu0
    %v2549 = vadd.f32 0.0, %v2548
    %v2550 = vpop.f32.mrb[0].mxu0
    %v2551 = vpop.f32.mrb[0].mxu0
    %v2552 = vadd.f32 0.0, %v2551
    %v2553 = vpop.f32.mrb[0].mxu0
    %2554 = vdwg.mxu0
    %v2556 = vlaneseq
    %v2557 = vshrl.u32 %v2556, 7
    %v2558 = vsub.s32 0, %v2557
    %v2559 = vrot.slane %v2416, %v2558
    %v2561 = vadd.f32 %v2506, %v2559
    %v2562 = vadd.f32 %v2510, %v2559
    %2579 = vrot.lane.b32.xlu0 %v1461, 124
    %v2580 = vpop.permute.xlu0 %2579
    %2581 = vrot.lane.b32.xlu0 %v1462, 124
    %v2582 = vpop.permute.xlu0 %2581
    %2583 = vrot.lane.b32.xlu0 %v1463, 124
    %v2584 = vpop.permute.xlu0 %2583
    %2585 = vrot.lane.b32.xlu0 %v1464, 124
    %v2586 = vpop.permute.xlu0 %2585
    %2587 = vrot.lane.b32.xlu0 %v1465, 124
    %v2588 = vpop.permute.xlu0 %2587
    %2589 = vrot.lane.b32.xlu0 %v1466, 124
    %v2590 = vpop.permute.xlu0 %2589
    %2591 = vrot.lane.b32.xlu0 %v1467, 124
    %v2592 = vpop.permute.xlu0 %2591
    %2593 = vrot.lane.b32.xlu0 %v1468, 124
    %v2594 = vpop.permute.xlu0 %2593
    %2595 = vrot.lane.b32.xlu0 %v1469, 124
    %v2596 = vpop.permute.xlu0 %2595
    %2597 = vrot.lane.b32.xlu0 %v1470, 124
    %v2598 = vpop.permute.xlu0 %2597
    %2599 = vrot.lane.b32.xlu0 %v1471, 124
    %v2600 = vpop.permute.xlu0 %2599
    %2601 = vrot.lane.b32.xlu0 %v1472, 124
    %v2602 = vpop.permute.xlu0 %2601
    %2603 = vrot.lane.b32.xlu0 %v1473, 124
    %v2604 = vpop.permute.xlu0 %2603
    %2605 = vrot.lane.b32.xlu0 %v1474, 124
    %v2606 = vpop.permute.xlu0 %2605
    %2607 = vrot.lane.b32.xlu0 %v1475, 124
    %v2608 = vpop.permute.xlu0 %2607
    %2609 = vrot.lane.b32.xlu0 %v1476, 124
    %v2610 = vpop.permute.xlu0 %2609
    %v2615 = vunpack.c.l.b16 %v2412
    %v2616 = vunpack.c.l.b16 %v2413
    %v2617 = vunpack.c.l.b16 %v2414
    %v2618 = vunpack.c.l.b16 %v2415
    %v2619 = vpack.c.b16 %v2616, %v2615
    %v2620 = vpack.c.b16 %v2618, %v2617
    %v2624 = vsel %vm531, %v2580, 0
    %v2627 = vsel %vm531, %v2582, 0
    %v2630 = vsel %vm531, %v2584, 0
    %v2633 = vsel %vm531, %v2586, 0
    %v2636 = vsel %vm531, %v2588, 0
    %v2639 = vsel %vm531, %v2590, 0
    %v2642 = vsel %vm531, %v2592, 0
    %v2645 = vsel %vm531, %v2594, 0
    %v2648 = vsel %vm531, %v2596, 0
    %v2651 = vsel %vm531, %v2598, 0
    %v2654 = vsel %vm531, %v2600, 0
    %v2657 = vsel %vm531, %v2602, 0
    %v2660 = vsel %vm531, %v2604, 0
    %v2663 = vsel %vm531, %v2606, 0
    %v2666 = vsel %vm531, %v2608, 0
    %v2669 = vsel %vm531, %v2610, 0
    %2671 = vmatprep.subr.bf16.mxu0 0
    %2672 = vmatpush1.bf16.msra.mxu0 %v2619
    %2673 = vmatprep.subr.bf16.mxu0 0
    %2674 = vmatpush1.bf16.msra.mxu0 %v2620
    %2675 = vmatprep.subr.bf16.mxu0 0
    %2676 = vmatpush1.bf16.msra.mxu0 0
    %2677 = vmatprep.subr.bf16.mxu0 0
    %2678 = vmatpush1.bf16.msra.mxu0 0
    %2679 = vmatprep.subr.bf16.mxu0 0
    %2680 = vmatpush1.bf16.msra.mxu0 0
    %2681 = vmatprep.subr.bf16.mxu0 0
    %2682 = vmatpush1.bf16.msra.mxu0 0
    %2683 = vmatprep.subr.bf16.mxu0 0
    %2684 = vmatpush1.bf16.msra.mxu0 0
    %2685 = vmatprep.subr.bf16.mxu0 0
    %2686 = vmatpush1.bf16.msra.mxu0 0
    %2687 = vmatprep.subr.bf16.mxu0 0
    %2688 = vmatpush1.bf16.msra.mxu0 0
    %2689 = vmatprep.subr.bf16.mxu0 0
    %2690 = vmatpush1.bf16.msra.mxu0 0
    %2691 = vmatprep.subr.bf16.mxu0 0
    %2692 = vmatpush1.bf16.msra.mxu0 0
    %2693 = vmatprep.subr.bf16.mxu0 0
    %2694 = vmatpush1.bf16.msra.mxu0 0
    %2695 = vmatprep.subr.bf16.mxu0 0
    %2696 = vmatpush1.bf16.msra.mxu0 0
    %2697 = vmatprep.subr.bf16.mxu0 0
    %2698 = vmatpush1.bf16.msra.mxu0 0
    %2699 = vmatprep.subr.bf16.mxu0 0
    %2700 = vmatpush1.bf16.msra.mxu0 0
    %2701 = vmatprep.subr.bf16.mxu0 0
    %2702 = vmatpush1.bf16.msra.mxu0 0
    %2703 = vmatprep.mubr.bf16.mxu0 0
    %2704 = vmatmul.mubr.bf16.gmra.mrb[0].mxu0 %v2624
    %v2705 = vpop.f32.mrb[0].mxu0
    %v2706 = vadd.f32 0.0, %v2705
    %v2707 = vpop.f32.mrb[0].mxu0
    %v2708 = vpop.f32.mrb[0].mxu0
    %v2709 = vadd.f32 0.0, %v2708
    %v2710 = vpop.f32.mrb[0].mxu0
    %2711 = vmatprep.mubr.bf16.mxu0 0
    %2712 = vmatmul.mubr.bf16.gmra.mrb[0].mxu0 %v2627
    %v2713 = vpop.f32.mrb[0].mxu0
    %v2714 = vadd.f32 0.0, %v2713
    %v2715 = vpop.f32.mrb[0].mxu0
    %v2716 = vpop.f32.mrb[0].mxu0
    %v2717 = vadd.f32 0.0, %v2716
    %v2718 = vpop.f32.mrb[0].mxu0
    %2719 = vmatprep.mubr.bf16.mxu0 0
    %2720 = vmatmul.mubr.bf16.gmra.mrb[0].mxu0 %v2630
    %v2721 = vpop.f32.mrb[0].mxu0
    %v2722 = vadd.f32 0.0, %v2721
    %v2723 = vpop.f32.mrb[0].mxu0
    %v2724 = vpop.f32.mrb[0].mxu0
    %v2725 = vadd.f32 0.0, %v2724
    %v2726 = vpop.f32.mrb[0].mxu0
    %2727 = vmatprep.mubr.bf16.mxu0 0
    %2728 = vmatmul.mubr.bf16.gmra.mrb[0].mxu0 %v2633
    %v2729 = vpop.f32.mrb[0].mxu0
    %v2730 = vadd.f32 0.0, %v2729
    %v2731 = vpop.f32.mrb[0].mxu0
    %v2732 = vpop.f32.mrb[0].mxu0
    %v2733 = vadd.f32 0.0, %v2732
    %v2734 = vpop.f32.mrb[0].mxu0
    %2735 = vmatprep.mubr.bf16.mxu0 0
    %2736 = vmatmul.mubr.bf16.gmra.mrb[0].mxu0 %v2636
    %v2737 = vpop.f32.mrb[0].mxu0
    %v2738 = vadd.f32 0.0, %v2737
    %v2739 = vpop.f32.mrb[0].mxu0
    %v2740 = vpop.f32.mrb[0].mxu0
    %v2741 = vadd.f32 0.0, %v2740
    %v2742 = vpop.f32.mrb[0].mxu0
    %2743 = vmatprep.mubr.bf16.mxu0 0
    %2744 = vmatmul.mubr.bf16.gmra.mrb[0].mxu0 %v2639
    %v2745 = vpop.f32.mrb[0].mxu0
    %v2746 = vadd.f32 0.0, %v2745
    %v2747 = vpop.f32.mrb[0].mxu0
    %v2748 = vpop.f32.mrb[0].mxu0
    %v2749 = vadd.f32 0.0, %v2748
    %v2750 = vpop.f32.mrb[0].mxu0
    %2751 = vmatprep.mubr.bf16.mxu0 0
    %2752 = vmatmul.mubr.bf16.gmra.mrb[0].mxu0 %v2642
    %v2753 = vpop.f32.mrb[0].mxu0
    %v2754 = vadd.f32 0.0, %v2753
    %v2755 = vpop.f32.mrb[0].mxu0
    %v2756 = vpop.f32.mrb[0].mxu0
    %v2757 = vadd.f32 0.0, %v2756
    %v2758 = vpop.f32.mrb[0].mxu0
    %2759 = vmatprep.mubr.bf16.mxu0 0
    %2760 = vmatmul.mubr.bf16.gmra.mrb[0].mxu0 %v2645
    %v2761 = vpop.f32.mrb[0].mxu0
    %v2762 = vadd.f32 0.0, %v2761
    %v2763 = vpop.f32.mrb[0].mxu0
    %v2764 = vpop.f32.mrb[0].mxu0
    %v2765 = vadd.f32 0.0, %v2764
    %v2766 = vpop.f32.mrb[0].mxu0
    %2767 = vmatprep.mubr.bf16.mxu0 0
    %2768 = vmatmul.mubr.bf16.gmra.mrb[0].mxu0 %v2648
    %v2769 = vpop.f32.mrb[0].mxu0
    %v2770 = vadd.f32 0.0, %v2769
    %v2771 = vpop.f32.mrb[0].mxu0
    %v2772 = vpop.f32.mrb[0].mxu0
    %v2773 = vadd.f32 0.0, %v2772
    %v2774 = vpop.f32.mrb[0].mxu0
    %2775 = vmatprep.mubr.bf16.mxu0 0
    %2776 = vmatmul.mubr.bf16.gmra.mrb[0].mxu0 %v2651
    %v2777 = vpop.f32.mrb[0].mxu0
    %v2778 = vadd.f32 0.0, %v2777
    %v2779 = vpop.f32.mrb[0].mxu0
    %v2780 = vpop.f32.mrb[0].mxu0
    %v2781 = vadd.f32 0.0, %v2780
    %v2782 = vpop.f32.mrb[0].mxu0
    %2783 = vmatprep.mubr.bf16.mxu0 0
    %2784 = vmatmul.mubr.bf16.gmra.mrb[0].mxu0 %v2654
    %v2785 = vpop.f32.mrb[0].mxu0
    %v2786 = vadd.f32 0.0, %v2785
    %v2787 = vpop.f32.mrb[0].mxu0
    %v2788 = vpop.f32.mrb[0].mxu0
    %v2789 = vadd.f32 0.0, %v2788
    %v2790 = vpop.f32.mrb[0].mxu0
    %2791 = vmatprep.mubr.bf16.mxu0 0
    %2792 = vmatmul.mubr.bf16.gmra.mrb[0].mxu0 %v2657
    %v2793 = vpop.f32.mrb[0].mxu0
    %v2794 = vadd.f32 0.0, %v2793
    %v2795 = vpop.f32.mrb[0].mxu0
    %v2796 = vpop.f32.mrb[0].mxu0
    %v2797 = vadd.f32 0.0, %v2796
    %v2798 = vpop.f32.mrb[0].mxu0
    %2799 = vmatprep.mubr.bf16.mxu0 0
    %2800 = vmatmul.mubr.bf16.gmra.mrb[0].mxu0 %v2660
    %v2801 = vpop.f32.mrb[0].mxu0
    %v2802 = vadd.f32 0.0, %v2801
    %v2803 = vpop.f32.mrb[0].mxu0
    %v2804 = vpop.f32.mrb[0].mxu0
    %v2805 = vadd.f32 0.0, %v2804
    %v2806 = vpop.f32.mrb[0].mxu0
    %2807 = vmatprep.mubr.bf16.mxu0 0
    %2808 = vmatmul.mubr.bf16.gmra.mrb[0].mxu0 %v2663
    %v2809 = vpop.f32.mrb[0].mxu0
    %v2810 = vadd.f32 0.0, %v2809
    %v2811 = vpop.f32.mrb[0].mxu0
    %v2812 = vpop.f32.mrb[0].mxu0
    %v2813 = vadd.f32 0.0, %v2812
    %v2814 = vpop.f32.mrb[0].mxu0
    %2815 = vmatprep.mubr.bf16.mxu0 0
    %2816 = vmatmul.mubr.bf16.gmra.mrb[0].mxu0 %v2666
    %v2817 = vpop.f32.mrb[0].mxu0
    %v2818 = vadd.f32 0.0, %v2817
    %v2819 = vpop.f32.mrb[0].mxu0
    %v2820 = vpop.f32.mrb[0].mxu0
    %v2821 = vadd.f32 0.0, %v2820
    %v2822 = vpop.f32.mrb[0].mxu0
    %2823 = vmatprep.mubr.bf16.mxu0 0
    %2824 = vmatmul.mubr.bf16.gmra.mrb[0].mxu0 %v2669
    %v2825 = vpop.f32.mrb[0].mxu0
    %v2826 = vadd.f32 0.0, %v2825
    %v2827 = vpop.f32.mrb[0].mxu0
    %v2828 = vpop.f32.mrb[0].mxu0
    %v2829 = vadd.f32 0.0, %v2828
    %v2830 = vpop.f32.mrb[0].mxu0
    %2831 = vdwg.mxu0
    %v2834 = vcombine.high %v2561, %v2561
    %v2836 = vunpack.c.l.s4 1966171168
    %v2837 = vunpack.c.0.s8 %v2836
    %v2838 = vlaneseq
    %v2839 = vshrl.u32 %v2838, 7
    %v2840 = vsub.s32 %v2837, %v2839
    %v2841 = vrot.slane %v2561, %v2840
    %v2843 = vunpack.c.l.s4 1966171168
    %v2844 = vunpack.c.0.s8 %v2843
    %v2845 = vlaneseq
    %v2846 = vshrl.u32 %v2845, 7
    %v2847 = vsub.s32 %v2844, %v2846
    %v2848 = vrot.slane %v2834, %v2847
    %v2849 = vcombine.high %v2841, %v2841
    %v2850 = vcombine.high %v2848, %v2848
    %v2852 = vunpack.c.l.s4 1966171168
    %v2853 = vunpack.c.0.s8 %v2852
    %v2854 = vlaneseq
    %v2855 = vshrl.u32 %v2854, 7
    %v2856 = vsub.s32 %v2853, %v2855
    %v2857 = vrot.slane %v2841, %v2856
    %v2859 = vunpack.c.l.s4 1966171168
    %v2860 = vunpack.c.0.s8 %v2859
    %v2861 = vlaneseq
    %v2862 = vshrl.u32 %v2861, 7
    %v2863 = vsub.s32 %v2860, %v2862
    %v2864 = vrot.slane %v2848, %v2863
    %v2866 = vunpack.c.l.s4 1966171168
    %v2867 = vunpack.c.0.s8 %v2866
    %v2868 = vlaneseq
    %v2869 = vshrl.u32 %v2868, 7
    %v2870 = vsub.s32 %v2867, %v2869
    %v2871 = vrot.slane %v2849, %v2870
    %v2873 = vunpack.c.l.s4 1966171168
    %v2874 = vunpack.c.0.s8 %v2873
    %v2875 = vlaneseq
    %v2876 = vshrl.u32 %v2875, 7
    %v2877 = vsub.s32 %v2874, %v2876
    %v2878 = vrot.slane %v2850, %v2877
    %v2879 = vcombine.high %v2857, %v2857
    %v2880 = vcombine.high %v2864, %v2864
    %v2881 = vcombine.high %v2871, %v2871
    %v2882 = vcombine.high %v2878, %v2878
    %v2883 = vcombine.high %v2562, %v2562
    %v2885 = vunpack.c.l.s4 1966171168
    %v2886 = vunpack.c.0.s8 %v2885
    %v2887 = vlaneseq
    %v2888 = vshrl.u32 %v2887, 7
    %v2889 = vsub.s32 %v2886, %v2888
    %v2890 = vrot.slane %v2562, %v2889
    %v2892 = vunpack.c.l.s4 1966171168
    %v2893 = vunpack.c.0.s8 %v2892
    %v2894 = vlaneseq
    %v2895 = vshrl.u32 %v2894, 7
    %v2896 = vsub.s32 %v2893, %v2895
    %v2897 = vrot.slane %v2883, %v2896
    %v2898 = vcombine.high %v2890, %v2890
    %v2899 = vcombine.high %v2897, %v2897
    %v2901 = vunpack.c.l.s4 1966171168
    %v2902 = vunpack.c.0.s8 %v2901
    %v2903 = vlaneseq
    %v2904 = vshrl.u32 %v2903, 7
    %v2905 = vsub.s32 %v2902, %v2904
    %v2906 = vrot.slane %v2890, %v2905
    %v2908 = vunpack.c.l.s4 1966171168
    %v2909 = vunpack.c.0.s8 %v2908
    %v2910 = vlaneseq
    %v2911 = vshrl.u32 %v2910, 7
    %v2912 = vsub.s32 %v2909, %v2911
    %v2913 = vrot.slane %v2897, %v2912
    %v2915 = vunpack.c.l.s4 1966171168
    %v2916 = vunpack.c.0.s8 %v2915
    %v2917 = vlaneseq
    %v2918 = vshrl.u32 %v2917, 7
    %v2919 = vsub.s32 %v2916, %v2918
    %v2920 = vrot.slane %v2898, %v2919
    %v2922 = vunpack.c.l.s4 1966171168
    %v2923 = vunpack.c.0.s8 %v2922
    %v2924 = vlaneseq
    %v2925 = vshrl.u32 %v2924, 7
    %v2926 = vsub.s32 %v2923, %v2925
    %v2927 = vrot.slane %v2899, %v2926
    %v2928 = vcombine.high %v2906, %v2906
    %v2929 = vcombine.high %v2913, %v2913
    %v2930 = vcombine.high %v2920, %v2920
    %v2931 = vcombine.high %v2927, %v2927
    %v2932 = vlaneseq
    %v2933 = vshrl.u32 %v2932, 7
    %v2934 = vsub.s32 0, %v2933
    %v2935 = vrot.slane %v2857, %v2934
    %v2936 = vlaneseq
    %v2937 = vshrl.u32 %v2936, 7
    %v2938 = vsub.s32 0, %v2937
    %v2939 = vrot.slane %v2871, %v2938
    %v2940 = vlaneseq
    %v2941 = vshrl.u32 %v2940, 7
    %v2942 = vsub.s32 0, %v2941
    %v2943 = vrot.slane %v2879, %v2942
    %v2944 = vlaneseq
    %v2945 = vshrl.u32 %v2944, 7
    %v2946 = vsub.s32 0, %v2945
    %v2947 = vrot.slane %v2881, %v2946
    %v2948 = vlaneseq
    %v2949 = vshrl.u32 %v2948, 7
    %v2950 = vsub.s32 0, %v2949
    %v2951 = vrot.slane %v2864, %v2950
    %v2952 = vlaneseq
    %v2953 = vshrl.u32 %v2952, 7
    %v2954 = vsub.s32 0, %v2953
    %v2955 = vrot.slane %v2878, %v2954
    %v2956 = vlaneseq
    %v2957 = vshrl.u32 %v2956, 7
    %v2958 = vsub.s32 0, %v2957
    %v2959 = vrot.slane %v2880, %v2958
    %v2960 = vlaneseq
    %v2961 = vshrl.u32 %v2960, 7
    %v2962 = vsub.s32 0, %v2961
    %v2963 = vrot.slane %v2882, %v2962
    %v2964 = vlaneseq
    %v2965 = vshrl.u32 %v2964, 7
    %v2966 = vsub.s32 0, %v2965
    %v2967 = vrot.slane %v2906, %v2966
    %v2968 = vlaneseq
    %v2969 = vshrl.u32 %v2968, 7
    %v2970 = vsub.s32 0, %v2969
    %v2971 = vrot.slane %v2920, %v2970
    %v2972 = vlaneseq
    %v2973 = vshrl.u32 %v2972, 7
    %v2974 = vsub.s32 0, %v2973
    %v2975 = vrot.slane %v2928, %v2974
    %v2976 = vlaneseq
    %v2977 = vshrl.u32 %v2976, 7
    %v2978 = vsub.s32 0, %v2977
    %v2979 = vrot.slane %v2930, %v2978
    %v2980 = vlaneseq
    %v2981 = vshrl.u32 %v2980, 7
    %v2982 = vsub.s32 0, %v2981
    %v2983 = vrot.slane %v2913, %v2982
    %v2984 = vlaneseq
    %v2985 = vshrl.u32 %v2984, 7
    %v2986 = vsub.s32 0, %v2985
    %v2987 = vrot.slane %v2927, %v2986
    %v2988 = vlaneseq
    %v2989 = vshrl.u32 %v2988, 7
    %v2990 = vsub.s32 0, %v2989
    %v2991 = vrot.slane %v2929, %v2990
    %v2992 = vlaneseq
    %v2993 = vshrl.u32 %v2992, 7
    %v2994 = vsub.s32 0, %v2993
    %v2995 = vrot.slane %v2931, %v2994
    %v3012 = vadd.f32 %v2935, %v2508
    %v3013 = vadd.f32 %v2935, %v2512
    %v3014 = vadd.f32 %v2939, %v2508
    %v3015 = vadd.f32 %v2939, %v2512
    %v3016 = vadd.f32 %v2943, %v2508
    %v3017 = vadd.f32 %v2943, %v2512
    %v3018 = vadd.f32 %v2947, %v2508
    %v3019 = vadd.f32 %v2947, %v2512
    %v3020 = vadd.f32 %v2951, %v2508
    %v3021 = vadd.f32 %v2951, %v2512
    %v3022 = vadd.f32 %v2955, %v2508
    %v3023 = vadd.f32 %v2955, %v2512
    %v3024 = vadd.f32 %v2959, %v2508
    %v3025 = vadd.f32 %v2959, %v2512
    %v3026 = vadd.f32 %v2963, %v2508
    %v3027 = vadd.f32 %v2963, %v2512
    %v3028 = vadd.f32 %v2967, %v2508
    %v3029 = vadd.f32 %v2967, %v2512
    %v3030 = vadd.f32 %v2971, %v2508
    %v3031 = vadd.f32 %v2971, %v2512
    %v3032 = vadd.f32 %v2975, %v2508
    %v3033 = vadd.f32 %v2975, %v2512
    %v3034 = vadd.f32 %v2979, %v2508
    %v3035 = vadd.f32 %v2979, %v2512
    %v3036 = vadd.f32 %v2983, %v2508
    %v3037 = vadd.f32 %v2983, %v2512
    %v3038 = vadd.f32 %v2987, %v2508
    %v3039 = vadd.f32 %v2987, %v2512
    %v3040 = vadd.f32 %v2991, %v2508
    %v3041 = vadd.f32 %v2991, %v2512
    %v3042 = vadd.f32 %v2995, %v2508
    %v3043 = vadd.f32 %v2995, %v2512
    %v3044 = vadd.f32 %v3012, %v2706
    %v3045 = vadd.f32 %v3013, %v2709
    %v3046 = vadd.f32 %v3014, %v2714
    %v3047 = vadd.f32 %v3015, %v2717
    %v3048 = vadd.f32 %v3016, %v2722
    %v3049 = vadd.f32 %v3017, %v2725
    %v3050 = vadd.f32 %v3018, %v2730
    %v3051 = vadd.f32 %v3019, %v2733
    %v3052 = vadd.f32 %v3020, %v2738
    %v3053 = vadd.f32 %v3021, %v2741
    %v3054 = vadd.f32 %v3022, %v2746
    %v3055 = vadd.f32 %v3023, %v2749
    %v3056 = vadd.f32 %v3024, %v2754
    %v3057 = vadd.f32 %v3025, %v2757
    %v3058 = vadd.f32 %v3026, %v2762
    %v3059 = vadd.f32 %v3027, %v2765
    %v3060 = vadd.f32 %v3028, %v2770
    %v3061 = vadd.f32 %v3029, %v2773
    %v3062 = vadd.f32 %v3030, %v2778
    %v3063 = vadd.f32 %v3031, %v2781
    %v3064 = vadd.f32 %v3032, %v2786
    %v3065 = vadd.f32 %v3033, %v2789
    %v3066 = vadd.f32 %v3034, %v2794
    %v3067 = vadd.f32 %v3035, %v2797
    %v3068 = vadd.f32 %v3036, %v2802
    %v3069 = vadd.f32 %v3037, %v2805
    %v3070 = vadd.f32 %v3038, %v2810
    %v3071 = vadd.f32 %v3039, %v2813
    %v3072 = vadd.f32 %v3040, %v2818
    %v3073 = vadd.f32 %v3041, %v2821
    %v3074 = vadd.f32 %v3042, %v2826
    %v3075 = vadd.f32 %v3043, %v2829
    %v3076 = vmul.f32 %v3044, 0.01
    %v3077 = vmul.f32 %v3045, 0.01
    %v3078 = vmul.f32 %v3046, 0.01
    %v3079 = vmul.f32 %v3047, 0.01
    %v3080 = vmul.f32 %v3048, 0.01
    %v3081 = vmul.f32 %v3049, 0.01
    %v3082 = vmul.f32 %v3050, 0.01
    %v3083 = vmul.f32 %v3051, 0.01
    %v3084 = vmul.f32 %v3052, 0.01
    %v3085 = vmul.f32 %v3053, 0.01
    %v3086 = vmul.f32 %v3054, 0.01
    %v3087 = vmul.f32 %v3055, 0.01
    %v3088 = vmul.f32 %v3056, 0.01
    %v3089 = vmul.f32 %v3057, 0.01
    %v3090 = vmul.f32 %v3058, 0.01
    %v3091 = vmul.f32 %v3059, 0.01
    %v3092 = vmul.f32 %v3060, 0.01
    %v3093 = vmul.f32 %v3061, 0.01
    %v3094 = vmul.f32 %v3062, 0.01
    %v3095 = vmul.f32 %v3063, 0.01
    %v3096 = vmul.f32 %v3064, 0.01
    %v3097 = vmul.f32 %v3065, 0.01
    %v3098 = vmul.f32 %v3066, 0.01
    %v3099 = vmul.f32 %v3067, 0.01
    %v3100 = vmul.f32 %v3068, 0.01
    %v3101 = vmul.f32 %v3069, 0.01
    %v3102 = vmul.f32 %v3070, 0.01
    %v3103 = vmul.f32 %v3071, 0.01
    %v3104 = vmul.f32 %v3072, 0.01
    %v3105 = vmul.f32 %v3073, 0.01
    %v3106 = vmul.f32 %v3074, 0.01
    %v3107 = vmul.f32 %v3075, 0.01
    %v3108 = vmax.f32 %v3044, %v3076
    %v3109 = vmax.f32 %v3045, %v3077
    %v3110 = vmax.f32 %v3046, %v3078
    %v3111 = vmax.f32 %v3047, %v3079
    %v3112 = vmax.f32 %v3048, %v3080
    %v3113 = vmax.f32 %v3049, %v3081
    %v3114 = vmax.f32 %v3050, %v3082
    %v3115 = vmax.f32 %v3051, %v3083
    %v3116 = vmax.f32 %v3052, %v3084
    %v3117 = vmax.f32 %v3053, %v3085
    %v3118 = vmax.f32 %v3054, %v3086
    %v3119 = vmax.f32 %v3055, %v3087
    %v3120 = vmax.f32 %v3056, %v3088
    %v3121 = vmax.f32 %v3057, %v3089
    %v3122 = vmax.f32 %v3058, %v3090
    %v3123 = vmax.f32 %v3059, %v3091
    %v3124 = vmax.f32 %v3060, %v3092
    %v3125 = vmax.f32 %v3061, %v3093
    %v3126 = vmax.f32 %v3062, %v3094
    %v3127 = vmax.f32 %v3063, %v3095
    %v3128 = vmax.f32 %v3064, %v3096
    %v3129 = vmax.f32 %v3065, %v3097
    %v3130 = vmax.f32 %v3066, %v3098
    %v3131 = vmax.f32 %v3067, %v3099
    %v3132 = vmax.f32 %v3068, %v3100
    %v3133 = vmax.f32 %v3069, %v3101
    %v3134 = vmax.f32 %v3070, %v3102
    %v3135 = vmax.f32 %v3071, %v3103
    %v3136 = vmax.f32 %v3072, %v3104
    %v3137 = vmax.f32 %v3073, %v3105
    %v3138 = vmax.f32 %v3074, %v3106
    %v3139 = vmax.f32 %v3075, %v3107
    %v3140 = vpack.c.bf16 %v3109, %v3108
    %v3141 = vpack.c.bf16 %v3111, %v3110
    %v3142 = vpack.c.bf16 %v3113, %v3112
    %v3143 = vpack.c.bf16 %v3115, %v3114
    %v3144 = vpack.c.bf16 %v3117, %v3116
    %v3145 = vpack.c.bf16 %v3119, %v3118
    %v3146 = vpack.c.bf16 %v3121, %v3120
    %v3147 = vpack.c.bf16 %v3123, %v3122
    %v3148 = vpack.c.bf16 %v3125, %v3124
    %v3149 = vpack.c.bf16 %v3127, %v3126
    %v3150 = vpack.c.bf16 %v3129, %v3128
    %v3151 = vpack.c.bf16 %v3131, %v3130
    %v3152 = vpack.c.bf16 %v3133, %v3132
    %v3153 = vpack.c.bf16 %v3135, %v3134
    %v3154 = vpack.c.bf16 %v3137, %v3136
    %v3155 = vpack.c.bf16 %v3139, %v3138
    %v3172 = vunpack.c.l.b16 %v2417
    %v3173 = vunpack.c.l.b16 %v2418
    %v3174 = vunpack.c.l.b16 %v2419
    %v3175 = vunpack.c.l.b16 %v2420
    %v3176 = vunpack.c.l.b16 %v2421
    %v3177 = vunpack.c.l.b16 %v2422
    %v3178 = vunpack.c.l.b16 %v2423
    %v3179 = vunpack.c.l.b16 %v2424
    %v3180 = vunpack.c.l.b16 %v2425
    %v3181 = vunpack.c.l.b16 %v2426
    %v3182 = vunpack.c.l.b16 %v2427
    %v3183 = vunpack.c.l.b16 %v2428
    %v3184 = vunpack.c.l.b16 %v2429
    %v3185 = vunpack.c.l.b16 %v2430
    %v3186 = vunpack.c.l.b16 %v2431
    %v3187 = vunpack.c.l.b16 %v2432
    %v3188 = vpack.c.b16 %v3173, %v3172
    %v3189 = vpack.c.b16 %v3175, %v3174
    %v3190 = vpack.c.b16 %v3177, %v3176
    %v3191 = vpack.c.b16 %v3179, %v3178
    %v3192 = vpack.c.b16 %v3181, %v3180
    %v3193 = vpack.c.b16 %v3183, %v3182
    %v3194 = vpack.c.b16 %v3185, %v3184
    %v3195 = vpack.c.b16 %v3187, %v3186
    %3204 = vmatprep.subr.bf16.mxu0 0
    %3205 = vmatpush1.bf16.msra.mxu0 %v3188
    %3206 = vmatprep.subr.bf16.mxu0 0
    %3207 = vmatpush1.bf16.msra.mxu0 %v3189
    %3208 = vmatprep.subr.bf16.mxu0 0
    %3209 = vmatpush1.bf16.msra.mxu0 %v3190
    %3210 = vmatprep.subr.bf16.mxu0 0
    %3211 = vmatpush1.bf16.msra.mxu0 %v3191
    %3212 = vmatprep.subr.bf16.mxu0 0
    %3213 = vmatpush1.bf16.msra.mxu0 %v3192
    %3214 = vmatprep.subr.bf16.mxu0 0
    %3215 = vmatpush1.bf16.msra.mxu0 %v3193
    %3216 = vmatprep.subr.bf16.mxu0 0
    %3217 = vmatpush1.bf16.msra.mxu0 %v3194
    %3218 = vmatprep.subr.bf16.mxu0 0
    %3219 = vmatpush1.bf16.msra.mxu0 %v3195
    %3220 = vmatprep.subr.bf16.mxu0 0
    %3221 = vmatpush1.bf16.msra.mxu0 0
    %3222 = vmatprep.subr.bf16.mxu0 0
    %3223 = vmatpush1.bf16.msra.mxu0 0
    %3224 = vmatprep.subr.bf16.mxu0 0
    %3225 = vmatpush1.bf16.msra.mxu0 0
    %3226 = vmatprep.subr.bf16.mxu0 0
    %3227 = vmatpush1.bf16.msra.mxu0 0
    %3228 = vmatprep.subr.bf16.mxu0 0
    %3229 = vmatpush1.bf16.msra.mxu0 0
    %3230 = vmatprep.subr.bf16.mxu0 0
    %3231 = vmatpush1.bf16.msra.mxu0 0
    %3232 = vmatprep.subr.bf16.mxu0 0
    %3233 = vmatpush1.bf16.msra.mxu0 0
    %3234 = vmatprep.subr.bf16.mxu0 0
    %3235 = vmatpush1.bf16.msra.mxu0 0
    %3236 = vmatprep.mubr.bf16.mxu0 0
    %3237 = vmatmul.mubr.bf16.gmra.mrb[0].mxu0 %v3140
    %v3238 = vpop.f32.mrb[0].mxu0
    %v3239 = vadd.f32 0.0, %v3238
    %v3240 = vpop.f32.mrb[0].mxu0
    %v3241 = vpop.f32.mrb[0].mxu0
    %v3242 = vadd.f32 0.0, %v3241
    %v3243 = vpop.f32.mrb[0].mxu0
    %3244 = vmatprep.mubr.bf16.mxu0 0
    %3245 = vmatmul.mubr.bf16.gmra.mrb[0].mxu0 %v3141
    %v3246 = vpop.f32.mrb[0].mxu0
    %v3247 = vadd.f32 0.0, %v3246
    %v3248 = vpop.f32.mrb[0].mxu0
    %v3249 = vpop.f32.mrb[0].mxu0
    %v3250 = vadd.f32 0.0, %v3249
    %v3251 = vpop.f32.mrb[0].mxu0
    %3252 = vmatprep.mubr.bf16.mxu0 0
    %3253 = vmatmul.mubr.bf16.gmra.mrb[0].mxu0 %v3142
    %v3254 = vpop.f32.mrb[0].mxu0
    %v3255 = vadd.f32 0.0, %v3254
    %v3256 = vpop.f32.mrb[0].mxu0
    %v3257 = vpop.f32.mrb[0].mxu0
    %v3258 = vadd.f32 0.0, %v3257
    %v3259 = vpop.f32.mrb[0].mxu0
    %3260 = vmatprep.mubr.bf16.mxu0 0
    %3261 = vmatmul.mubr.bf16.gmra.mrb[0].mxu0 %v3143
    %v3262 = vpop.f32.mrb[0].mxu0
    %v3263 = vadd.f32 0.0, %v3262
    %v3264 = vpop.f32.mrb[0].mxu0
    %v3265 = vpop.f32.mrb[0].mxu0
    %v3266 = vadd.f32 0.0, %v3265
    %v3267 = vpop.f32.mrb[0].mxu0
    %3268 = vmatprep.mubr.bf16.mxu0 0
    %3269 = vmatmul.mubr.bf16.gmra.mrb[0].mxu0 %v3144
    %v3270 = vpop.f32.mrb[0].mxu0
    %v3271 = vadd.f32 0.0, %v3270
    %v3272 = vpop.f32.mrb[0].mxu0
    %v3273 = vpop.f32.mrb[0].mxu0
    %v3274 = vadd.f32 0.0, %v3273
    %v3275 = vpop.f32.mrb[0].mxu0
    %3276 = vmatprep.mubr.bf16.mxu0 0
    %3277 = vmatmul.mubr.bf16.gmra.mrb[0].mxu0 %v3145
    %v3278 = vpop.f32.mrb[0].mxu0
    %v3279 = vadd.f32 0.0, %v3278
    %v3280 = vpop.f32.mrb[0].mxu0
    %v3281 = vpop.f32.mrb[0].mxu0
    %v3282 = vadd.f32 0.0, %v3281
    %v3283 = vpop.f32.mrb[0].mxu0
    %3284 = vmatprep.mubr.bf16.mxu0 0
    %3285 = vmatmul.mubr.bf16.gmra.mrb[0].mxu0 %v3146
    %v3286 = vpop.f32.mrb[0].mxu0
    %v3287 = vadd.f32 0.0, %v3286
    %v3288 = vpop.f32.mrb[0].mxu0
    %v3289 = vpop.f32.mrb[0].mxu0
    %v3290 = vadd.f32 0.0, %v3289
    %v3291 = vpop.f32.mrb[0].mxu0
    %3292 = vmatprep.mubr.bf16.mxu0 0
    %3293 = vmatmul.mubr.bf16.gmra.mrb[0].mxu0 %v3147
    %v3294 = vpop.f32.mrb[0].mxu0
    %v3295 = vadd.f32 0.0, %v3294
    %v3296 = vpop.f32.mrb[0].mxu0
    %v3297 = vpop.f32.mrb[0].mxu0
    %v3298 = vadd.f32 0.0, %v3297
    %v3299 = vpop.f32.mrb[0].mxu0
    %3300 = vmatprep.mubr.bf16.mxu0 0
    %3301 = vmatmul.mubr.bf16.gmra.mrb[0].mxu0 %v3148
    %v3302 = vpop.f32.mrb[0].mxu0
    %v3303 = vadd.f32 0.0, %v3302
    %v3304 = vpop.f32.mrb[0].mxu0
    %v3305 = vpop.f32.mrb[0].mxu0
    %v3306 = vadd.f32 0.0, %v3305
    %v3307 = vpop.f32.mrb[0].mxu0
    %3308 = vmatprep.mubr.bf16.mxu0 0
    %3309 = vmatmul.mubr.bf16.gmra.mrb[0].mxu0 %v3149
    %v3310 = vpop.f32.mrb[0].mxu0
    %v3311 = vadd.f32 0.0, %v3310
    %v3312 = vpop.f32.mrb[0].mxu0
    %v3313 = vpop.f32.mrb[0].mxu0
    %v3314 = vadd.f32 0.0, %v3313
    %v3315 = vpop.f32.mrb[0].mxu0
    %3316 = vmatprep.mubr.bf16.mxu0 0
    %3317 = vmatmul.mubr.bf16.gmra.mrb[0].mxu0 %v3150
    %v3318 = vpop.f32.mrb[0].mxu0
    %v3319 = vadd.f32 0.0, %v3318
    %v3320 = vpop.f32.mrb[0].mxu0
    %v3321 = vpop.f32.mrb[0].mxu0
    %v3322 = vadd.f32 0.0, %v3321
    %v3323 = vpop.f32.mrb[0].mxu0
    %3324 = vmatprep.mubr.bf16.mxu0 0
    %3325 = vmatmul.mubr.bf16.gmra.mrb[0].mxu0 %v3151
    %v3326 = vpop.f32.mrb[0].mxu0
    %v3327 = vadd.f32 0.0, %v3326
    %v3328 = vpop.f32.mrb[0].mxu0
    %v3329 = vpop.f32.mrb[0].mxu0
    %v3330 = vadd.f32 0.0, %v3329
    %v3331 = vpop.f32.mrb[0].mxu0
    %3332 = vmatprep.mubr.bf16.mxu0 0
    %3333 = vmatmul.mubr.bf16.gmra.mrb[0].mxu0 %v3152
    %v3334 = vpop.f32.mrb[0].mxu0
    %v3335 = vadd.f32 0.0, %v3334
    %v3336 = vpop.f32.mrb[0].mxu0
    %v3337 = vpop.f32.mrb[0].mxu0
    %v3338 = vadd.f32 0.0, %v3337
    %v3339 = vpop.f32.mrb[0].mxu0
    %3340 = vmatprep.mubr.bf16.mxu0 0
    %3341 = vmatmul.mubr.bf16.gmra.mrb[0].mxu0 %v3153
    %v3342 = vpop.f32.mrb[0].mxu0
    %v3343 = vadd.f32 0.0, %v3342
    %v3344 = vpop.f32.mrb[0].mxu0
    %v3345 = vpop.f32.mrb[0].mxu0
    %v3346 = vadd.f32 0.0, %v3345
    %v3347 = vpop.f32.mrb[0].mxu0
    %3348 = vmatprep.mubr.bf16.mxu0 0
    %3349 = vmatmul.mubr.bf16.gmra.mrb[0].mxu0 %v3154
    %v3350 = vpop.f32.mrb[0].mxu0
    %v3351 = vadd.f32 0.0, %v3350
    %v3352 = vpop.f32.mrb[0].mxu0
    %v3353 = vpop.f32.mrb[0].mxu0
    %v3354 = vadd.f32 0.0, %v3353
    %v3355 = vpop.f32.mrb[0].mxu0
    %3356 = vmatprep.mubr.bf16.mxu0 0
    %3357 = vmatmul.mubr.bf16.gmra.mrb[0].mxu0 %v3155
    %v3358 = vpop.f32.mrb[0].mxu0
    %v3359 = vadd.f32 0.0, %v3358
    %v3360 = vpop.f32.mrb[0].mxu0
    %v3361 = vpop.f32.mrb[0].mxu0
    %v3362 = vadd.f32 0.0, %v3361
    %v3363 = vpop.f32.mrb[0].mxu0
    %3364 = vdwg.mxu0
    %v3365 = vpack.c.bf16 %v3242, %v3239
    %v3366 = vpack.c.bf16 %v3250, %v3247
    %v3367 = vpack.c.bf16 %v3258, %v3255
    %v3368 = vpack.c.bf16 %v3266, %v3263
    %v3369 = vpack.c.bf16 %v3274, %v3271
    %v3370 = vpack.c.bf16 %v3282, %v3279
    %v3371 = vpack.c.bf16 %v3290, %v3287
    %v3372 = vpack.c.bf16 %v3298, %v3295
    %v3373 = vpack.c.bf16 %v3306, %v3303
    %v3374 = vpack.c.bf16 %v3314, %v3311
    %v3375 = vpack.c.bf16 %v3322, %v3319
    %v3376 = vpack.c.bf16 %v3330, %v3327
    %v3377 = vpack.c.bf16 %v3338, %v3335
    %v3378 = vpack.c.bf16 %v3346, %v3343
    %v3379 = vpack.c.bf16 %v3354, %v3351
    %v3380 = vpack.c.bf16 %v3362, %v3359
    %v3381 = vadd.f32 %v3239, %v70
    %v3382 = vadd.f32 %v3242, %v74
    %v3383 = vadd.f32 %v3247, %v81
    %v3384 = vadd.f32 %v3250, %v85
    %v3385 = vadd.f32 %v3255, %v92
    %v3386 = vadd.f32 %v3258, %v96
    %v3387 = vadd.f32 %v3263, %v103
    %v3388 = vadd.f32 %v3266, %v107
    %v3389 = vadd.f32 %v3271, %v114
    %v3390 = vadd.f32 %v3274, %v118
    %v3391 = vadd.f32 %v3279, %v125
    %v3392 = vadd.f32 %v3282, %v129
    %v3393 = vadd.f32 %v3287, %v136
    %v3394 = vadd.f32 %v3290, %v140
    %v3395 = vadd.f32 %v3295, %v147
    %v3396 = vadd.f32 %v3298, %v151
    %v3397 = vadd.f32 %v3303, %v158
    %v3398 = vadd.f32 %v3306, %v162
    %v3399 = vadd.f32 %v3311, %v169
    %v3400 = vadd.f32 %v3314, %v173
    %v3401 = vadd.f32 %v3319, %v180
    %v3402 = vadd.f32 %v3322, %v184
    %v3403 = vadd.f32 %v3327, %v191
    %v3404 = vadd.f32 %v3330, %v195
    %v3405 = vadd.f32 %v3335, %v202
    %v3406 = vadd.f32 %v3338, %v206
    %v3407 = vadd.f32 %v3343, %v213
    %v3408 = vadd.f32 %v3346, %v217
    %v3409 = vadd.f32 %v3351, %v224
    %v3410 = vadd.f32 %v3354, %v228
    %v3411 = vadd.f32 %v3359, %v235
    %v3412 = vadd.f32 %v3362, %v239
    %v3413 = vsel %vm1509, %v3381, -inf
    %v3414 = vsel %vm1509, %v3383, -inf
    %v3415 = vsel %vm1509, %v3385, -inf
    %v3416 = vmax.f32 %v3413, %v3415
    %v3417 = vsel %vm1509, %v3387, -inf
    %v3418 = vmax.f32 %v3414, %v3417
    %v3419 = vsel %vm1509, %v3389, -inf
    %v3420 = vmax.f32 %v3416, %v3419
    %v3421 = vsel %vm1509, %v3391, -inf
    %v3422 = vmax.f32 %v3418, %v3421
    %v3423 = vsel %vm1509, %v3393, -inf
    %v3424 = vmax.f32 %v3420, %v3423
    %v3425 = vsel %vm1509, %v3395, -inf
    %v3426 = vmax.f32 %v3422, %v3425
    %v3427 = vsel %vm1509, %v3397, -inf
    %v3428 = vmax.f32 %v3424, %v3427
    %v3429 = vsel %vm1509, %v3399, -inf
    %v3430 = vmax.f32 %v3426, %v3429
    %v3431 = vsel %vm1509, %v3401, -inf
    %v3432 = vmax.f32 %v3428, %v3431
    %v3433 = vsel %vm1509, %v3403, -inf
    %v3434 = vmax.f32 %v3430, %v3433
    %v3435 = vsel %vm1509, %v3405, -inf
    %v3436 = vmax.f32 %v3432, %v3435
    %v3437 = vsel %vm1509, %v3407, -inf
    %v3438 = vmax.f32 %v3434, %v3437
    %v3439 = vsel %vm1509, %v3409, -inf
    %v3440 = vmax.f32 %v3436, %v3439
    %v3441 = vsel %vm1509, %v3411, -inf
    %v3442 = vmax.f32 %v3438, %v3441
    %v3443 = vmax.f32 %v3440, %v3442
    %v3444 = vsel %vm1509, %v3382, -inf
    %v3445 = vsel %vm1509, %v3384, -inf
    %v3446 = vsel %vm1509, %v3386, -inf
    %v3447 = vmax.f32 %v3444, %v3446
    %v3448 = vsel %vm1509, %v3388, -inf
    %v3449 = vmax.f32 %v3445, %v3448
    %v3450 = vsel %vm1509, %v3390, -inf
    %v3451 = vmax.f32 %v3447, %v3450
    %v3452 = vsel %vm1509, %v3392, -inf
    %v3453 = vmax.f32 %v3449, %v3452
    %v3454 = vsel %vm1509, %v3394, -inf
    %v3455 = vmax.f32 %v3451, %v3454
    %v3456 = vsel %vm1509, %v3396, -inf
    %v3457 = vmax.f32 %v3453, %v3456
    %v3458 = vsel %vm1509, %v3398, -inf
    %v3459 = vmax.f32 %v3455, %v3458
    %v3460 = vsel %vm1509, %v3400, -inf
    %v3461 = vmax.f32 %v3457, %v3460
    %v3462 = vsel %vm1509, %v3402, -inf
    %v3463 = vmax.f32 %v3459, %v3462
    %v3464 = vsel %vm1509, %v3404, -inf
    %v3465 = vmax.f32 %v3461, %v3464
    %v3466 = vsel %vm1509, %v3406, -inf
    %v3467 = vmax.f32 %v3463, %v3466
    %v3468 = vsel %vm1509, %v3408, -inf
    %v3469 = vmax.f32 %v3465, %v3468
    %v3470 = vsel %vm1509, %v3410, -inf
    %v3471 = vmax.f32 %v3467, %v3470
    %v3472 = vsel %vm1509, %v3412, -inf
    %v3473 = vmax.f32 %v3469, %v3472
    %v3474 = vmax.f32 %v3471, %v3473
    %v3475 = vsub.f32 %v3381, %v3443
    %v3476 = vsub.f32 %v3382, %v3474
    %v3477 = vsub.f32 %v3383, %v3443
    %v3478 = vsub.f32 %v3384, %v3474
    %v3479 = vsub.f32 %v3385, %v3443
    %v3480 = vsub.f32 %v3386, %v3474
    %v3481 = vsub.f32 %v3387, %v3443
    %v3482 = vsub.f32 %v3388, %v3474
    %v3483 = vsub.f32 %v3389, %v3443
    %v3484 = vsub.f32 %v3390, %v3474
    %v3485 = vsub.f32 %v3391, %v3443
    %v3486 = vsub.f32 %v3392, %v3474
    %v3487 = vsub.f32 %v3393, %v3443
    %v3488 = vsub.f32 %v3394, %v3474
    %v3489 = vsub.f32 %v3395, %v3443
    %v3490 = vsub.f32 %v3396, %v3474
    %v3491 = vsub.f32 %v3397, %v3443
    %v3492 = vsub.f32 %v3398, %v3474
    %v3493 = vsub.f32 %v3399, %v3443
    %v3494 = vsub.f32 %v3400, %v3474
    %v3495 = vsub.f32 %v3401, %v3443
    %v3496 = vsub.f32 %v3402, %v3474
    %v3497 = vsub.f32 %v3403, %v3443
    %v3498 = vsub.f32 %v3404, %v3474
    %v3499 = vsub.f32 %v3405, %v3443
    %v3500 = vsub.f32 %v3406, %v3474
    %v3501 = vsub.f32 %v3407, %v3443
    %v3502 = vsub.f32 %v3408, %v3474
    %v3503 = vsub.f32 %v3409, %v3443
    %v3504 = vsub.f32 %v3410, %v3474
    %v3505 = vsub.f32 %v3411, %v3443
    %v3506 = vsub.f32 %v3412, %v3474
    %v3507 = vmul.f32 %v3475, 1.442695
    %v3508 = vpow.pop %v3507
    %v3509 = vmul.f32 %v3476, 1.442695
    %v3510 = vpow.pop %v3509
    %v3511 = vmul.f32 %v3477, 1.442695
    %v3512 = vpow.pop %v3511
    %v3513 = vmul.f32 %v3478, 1.442695
    %v3514 = vpow.pop %v3513
    %v3515 = vmul.f32 %v3479, 1.442695
    %v3516 = vpow.pop %v3515
    %v3517 = vmul.f32 %v3480, 1.442695
    %v3518 = vpow.pop %v3517
    %v3519 = vmul.f32 %v3481, 1.442695
    %v3520 = vpow.pop %v3519
    %v3521 = vmul.f32 %v3482, 1.442695
    %v3522 = vpow.pop %v3521
    %v3523 = vmul.f32 %v3483, 1.442695
    %v3524 = vpow.pop %v3523
    %v3525 = vmul.f32 %v3484, 1.442695
    %v3526 = vpow.pop %v3525
    %v3527 = vmul.f32 %v3485, 1.442695
    %v3528 = vpow.pop %v3527
    %v3529 = vmul.f32 %v3486, 1.442695
    %v3530 = vpow.pop %v3529
    %v3531 = vmul.f32 %v3487, 1.442695
    %v3532 = vpow.pop %v3531
    %v3533 = vmul.f32 %v3488, 1.442695
    %v3534 = vpow.pop %v3533
    %v3535 = vmul.f32 %v3489, 1.442695
    %v3536 = vpow.pop %v3535
    %v3537 = vmul.f32 %v3490, 1.442695
    %v3538 = vpow.pop %v3537
    %v3539 = vmul.f32 %v3491, 1.442695
    %v3540 = vpow.pop %v3539
    %v3541 = vmul.f32 %v3492, 1.442695
    %v3542 = vpow.pop %v3541
    %v3543 = vmul.f32 %v3493, 1.442695
    %v3544 = vpow.pop %v3543
    %v3545 = vmul.f32 %v3494, 1.442695
    %v3546 = vpow.pop %v3545
    %v3547 = vmul.f32 %v3495, 1.442695
    %v3548 = vpow.pop %v3547
    %v3549 = vmul.f32 %v3496, 1.442695
    %v3550 = vpow.pop %v3549
    %v3551 = vmul.f32 %v3497, 1.442695
    %v3552 = vpow.pop %v3551
    %v3553 = vmul.f32 %v3498, 1.442695
    %v3554 = vpow.pop %v3553
    %v3555 = vmul.f32 %v3499, 1.442695
    %v3556 = vpow.pop %v3555
    %v3557 = vmul.f32 %v3500, 1.442695
    %v3558 = vpow.pop %v3557
    %v3559 = vmul.f32 %v3501, 1.442695
    %v3560 = vpow.pop %v3559
    %v3561 = vmul.f32 %v3502, 1.442695
    %v3562 = vpow.pop %v3561
    %v3563 = vmul.f32 %v3503, 1.442695
    %v3564 = vpow.pop %v3563
    %v3565 = vmul.f32 %v3504, 1.442695
    %v3566 = vpow.pop %v3565
    %v3567 = vmul.f32 %v3505, 1.442695
    %v3568 = vpow.pop %v3567
    %v3569 = vmul.f32 %v3506, 1.442695
    %v3570 = vpow.pop %v3569
    %v3571 = vmul.f32 %v3508, %v246
    %v3572 = vmul.f32 %v3510, %v250
    %v3573 = vmul.f32 %v3512, %v257
    %v3574 = vmul.f32 %v3514, %v261
    %v3575 = vmul.f32 %v3516, %v268
    %v3576 = vmul.f32 %v3518, %v272
    %v3577 = vmul.f32 %v3520, %v279
    %v3578 = vmul.f32 %v3522, %v283
    %v3579 = vmul.f32 %v3524, %v290
    %v3580 = vmul.f32 %v3526, %v294
    %v3581 = vmul.f32 %v3528, %v301
    %v3582 = vmul.f32 %v3530, %v305
    %v3583 = vmul.f32 %v3532, %v312
    %v3584 = vmul.f32 %v3534, %v316
    %v3585 = vmul.f32 %v3536, %v323
    %v3586 = vmul.f32 %v3538, %v327
    %v3587 = vmul.f32 %v3540, %v334
    %v3588 = vmul.f32 %v3542, %v338
    %v3589 = vmul.f32 %v3544, %v345
    %v3590 = vmul.f32 %v3546, %v349
    %v3591 = vmul.f32 %v3548, %v356
    %v3592 = vmul.f32 %v3550, %v360
    %v3593 = vmul.f32 %v3552, %v367
    %v3594 = vmul.f32 %v3554, %v371
    %v3595 = vmul.f32 %v3556, %v378
    %v3596 = vmul.f32 %v3558, %v382
    %v3597 = vmul.f32 %v3560, %v389
    %v3598 = vmul.f32 %v3562, %v393
    %v3599 = vmul.f32 %v3564, %v400
    %v3600 = vmul.f32 %v3566, %v404
    %v3601 = vmul.f32 %v3568, %v411
    %v3602 = vmul.f32 %v3570, %v415
    %v3603 = vsel %vm1509, %v3571, 0.0
    %v3604 = vsel %vm1509, %v3573, 0.0
    %v3605 = vadd.f32 %v3603, %v3604
    %v3606 = vsel %vm1509, %v3575, 0.0
    %v3607 = vadd.f32 %v3605, %v3606
    %v3608 = vsel %vm1509, %v3577, 0.0
    %v3609 = vadd.f32 %v3607, %v3608
    %v3610 = vsel %vm1509, %v3579, 0.0
    %v3611 = vadd.f32 %v3609, %v3610
    %v3612 = vsel %vm1509, %v3581, 0.0
    %v3613 = vadd.f32 %v3611, %v3612
    %v3614 = vsel %vm1509, %v3583, 0.0
    %v3615 = vadd.f32 %v3613, %v3614
    %v3616 = vsel %vm1509, %v3585, 0.0
    %v3617 = vadd.f32 %v3615, %v3616
    %v3618 = vsel %vm1509, %v3587, 0.0
    %v3619 = vadd.f32 %v3617, %v3618
    %v3620 = vsel %vm1509, %v3589, 0.0
    %v3621 = vadd.f32 %v3619, %v3620
    %v3622 = vsel %vm1509, %v3591, 0.0
    %v3623 = vadd.f32 %v3621, %v3622
    %v3624 = vsel %vm1509, %v3593, 0.0
    %v3625 = vadd.f32 %v3623, %v3624
    %v3626 = vsel %vm1509, %v3595, 0.0
    %v3627 = vadd.f32 %v3625, %v3626
    %v3628 = vsel %vm1509, %v3597, 0.0
    %v3629 = vadd.f32 %v3627, %v3628
    %v3630 = vsel %vm1509, %v3599, 0.0
    %v3631 = vadd.f32 %v3629, %v3630
    %v3632 = vsel %vm1509, %v3601, 0.0
    %v3633 = vadd.f32 %v3631, %v3632
    %v3634 = vsel %vm1509, %v3572, 0.0
    %v3635 = vsel %vm1509, %v3574, 0.0
    %v3636 = vadd.f32 %v3634, %v3635
    %v3637 = vsel %vm1509, %v3576, 0.0
    %v3638 = vadd.f32 %v3636, %v3637
    %v3639 = vsel %vm1509, %v3578, 0.0
    %v3640 = vadd.f32 %v3638, %v3639
    %v3641 = vsel %vm1509, %v3580, 0.0
    %v3642 = vadd.f32 %v3640, %v3641
    %v3643 = vsel %vm1509, %v3582, 0.0
    %v3644 = vadd.f32 %v3642, %v3643
    %v3645 = vsel %vm1509, %v3584, 0.0
    %v3646 = vadd.f32 %v3644, %v3645
    %v3647 = vsel %vm1509, %v3586, 0.0
    %v3648 = vadd.f32 %v3646, %v3647
    %v3649 = vsel %vm1509, %v3588, 0.0
    %v3650 = vadd.f32 %v3648, %v3649
    %v3651 = vsel %vm1509, %v3590, 0.0
    %v3652 = vadd.f32 %v3650, %v3651
    %v3653 = vsel %vm1509, %v3592, 0.0
    %v3654 = vadd.f32 %v3652, %v3653
    %v3655 = vsel %vm1509, %v3594, 0.0
    %v3656 = vadd.f32 %v3654, %v3655
    %v3657 = vsel %vm1509, %v3596, 0.0
    %v3658 = vadd.f32 %v3656, %v3657
    %v3659 = vsel %vm1509, %v3598, 0.0
    %v3660 = vadd.f32 %v3658, %v3659
    %v3661 = vsel %vm1509, %v3600, 0.0
    %v3662 = vadd.f32 %v3660, %v3661
    %v3663 = vsel %vm1509, %v3602, 0.0
    %v3664 = vadd.f32 %v3662, %v3663
    %v3665 = vmax.f32 %v3633, 1e-30
    %v3666 = vmax.f32 %v3664, 1e-30
    %v3667 = vrcp.pop %v3665
    %v3668 = vrcp.pop %v3666
    %v3669 = vmul.f32 %v3571, %v3667
    %v3670 = vmul.f32 %v3572, %v3668
    %v3671 = vmul.f32 %v3573, %v3667
    %v3672 = vmul.f32 %v3574, %v3668
    %v3673 = vmul.f32 %v3575, %v3667
    %v3674 = vmul.f32 %v3576, %v3668
    %v3675 = vmul.f32 %v3577, %v3667
    %v3676 = vmul.f32 %v3578, %v3668
    %v3677 = vmul.f32 %v3579, %v3667
    %v3678 = vmul.f32 %v3580, %v3668
    %v3679 = vmul.f32 %v3581, %v3667
    %v3680 = vmul.f32 %v3582, %v3668
    %v3681 = vmul.f32 %v3583, %v3667
    %v3682 = vmul.f32 %v3584, %v3668
    %v3683 = vmul.f32 %v3585, %v3667
    %v3684 = vmul.f32 %v3586, %v3668
    %v3685 = vmul.f32 %v3587, %v3667
    %v3686 = vmul.f32 %v3588, %v3668
    %v3687 = vmul.f32 %v3589, %v3667
    %v3688 = vmul.f32 %v3590, %v3668
    %v3689 = vmul.f32 %v3591, %v3667
    %v3690 = vmul.f32 %v3592, %v3668
    %v3691 = vmul.f32 %v3593, %v3667
    %v3692 = vmul.f32 %v3594, %v3668
    %v3693 = vmul.f32 %v3595, %v3667
    %v3694 = vmul.f32 %v3596, %v3668
    %v3695 = vmul.f32 %v3597, %v3667
    %v3696 = vmul.f32 %v3598, %v3668
    %v3697 = vmul.f32 %v3599, %v3667
    %v3698 = vmul.f32 %v3600, %v3668
    %v3699 = vmul.f32 %v3601, %v3667
    %v3700 = vmul.f32 %v3602, %v3668
    %v3701 = vpack.c.bf16 %v3670, %v3669
    %v3702 = vpack.c.bf16 %v3672, %v3671
    %v3703 = vpack.c.bf16 %v3674, %v3673
    %v3704 = vpack.c.bf16 %v3676, %v3675
    %v3705 = vpack.c.bf16 %v3678, %v3677
    %v3706 = vpack.c.bf16 %v3680, %v3679
    %v3707 = vpack.c.bf16 %v3682, %v3681
    %v3708 = vpack.c.bf16 %v3684, %v3683
    %v3709 = vpack.c.bf16 %v3686, %v3685
    %v3710 = vpack.c.bf16 %v3688, %v3687
    %v3711 = vpack.c.bf16 %v3690, %v3689
    %v3712 = vpack.c.bf16 %v3692, %v3691
    %v3713 = vpack.c.bf16 %v3694, %v3693
    %v3714 = vpack.c.bf16 %v3696, %v3695
    %v3715 = vpack.c.bf16 %v3698, %v3697
    %v3716 = vpack.c.bf16 %v3700, %v3699
    %v3718 = vsel %vm1509, %v3701, 0
    %v3721 = vsel %vm1509, %v3702, 0
    %v3724 = vsel %vm1509, %v3703, 0
    %v3727 = vsel %vm1509, %v3704, 0
    %v3730 = vsel %vm1509, %v3705, 0
    %v3733 = vsel %vm1509, %v3706, 0
    %v3736 = vsel %vm1509, %v3707, 0
    %v3739 = vsel %vm1509, %v3708, 0
    %v3742 = vsel %vm1509, %v3709, 0
    %v3745 = vsel %vm1509, %v3710, 0
    %v3748 = vsel %vm1509, %v3711, 0
    %v3751 = vsel %vm1509, %v3712, 0
    %v3754 = vsel %vm1509, %v3713, 0
    %v3757 = vsel %vm1509, %v3714, 0
    %v3760 = vsel %vm1509, %v3715, 0
    %v3763 = vsel %vm1509, %v3716, 0
    %3765 = vmatprep.subr.bf16.mxu0 0
    %3766 = vmatpush1.bf16.msra.mxu0 %v1864
    %3767 = vmatprep.subr.bf16.mxu0 0
    %3768 = vmatpush1.bf16.msra.mxu0 0
    %3769 = vmatprep.subr.bf16.mxu0 0
    %3770 = vmatpush1.bf16.msra.mxu0 0
    %3771 = vmatprep.subr.bf16.mxu0 0
    %3772 = vmatpush1.bf16.msra.mxu0 0
    %3773 = vmatprep.subr.bf16.mxu0 0
    %3774 = vmatpush1.bf16.msra.mxu0 0
    %3775 = vmatprep.subr.bf16.mxu0 0
    %3776 = vmatpush1.bf16.msra.mxu0 0
    %3777 = vmatprep.subr.bf16.mxu0 0
    %3778 = vmatpush1.bf16.msra.mxu0 0
    %3779 = vmatprep.subr.bf16.mxu0 0
    %3780 = vmatpush1.bf16.msra.mxu0 0
    %3781 = vmatprep.subr.bf16.mxu0 0
    %3782 = vmatpush1.bf16.msra.mxu0 0
    %3783 = vmatprep.subr.bf16.mxu0 0
    %3784 = vmatpush1.bf16.msra.mxu0 0
    %3785 = vmatprep.subr.bf16.mxu0 0
    %3786 = vmatpush1.bf16.msra.mxu0 0
    %3787 = vmatprep.subr.bf16.mxu0 0
    %3788 = vmatpush1.bf16.msra.mxu0 0
    %3789 = vmatprep.subr.bf16.mxu0 0
    %3790 = vmatpush1.bf16.msra.mxu0 0
    %3791 = vmatprep.subr.bf16.mxu0 0
    %3792 = vmatpush1.bf16.msra.mxu0 0
    %3793 = vmatprep.subr.bf16.mxu0 0
    %3794 = vmatpush1.bf16.msra.mxu0 0
    %3795 = vmatprep.subr.bf16.mxu0 0
    %3796 = vmatpush1.bf16.msra.mxu0 0
    %3797 = vmatprep.mubr.bf16.mxu0 0
    %3798 = vmatmul.mubr.bf16.gmra.mrb[0].mxu0 %v3718
    %v3799 = vpop.f32.mrb[0].mxu0
    %v3800 = vadd.f32 0.0, %v3799
    %v3801 = vpop.f32.mrb[0].mxu0
    %v3802 = vpop.f32.mrb[0].mxu0
    %v3803 = vadd.f32 0.0, %v3802
    %v3804 = vpop.f32.mrb[0].mxu0
    %3805 = vmatprep.mubr.bf16.mxu0 0
    %3806 = vmatmul.mubr.bf16.gmra.mrb[0].mxu0 %v3721
    %v3807 = vpop.f32.mrb[0].mxu0
    %v3808 = vadd.f32 0.0, %v3807
    %v3809 = vpop.f32.mrb[0].mxu0
    %v3810 = vpop.f32.mrb[0].mxu0
    %v3811 = vadd.f32 0.0, %v3810
    %v3812 = vpop.f32.mrb[0].mxu0
    %3813 = vmatprep.mubr.bf16.mxu0 0
    %3814 = vmatmul.mubr.bf16.gmra.mrb[0].mxu0 %v3724
    %v3815 = vpop.f32.mrb[0].mxu0
    %v3816 = vadd.f32 0.0, %v3815
    %v3817 = vpop.f32.mrb[0].mxu0
    %v3818 = vpop.f32.mrb[0].mxu0
    %v3819 = vadd.f32 0.0, %v3818
    %v3820 = vpop.f32.mrb[0].mxu0
    %3821 = vmatprep.mubr.bf16.mxu0 0
    %3822 = vmatmul.mubr.bf16.gmra.mrb[0].mxu0 %v3727
    %v3823 = vpop.f32.mrb[0].mxu0
    %v3824 = vadd.f32 0.0, %v3823
    %v3825 = vpop.f32.mrb[0].mxu0
    %v3826 = vpop.f32.mrb[0].mxu0
    %v3827 = vadd.f32 0.0, %v3826
    %v3828 = vpop.f32.mrb[0].mxu0
    %3829 = vmatprep.mubr.bf16.mxu0 0
    %3830 = vmatmul.mubr.bf16.gmra.mrb[0].mxu0 %v3730
    %v3831 = vpop.f32.mrb[0].mxu0
    %v3832 = vadd.f32 0.0, %v3831
    %v3833 = vpop.f32.mrb[0].mxu0
    %v3834 = vpop.f32.mrb[0].mxu0
    %v3835 = vadd.f32 0.0, %v3834
    %v3836 = vpop.f32.mrb[0].mxu0
    %3837 = vmatprep.mubr.bf16.mxu0 0
    %3838 = vmatmul.mubr.bf16.gmra.mrb[0].mxu0 %v3733
    %v3839 = vpop.f32.mrb[0].mxu0
    %v3840 = vadd.f32 0.0, %v3839
    %v3841 = vpop.f32.mrb[0].mxu0
    %v3842 = vpop.f32.mrb[0].mxu0
    %v3843 = vadd.f32 0.0, %v3842
    %v3844 = vpop.f32.mrb[0].mxu0
    %3845 = vmatprep.mubr.bf16.mxu0 0
    %3846 = vmatmul.mubr.bf16.gmra.mrb[0].mxu0 %v3736
    %v3847 = vpop.f32.mrb[0].mxu0
    %v3848 = vadd.f32 0.0, %v3847
    %v3849 = vpop.f32.mrb[0].mxu0
    %v3850 = vpop.f32.mrb[0].mxu0
    %v3851 = vadd.f32 0.0, %v3850
    %v3852 = vpop.f32.mrb[0].mxu0
    %3853 = vmatprep.mubr.bf16.mxu0 0
    %3854 = vmatmul.mubr.bf16.gmra.mrb[0].mxu0 %v3739
    %v3855 = vpop.f32.mrb[0].mxu0
    %v3856 = vadd.f32 0.0, %v3855
    %v3857 = vpop.f32.mrb[0].mxu0
    %v3858 = vpop.f32.mrb[0].mxu0
    %v3859 = vadd.f32 0.0, %v3858
    %v3860 = vpop.f32.mrb[0].mxu0
    %3861 = vmatprep.mubr.bf16.mxu0 0
    %3862 = vmatmul.mubr.bf16.gmra.mrb[0].mxu0 %v3742
    %v3863 = vpop.f32.mrb[0].mxu0
    %v3864 = vadd.f32 0.0, %v3863
    %v3865 = vpop.f32.mrb[0].mxu0
    %v3866 = vpop.f32.mrb[0].mxu0
    %v3867 = vadd.f32 0.0, %v3866
    %v3868 = vpop.f32.mrb[0].mxu0
    %3869 = vmatprep.mubr.bf16.mxu0 0
    %3870 = vmatmul.mubr.bf16.gmra.mrb[0].mxu0 %v3745
    %v3871 = vpop.f32.mrb[0].mxu0
    %v3872 = vadd.f32 0.0, %v3871
    %v3873 = vpop.f32.mrb[0].mxu0
    %v3874 = vpop.f32.mrb[0].mxu0
    %v3875 = vadd.f32 0.0, %v3874
    %v3876 = vpop.f32.mrb[0].mxu0
    %3877 = vmatprep.mubr.bf16.mxu0 0
    %3878 = vmatmul.mubr.bf16.gmra.mrb[0].mxu0 %v3748
    %v3879 = vpop.f32.mrb[0].mxu0
    %v3880 = vadd.f32 0.0, %v3879
    %v3881 = vpop.f32.mrb[0].mxu0
    %v3882 = vpop.f32.mrb[0].mxu0
    %v3883 = vadd.f32 0.0, %v3882
    %v3884 = vpop.f32.mrb[0].mxu0
    %3885 = vmatprep.mubr.bf16.mxu0 0
    %3886 = vmatmul.mubr.bf16.gmra.mrb[0].mxu0 %v3751
    %v3887 = vpop.f32.mrb[0].mxu0
    %v3888 = vadd.f32 0.0, %v3887
    %v3889 = vpop.f32.mrb[0].mxu0
    %v3890 = vpop.f32.mrb[0].mxu0
    %v3891 = vadd.f32 0.0, %v3890
    %v3892 = vpop.f32.mrb[0].mxu0
    %3893 = vmatprep.mubr.bf16.mxu0 0
    %3894 = vmatmul.mubr.bf16.gmra.mrb[0].mxu0 %v3754
    %v3895 = vpop.f32.mrb[0].mxu0
    %v3896 = vadd.f32 0.0, %v3895
    %v3897 = vpop.f32.mrb[0].mxu0
    %v3898 = vpop.f32.mrb[0].mxu0
    %v3899 = vadd.f32 0.0, %v3898
    %v3900 = vpop.f32.mrb[0].mxu0
    %3901 = vmatprep.mubr.bf16.mxu0 0
    %3902 = vmatmul.mubr.bf16.gmra.mrb[0].mxu0 %v3757
    %v3903 = vpop.f32.mrb[0].mxu0
    %v3904 = vadd.f32 0.0, %v3903
    %v3905 = vpop.f32.mrb[0].mxu0
    %v3906 = vpop.f32.mrb[0].mxu0
    %v3907 = vadd.f32 0.0, %v3906
    %v3908 = vpop.f32.mrb[0].mxu0
    %3909 = vmatprep.mubr.bf16.mxu0 0
    %3910 = vmatmul.mubr.bf16.gmra.mrb[0].mxu0 %v3760
    %v3911 = vpop.f32.mrb[0].mxu0
    %v3912 = vadd.f32 0.0, %v3911
    %v3913 = vpop.f32.mrb[0].mxu0
    %v3914 = vpop.f32.mrb[0].mxu0
    %v3915 = vadd.f32 0.0, %v3914
    %v3916 = vpop.f32.mrb[0].mxu0
    %3917 = vmatprep.mubr.bf16.mxu0 0
    %3918 = vmatmul.mubr.bf16.gmra.mrb[0].mxu0 %v3763
    %v3919 = vpop.f32.mrb[0].mxu0
    %v3920 = vadd.f32 0.0, %v3919
    %v3921 = vpop.f32.mrb[0].mxu0
    %v3922 = vpop.f32.mrb[0].mxu0
    %v3923 = vadd.f32 0.0, %v3922
    %v3924 = vpop.f32.mrb[0].mxu0
    %3925 = vdwg.mxu0
    %v3928 = vcombine.high %v2549, %v2549
    %v3930 = vunpack.c.l.s4 1966171168
    %v3931 = vunpack.c.0.s8 %v3930
    %v3932 = vlaneseq
    %v3933 = vshrl.u32 %v3932, 7
    %v3934 = vsub.s32 %v3931, %v3933
    %v3935 = vrot.slane %v2549, %v3934
    %v3937 = vunpack.c.l.s4 1966171168
    %v3938 = vunpack.c.0.s8 %v3937
    %v3939 = vlaneseq
    %v3940 = vshrl.u32 %v3939, 7
    %v3941 = vsub.s32 %v3938, %v3940
    %v3942 = vrot.slane %v3928, %v3941
    %v3943 = vcombine.high %v3935, %v3935
    %v3944 = vcombine.high %v3942, %v3942
    %v3946 = vunpack.c.l.s4 1966171168
    %v3947 = vunpack.c.0.s8 %v3946
    %v3948 = vlaneseq
    %v3949 = vshrl.u32 %v3948, 7
    %v3950 = vsub.s32 %v3947, %v3949
    %v3951 = vrot.slane %v3935, %v3950
    %v3953 = vunpack.c.l.s4 1966171168
    %v3954 = vunpack.c.0.s8 %v3953
    %v3955 = vlaneseq
    %v3956 = vshrl.u32 %v3955, 7
    %v3957 = vsub.s32 %v3954, %v3956
    %v3958 = vrot.slane %v3942, %v3957
    %v3960 = vunpack.c.l.s4 1966171168
    %v3961 = vunpack.c.0.s8 %v3960
    %v3962 = vlaneseq
    %v3963 = vshrl.u32 %v3962, 7
    %v3964 = vsub.s32 %v3961, %v3963
    %v3965 = vrot.slane %v3943, %v3964
    %v3967 = vunpack.c.l.s4 1966171168
    %v3968 = vunpack.c.0.s8 %v3967
    %v3969 = vlaneseq
    %v3970 = vshrl.u32 %v3969, 7
    %v3971 = vsub.s32 %v3968, %v3970
    %v3972 = vrot.slane %v3944, %v3971
    %v3973 = vcombine.high %v3951, %v3951
    %v3974 = vcombine.high %v3958, %v3958
    %v3975 = vcombine.high %v3965, %v3965
    %v3976 = vcombine.high %v3972, %v3972
    %v3977 = vcombine.high %v2552, %v2552
    %v3979 = vunpack.c.l.s4 1966171168
    %v3980 = vunpack.c.0.s8 %v3979
    %v3981 = vlaneseq
    %v3982 = vshrl.u32 %v3981, 7
    %v3983 = vsub.s32 %v3980, %v3982
    %v3984 = vrot.slane %v2552, %v3983
    %v3986 = vunpack.c.l.s4 1966171168
    %v3987 = vunpack.c.0.s8 %v3986
    %v3988 = vlaneseq
    %v3989 = vshrl.u32 %v3988, 7
    %v3990 = vsub.s32 %v3987, %v3989
    %v3991 = vrot.slane %v3977, %v3990
    %v3992 = vcombine.high %v3984, %v3984
    %v3993 = vcombine.high %v3991, %v3991
    %v3995 = vunpack.c.l.s4 1966171168
    %v3996 = vunpack.c.0.s8 %v3995
    %v3997 = vlaneseq
    %v3998 = vshrl.u32 %v3997, 7
    %v3999 = vsub.s32 %v3996, %v3998
    %v4000 = vrot.slane %v3984, %v3999
    %v4002 = vunpack.c.l.s4 1966171168
    %v4003 = vunpack.c.0.s8 %v4002
    %v4004 = vlaneseq
    %v4005 = vshrl.u32 %v4004, 7
    %v4006 = vsub.s32 %v4003, %v4005
    %v4007 = vrot.slane %v3991, %v4006
    %v4009 = vunpack.c.l.s4 1966171168
    %v4010 = vunpack.c.0.s8 %v4009
    %v4011 = vlaneseq
    %v4012 = vshrl.u32 %v4011, 7
    %v4013 = vsub.s32 %v4010, %v4012
    %v4014 = vrot.slane %v3992, %v4013
    %v4016 = vunpack.c.l.s4 1966171168
    %v4017 = vunpack.c.0.s8 %v4016
    %v4018 = vlaneseq
    %v4019 = vshrl.u32 %v4018, 7
    %v4020 = vsub.s32 %v4017, %v4019
    %v4021 = vrot.slane %v3993, %v4020
    %v4022 = vcombine.high %v4000, %v4000
    %v4023 = vcombine.high %v4007, %v4007
    %v4024 = vcombine.high %v4014, %v4014
    %v4025 = vcombine.high %v4021, %v4021
    %v4026 = vlaneseq
    %v4027 = vshrl.u32 %v4026, 7
    %v4028 = vsub.s32 0, %v4027
    %v4029 = vrot.slane %v3951, %v4028
    %v4030 = vlaneseq
    %v4031 = vshrl.u32 %v4030, 7
    %v4032 = vsub.s32 0, %v4031
    %v4033 = vrot.slane %v3965, %v4032
    %v4034 = vlaneseq
    %v4035 = vshrl.u32 %v4034, 7
    %v4036 = vsub.s32 0, %v4035
    %v4037 = vrot.slane %v3973, %v4036
    %v4038 = vlaneseq
    %v4039 = vshrl.u32 %v4038, 7
    %v4040 = vsub.s32 0, %v4039
    %v4041 = vrot.slane %v3975, %v4040
    %v4042 = vlaneseq
    %v4043 = vshrl.u32 %v4042, 7
    %v4044 = vsub.s32 0, %v4043
    %v4045 = vrot.slane %v3958, %v4044
    %v4046 = vlaneseq
    %v4047 = vshrl.u32 %v4046, 7
    %v4048 = vsub.s32 0, %v4047
    %v4049 = vrot.slane %v3972, %v4048
    %v4050 = vlaneseq
    %v4051 = vshrl.u32 %v4050, 7
    %v4052 = vsub.s32 0, %v4051
    %v4053 = vrot.slane %v3974, %v4052
    %v4054 = vlaneseq
    %v4055 = vshrl.u32 %v4054, 7
    %v4056 = vsub.s32 0, %v4055
    %v4057 = vrot.slane %v3976, %v4056
    %v4058 = vlaneseq
    %v4059 = vshrl.u32 %v4058, 7
    %v4060 = vsub.s32 0, %v4059
    %v4061 = vrot.slane %v4000, %v4060
    %v4062 = vlaneseq
    %v4063 = vshrl.u32 %v4062, 7
    %v4064 = vsub.s32 0, %v4063
    %v4065 = vrot.slane %v4014, %v4064
    %v4066 = vlaneseq
    %v4067 = vshrl.u32 %v4066, 7
    %v4068 = vsub.s32 0, %v4067
    %v4069 = vrot.slane %v4022, %v4068
    %v4070 = vlaneseq
    %v4071 = vshrl.u32 %v4070, 7
    %v4072 = vsub.s32 0, %v4071
    %v4073 = vrot.slane %v4024, %v4072
    %v4074 = vlaneseq
    %v4075 = vshrl.u32 %v4074, 7
    %v4076 = vsub.s32 0, %v4075
    %v4077 = vrot.slane %v4007, %v4076
    %v4078 = vlaneseq
    %v4079 = vshrl.u32 %v4078, 7
    %v4080 = vsub.s32 0, %v4079
    %v4081 = vrot.slane %v4021, %v4080
    %v4082 = vlaneseq
    %v4083 = vshrl.u32 %v4082, 7
    %v4084 = vsub.s32 0, %v4083
    %v4085 = vrot.slane %v4023, %v4084
    %v4086 = vlaneseq
    %v4087 = vshrl.u32 %v4086, 7
    %v4088 = vsub.s32 0, %v4087
    %v4089 = vrot.slane %v4025, %v4088
    %v4106 = vmul.f32 %v3800, %v4029
    %v4107 = vmul.f32 %v3803, %v4029
    %v4108 = vmul.f32 %v3808, %v4033
    %v4109 = vmul.f32 %v3811, %v4033
    %v4110 = vmul.f32 %v3816, %v4037
    %v4111 = vmul.f32 %v3819, %v4037
    %v4112 = vmul.f32 %v3824, %v4041
    %v4113 = vmul.f32 %v3827, %v4041
    %v4114 = vmul.f32 %v3832, %v4045
    %v4115 = vmul.f32 %v3835, %v4045
    %v4116 = vmul.f32 %v3840, %v4049
    %v4117 = vmul.f32 %v3843, %v4049
    %v4118 = vmul.f32 %v3848, %v4053
    %v4119 = vmul.f32 %v3851, %v4053
    %v4120 = vmul.f32 %v3856, %v4057
    %v4121 = vmul.f32 %v3859, %v4057
    %v4122 = vmul.f32 %v3864, %v4061
    %v4123 = vmul.f32 %v3867, %v4061
    %v4124 = vmul.f32 %v3872, %v4065
    %v4125 = vmul.f32 %v3875, %v4065
    %v4126 = vmul.f32 %v3880, %v4069
    %v4127 = vmul.f32 %v3883, %v4069
    %v4128 = vmul.f32 %v3888, %v4073
    %v4129 = vmul.f32 %v3891, %v4073
    %v4130 = vmul.f32 %v3896, %v4077
    %v4131 = vmul.f32 %v3899, %v4077
    %v4132 = vmul.f32 %v3904, %v4081
    %v4133 = vmul.f32 %v3907, %v4081
    %v4134 = vmul.f32 %v3912, %v4085
    %v4135 = vmul.f32 %v3915, %v4085
    %v4136 = vmul.f32 %v3920, %v4089
    %v4137 = vmul.f32 %v3923, %v4089
    %v4138 = vadd.f32 %v4106, %v4108
    %v4139 = vadd.f32 %v4138, %v4110
    %v4140 = vadd.f32 %v4139, %v4112
    %v4141 = vadd.f32 %v4140, %v4114
    %v4142 = vadd.f32 %v4141, %v4116
    %v4143 = vadd.f32 %v4142, %v4118
    %v4144 = vadd.f32 %v4143, %v4120
    %v4145 = vadd.f32 %v4144, %v4122
    %v4146 = vadd.f32 %v4145, %v4124
    %v4147 = vadd.f32 %v4146, %v4126
    %v4148 = vadd.f32 %v4147, %v4128
    %v4149 = vadd.f32 %v4148, %v4130
    %v4150 = vadd.f32 %v4149, %v4132
    %v4151 = vadd.f32 %v4150, %v4134
    %v4152 = vadd.f32 %v4151, %v4136
    %v4153 = vadd.f32 %v4107, %v4109
    %v4154 = vadd.f32 %v4153, %v4111
    %v4155 = vadd.f32 %v4154, %v4113
    %v4156 = vadd.f32 %v4155, %v4115
    %v4157 = vadd.f32 %v4156, %v4117
    %v4158 = vadd.f32 %v4157, %v4119
    %v4159 = vadd.f32 %v4158, %v4121
    %v4160 = vadd.f32 %v4159, %v4123
    %v4161 = vadd.f32 %v4160, %v4125
    %v4162 = vadd.f32 %v4161, %v4127
    %v4163 = vadd.f32 %v4162, %v4129
    %v4164 = vadd.f32 %v4163, %v4131
    %v4165 = vadd.f32 %v4164, %v4133
    %v4166 = vadd.f32 %v4165, %v4135
    %v4167 = vadd.f32 %v4166, %v4137
    %v4168 = vpack.c.bf16 %v4167, %v4152
    %4169 = vmatprep.subr.bf16.mxu0 0
    %4170 = vmatpush1.bf16.msra.mxu0 %v2302
    %4171 = vmatprep.subr.bf16.mxu0 0
    %4172 = vmatpush1.bf16.msra.mxu0 %v2303
    %4173 = vmatprep.subr.bf16.mxu0 0
    %4174 = vmatpush1.bf16.msra.mxu0 %v2304
    %4175 = vmatprep.subr.bf16.mxu0 0
    %4176 = vmatpush1.bf16.msra.mxu0 %v2305
    %4177 = vmatprep.subr.bf16.mxu0 0
    %4178 = vmatpush1.bf16.msra.mxu0 %v2306
    %4179 = vmatprep.subr.bf16.mxu0 0
    %4180 = vmatpush1.bf16.msra.mxu0 %v2307
    %4181 = vmatprep.subr.bf16.mxu0 0
    %4182 = vmatpush1.bf16.msra.mxu0 %v2308
    %4183 = vmatprep.subr.bf16.mxu0 0
    %4184 = vmatpush1.bf16.msra.mxu0 %v2309
    %4185 = vmatprep.subr.bf16.mxu0 0
    %4186 = vmatpush1.bf16.msra.mxu0 0
    %4187 = vmatprep.subr.bf16.mxu0 0
    %4188 = vmatpush1.bf16.msra.mxu0 0
    %4189 = vmatprep.subr.bf16.mxu0 0
    %4190 = vmatpush1.bf16.msra.mxu0 0
    %4191 = vmatprep.subr.bf16.mxu0 0
    %4192 = vmatpush1.bf16.msra.mxu0 0
    %4193 = vmatprep.subr.bf16.mxu0 0
    %4194 = vmatpush1.bf16.msra.mxu0 0
    %4195 = vmatprep.subr.bf16.mxu0 0
    %4196 = vmatpush1.bf16.msra.mxu0 0
    %4197 = vmatprep.subr.bf16.mxu0 0
    %4198 = vmatpush1.bf16.msra.mxu0 0
    %4199 = vmatprep.subr.bf16.mxu0 0
    %4200 = vmatpush1.bf16.msra.mxu0 0
    %4201 = vmatprep.mubr.bf16.mxu0 0
    %4202 = vmatmul.mubr.bf16.gmra.mrb[0].mxu0 %v4168
    %v4203 = vpop.f32.mrb[0].mxu0
    %v4204 = vadd.f32 0.0, %v4203
    %v4205 = vpop.f32.mrb[0].mxu0
    %v4206 = vpop.f32.mrb[0].mxu0
    %v4207 = vadd.f32 0.0, %v4206
    %v4208 = vpop.f32.mrb[0].mxu0
    %4209 = vdwg.mxu0
    %v4210 = vsel %vm531, %v4204, 0.0
    %v4211 = vsel %vm531, %v4207, 0.0
    %v4212 = vadd.f32 %v4210, %v4211
    %v4213 = vrot.slane %v4212, 4
    %v4214 = vadd.f32 %v4212, %v4213
    %v4215 = vrot.slane %v4214, 2
    %v4216 = vadd.f32 %v4214, %v4215
    %v4217 = vrot.slane %v4216, 1
    %v4218 = vadd.f32 %v4216, %v4217
    %v4219 = vmul.f32 %v4218, %v2368
    %v4220 = vsub.f32 %v4204, %v4219
    %v4221 = vsub.f32 %v4207, %v4219
    %v4222 = vmul.f32 %v4220, %v4220
    %v4223 = vmul.f32 %v4221, %v4221
    %v4224 = vsel %vm531, %v4222, 0.0
    %v4225 = vsel %vm531, %v4223, 0.0
    %v4226 = vadd.f32 %v4224, %v4225
    %v4227 = vrot.slane %v4226, 4
    %v4228 = vadd.f32 %v4226, %v4227
    %v4229 = vrot.slane %v4228, 2
    %v4230 = vadd.f32 %v4228, %v4229
    %v4231 = vrot.slane %v4230, 1
    %v4232 = vadd.f32 %v4230, %v4231
    %v4233 = vmul.f32 %v4232, %v2368
    %v4234 = vadd.f32 %v4233, 1e-05
    %v4235 = vrsqrt.pop %v4234
    %v4236 = vmul.f32 %v4220, %v4235
    %v4237 = vmul.f32 %v4221, %v4235
    %v4239 = vlaneseq
    %v4240 = vshrl.u32 %v4239, 7
    %v4241 = vsub.s32 0, %v4240
    %v4242 = vrot.slane %v2433, %v4241
    %v4244 = vmul.f32 %v4236, %v4242
    %v4245 = vmul.f32 %v4237, %v4242
    %v4247 = vlaneseq
    %v4248 = vshrl.u32 %v4247, 7
    %v4249 = vsub.s32 0, %v4248
    %v4250 = vrot.slane %v2434, %v4249
    %v4252 = vadd.f32 %v4244, %v4250
    %v4253 = vadd.f32 %v4245, %v4250
    %v4254 = vpack.c.bf16 %v4253, %v4252
    %v4256 = vsel %vm531, %v4254, 0
    %4258 = vmatprep.subr.bf16.mxu0 %v2457
    %4259 = vmatpush1.bf16.msra.mxu0 %v2456
    %4260 = vmatprep.subr.bf16.mxu0 %v2460
    %4261 = vmatpush1.bf16.msra.mxu0 %v2459
    %4262 = vmatprep.subr.bf16.mxu0 0
    %4263 = vmatpush1.bf16.msra.mxu0 0
    %4264 = vmatprep.subr.bf16.mxu0 0
    %4265 = vmatpush1.bf16.msra.mxu0 0
    %4266 = vmatprep.subr.bf16.mxu0 0
    %4267 = vmatpush1.bf16.msra.mxu0 0
    %4268 = vmatprep.subr.bf16.mxu0 0
    %4269 = vmatpush1.bf16.msra.mxu0 0
    %4270 = vmatprep.subr.bf16.mxu0 0
    %4271 = vmatpush1.bf16.msra.mxu0 0
    %4272 = vmatprep.subr.bf16.mxu0 0
    %4273 = vmatpush1.bf16.msra.mxu0 0
    %4274 = vmatprep.subr.bf16.mxu0 0
    %4275 = vmatpush1.bf16.msra.mxu0 0
    %4276 = vmatprep.subr.bf16.mxu0 0
    %4277 = vmatpush1.bf16.msra.mxu0 0
    %4278 = vmatprep.subr.bf16.mxu0 0
    %4279 = vmatpush1.bf16.msra.mxu0 0
    %4280 = vmatprep.subr.bf16.mxu0 0
    %4281 = vmatpush1.bf16.msra.mxu0 0
    %4282 = vmatprep.subr.bf16.mxu0 0
    %4283 = vmatpush1.bf16.msra.mxu0 0
    %4284 = vmatprep.subr.bf16.mxu0 0
    %4285 = vmatpush1.bf16.msra.mxu0 0
    %4286 = vmatprep.subr.bf16.mxu0 0
    %4287 = vmatpush1.bf16.msra.mxu0 0
    %4288 = vmatprep.subr.bf16.mxu0 0
    %4289 = vmatpush1.bf16.msra.mxu0 0
    %4290 = vmatprep.mubr.bf16.mxu0 0
    %4291 = vmatmul.mubr.bf16.gmra.mrb[0].mxu0 %v4256
    %v4292 = vpop.f32.mrb[0].mxu0
    %v4293 = vadd.f32 0.0, %v4292
    %v4294 = vpop.f32.mrb[0].mxu0
    %v4295 = vadd.f32 0.0, %v4294
    %v4296 = vpop.f32.mrb[0].mxu0
    %v4297 = vadd.f32 0.0, %v4296
    %v4298 = vpop.f32.mrb[0].mxu0
    %v4299 = vadd.f32 0.0, %v4298
    %4300 = vdwg.mxu0
    %4301 = vmatprep.subr.bf16.mxu0 0
    %4302 = vmatpush1.bf16.msra.mxu0 %v2458
    %4303 = vmatprep.subr.bf16.mxu0 0
    %4304 = vmatpush1.bf16.msra.mxu0 %v2461
    %4305 = vmatprep.subr.bf16.mxu0 0
    %4306 = vmatpush1.bf16.msra.mxu0 0
    %4307 = vmatprep.subr.bf16.mxu0 0
    %4308 = vmatpush1.bf16.msra.mxu0 0
    %4309 = vmatprep.subr.bf16.mxu0 0
    %4310 = vmatpush1.bf16.msra.mxu0 0
    %4311 = vmatprep.subr.bf16.mxu0 0
    %4312 = vmatpush1.bf16.msra.mxu0 0
    %4313 = vmatprep.subr.bf16.mxu0 0
    %4314 = vmatpush1.bf16.msra.mxu0 0
    %4315 = vmatprep.subr.bf16.mxu0 0
    %4316 = vmatpush1.bf16.msra.mxu0 0
    %4317 = vmatprep.subr.bf16.mxu0 0
    %4318 = vmatpush1.bf16.msra.mxu0 0
    %4319 = vmatprep.subr.bf16.mxu0 0
    %4320 = vmatpush1.bf16.msra.mxu0 0
    %4321 = vmatprep.subr.bf16.mxu0 0
    %4322 = vmatpush1.bf16.msra.mxu0 0
    %4323 = vmatprep.subr.bf16.mxu0 0
    %4324 = vmatpush1.bf16.msra.mxu0 0
    %4325 = vmatprep.subr.bf16.mxu0 0
    %4326 = vmatpush1.bf16.msra.mxu0 0
    %4327 = vmatprep.subr.bf16.mxu0 0
    %4328 = vmatpush1.bf16.msra.mxu0 0
    %4329 = vmatprep.subr.bf16.mxu0 0
    %4330 = vmatpush1.bf16.msra.mxu0 0
    %4331 = vmatprep.subr.bf16.mxu0 0
    %4332 = vmatpush1.bf16.msra.mxu0 0
    %4333 = vmatprep.mubr.bf16.mxu0 0
    %4334 = vmatmul.mubr.bf16.gmra.mrb[0].mxu0 %v4256
    %v4335 = vpop.f32.mrb[0].mxu0
    %v4336 = vadd.f32 0.0, %v4335
    %v4337 = vpop.f32.mrb[0].mxu0
    %v4338 = vpop.f32.mrb[0].mxu0
    %v4339 = vadd.f32 0.0, %v4338
    %v4340 = vpop.f32.mrb[0].mxu0
    %4341 = vdwg.mxu0
    %v4342 = vadd.f32 %v4293, %v2559
    %v4343 = vadd.f32 %v4297, %v2559
    %4360 = vrot.lane.b32.xlu0 %v3365, 124
    %v4361 = vpop.permute.xlu0 %4360
    %4362 = vrot.lane.b32.xlu0 %v3366, 124
    %v4363 = vpop.permute.xlu0 %4362
    %4364 = vrot.lane.b32.xlu0 %v3367, 124
    %v4365 = vpop.permute.xlu0 %4364
    %4366 = vrot.lane.b32.xlu0 %v3368, 124
    %v4367 = vpop.permute.xlu0 %4366
    %4368 = vrot.lane.b32.xlu0 %v3369, 124
    %v4369 = vpop.permute.xlu0 %4368
    %4370 = vrot.lane.b32.xlu0 %v3370, 124
    %v4371 = vpop.permute.xlu0 %4370
    %4372 = vrot.lane.b32.xlu0 %v3371, 124
    %v4373 = vpop.permute.xlu0 %4372
    %4374 = vrot.lane.b32.xlu0 %v3372, 124
    %v4375 = vpop.permute.xlu0 %4374
    %4376 = vrot.lane.b32.xlu0 %v3373, 124
    %v4377 = vpop.permute.xlu0 %4376
    %4378 = vrot.lane.b32.xlu0 %v3374, 124
    %v4379 = vpop.permute.xlu0 %4378
    %4380 = vrot.lane.b32.xlu0 %v3375, 124
    %v4381 = vpop.permute.xlu0 %4380
    %4382 = vrot.lane.b32.xlu0 %v3376, 124
    %v4383 = vpop.permute.xlu0 %4382
    %4384 = vrot.lane.b32.xlu0 %v3377, 124
    %v4385 = vpop.permute.xlu0 %4384
    %4386 = vrot.lane.b32.xlu0 %v3378, 124
    %v4387 = vpop.permute.xlu0 %4386
    %4388 = vrot.lane.b32.xlu0 %v3379, 124
    %v4389 = vpop.permute.xlu0 %4388
    %4390 = vrot.lane.b32.xlu0 %v3380, 124
    %v4391 = vpop.permute.xlu0 %4390
    %v4393 = vsel %vm531, %v4361, 0
    %v4396 = vsel %vm531, %v4363, 0
    %v4399 = vsel %vm531, %v4365, 0
    %v4402 = vsel %vm531, %v4367, 0
    %v4405 = vsel %vm531, %v4369, 0
    %v4408 = vsel %vm531, %v4371, 0
    %v4411 = vsel %vm531, %v4373, 0
    %v4414 = vsel %vm531, %v4375, 0
    %v4417 = vsel %vm531, %v4377, 0
    %v4420 = vsel %vm531, %v4379, 0
    %v4423 = vsel %vm531, %v4381, 0
    %v4426 = vsel %vm531, %v4383, 0
    %v4429 = vsel %vm531, %v4385, 0
    %v4432 = vsel %vm531, %v4387, 0
    %v4435 = vsel %vm531, %v4389, 0
    %v4438 = vsel %vm531, %v4391, 0
    %4440 = vmatprep.subr.bf16.mxu0 0
    %4441 = vmatpush1.bf16.msra.mxu0 %v2619
    %4442 = vmatprep.subr.bf16.mxu0 0
    %4443 = vmatpush1.bf16.msra.mxu0 %v2620
    %4444 = vmatprep.subr.bf16.mxu0 0
    %4445 = vmatpush1.bf16.msra.mxu0 0
    %4446 = vmatprep.subr.bf16.mxu0 0
    %4447 = vmatpush1.bf16.msra.mxu0 0
    %4448 = vmatprep.subr.bf16.mxu0 0
    %4449 = vmatpush1.bf16.msra.mxu0 0
    %4450 = vmatprep.subr.bf16.mxu0 0
    %4451 = vmatpush1.bf16.msra.mxu0 0
    %4452 = vmatprep.subr.bf16.mxu0 0
    %4453 = vmatpush1.bf16.msra.mxu0 0
    %4454 = vmatprep.subr.bf16.mxu0 0
    %4455 = vmatpush1.bf16.msra.mxu0 0
    %4456 = vmatprep.subr.bf16.mxu0 0
    %4457 = vmatpush1.bf16.msra.mxu0 0
    %4458 = vmatprep.subr.bf16.mxu0 0
    %4459 = vmatpush1.bf16.msra.mxu0 0
    %4460 = vmatprep.subr.bf16.mxu0 0
    %4461 = vmatpush1.bf16.msra.mxu0 0
    %4462 = vmatprep.subr.bf16.mxu0 0
    %4463 = vmatpush1.bf16.msra.mxu0 0
    %4464 = vmatprep.subr.bf16.mxu0 0
    %4465 = vmatpush1.bf16.msra.mxu0 0
    %4466 = vmatprep.subr.bf16.mxu0 0
    %4467 = vmatpush1.bf16.msra.mxu0 0
    %4468 = vmatprep.subr.bf16.mxu0 0
    %4469 = vmatpush1.bf16.msra.mxu0 0
    %4470 = vmatprep.subr.bf16.mxu0 0
    %4471 = vmatpush1.bf16.msra.mxu0 0
    %4472 = vmatprep.mubr.bf16.mxu0 0
    %4473 = vmatmul.mubr.bf16.gmra.mrb[0].mxu0 %v4393
    %v4474 = vpop.f32.mrb[0].mxu0
    %v4475 = vadd.f32 0.0, %v4474
    %v4476 = vpop.f32.mrb[0].mxu0
    %v4477 = vpop.f32.mrb[0].mxu0
    %v4478 = vadd.f32 0.0, %v4477
    %v4479 = vpop.f32.mrb[0].mxu0
    %4480 = vmatprep.mubr.bf16.mxu0 0
    %4481 = vmatmul.mubr.bf16.gmra.mrb[0].mxu0 %v4396
    %v4482 = vpop.f32.mrb[0].mxu0
    %v4483 = vadd.f32 0.0, %v4482
    %v4484 = vpop.f32.mrb[0].mxu0
    %v4485 = vpop.f32.mrb[0].mxu0
    %v4486 = vadd.f32 0.0, %v4485
    %v4487 = vpop.f32.mrb[0].mxu0
    %4488 = vmatprep.mubr.bf16.mxu0 0
    %4489 = vmatmul.mubr.bf16.gmra.mrb[0].mxu0 %v4399
    %v4490 = vpop.f32.mrb[0].mxu0
    %v4491 = vadd.f32 0.0, %v4490
    %v4492 = vpop.f32.mrb[0].mxu0
    %v4493 = vpop.f32.mrb[0].mxu0
    %v4494 = vadd.f32 0.0, %v4493
    %v4495 = vpop.f32.mrb[0].mxu0
    %4496 = vmatprep.mubr.bf16.mxu0 0
    %4497 = vmatmul.mubr.bf16.gmra.mrb[0].mxu0 %v4402
    %v4498 = vpop.f32.mrb[0].mxu0
    %v4499 = vadd.f32 0.0, %v4498
    %v4500 = vpop.f32.mrb[0].mxu0
    %v4501 = vpop.f32.mrb[0].mxu0
    %v4502 = vadd.f32 0.0, %v4501
    %v4503 = vpop.f32.mrb[0].mxu0
    %4504 = vmatprep.mubr.bf16.mxu0 0
    %4505 = vmatmul.mubr.bf16.gmra.mrb[0].mxu0 %v4405
    %v4506 = vpop.f32.mrb[0].mxu0
    %v4507 = vadd.f32 0.0, %v4506
    %v4508 = vpop.f32.mrb[0].mxu0
    %v4509 = vpop.f32.mrb[0].mxu0
    %v4510 = vadd.f32 0.0, %v4509
    %v4511 = vpop.f32.mrb[0].mxu0
    %4512 = vmatprep.mubr.bf16.mxu0 0
    %4513 = vmatmul.mubr.bf16.gmra.mrb[0].mxu0 %v4408
    %v4514 = vpop.f32.mrb[0].mxu0
    %v4515 = vadd.f32 0.0, %v4514
    %v4516 = vpop.f32.mrb[0].mxu0
    %v4517 = vpop.f32.mrb[0].mxu0
    %v4518 = vadd.f32 0.0, %v4517
    %v4519 = vpop.f32.mrb[0].mxu0
    %4520 = vmatprep.mubr.bf16.mxu0 0
    %4521 = vmatmul.mubr.bf16.gmra.mrb[0].mxu0 %v4411
    %v4522 = vpop.f32.mrb[0].mxu0
    %v4523 = vadd.f32 0.0, %v4522
    %v4524 = vpop.f32.mrb[0].mxu0
    %v4525 = vpop.f32.mrb[0].mxu0
    %v4526 = vadd.f32 0.0, %v4525
    %v4527 = vpop.f32.mrb[0].mxu0
    %4528 = vmatprep.mubr.bf16.mxu0 0
    %4529 = vmatmul.mubr.bf16.gmra.mrb[0].mxu0 %v4414
    %v4530 = vpop.f32.mrb[0].mxu0
    %v4531 = vadd.f32 0.0, %v4530
    %v4532 = vpop.f32.mrb[0].mxu0
    %v4533 = vpop.f32.mrb[0].mxu0
    %v4534 = vadd.f32 0.0, %v4533
    %v4535 = vpop.f32.mrb[0].mxu0
    %4536 = vmatprep.mubr.bf16.mxu0 0
    %4537 = vmatmul.mubr.bf16.gmra.mrb[0].mxu0 %v4417
    %v4538 = vpop.f32.mrb[0].mxu0
    %v4539 = vadd.f32 0.0, %v4538
    %v4540 = vpop.f32.mrb[0].mxu0
    %v4541 = vpop.f32.mrb[0].mxu0
    %v4542 = vadd.f32 0.0, %v4541
    %v4543 = vpop.f32.mrb[0].mxu0
    %4544 = vmatprep.mubr.bf16.mxu0 0
    %4545 = vmatmul.mubr.bf16.gmra.mrb[0].mxu0 %v4420
    %v4546 = vpop.f32.mrb[0].mxu0
    %v4547 = vadd.f32 0.0, %v4546
    %v4548 = vpop.f32.mrb[0].mxu0
    %v4549 = vpop.f32.mrb[0].mxu0
    %v4550 = vadd.f32 0.0, %v4549
    %v4551 = vpop.f32.mrb[0].mxu0
    %4552 = vmatprep.mubr.bf16.mxu0 0
    %4553 = vmatmul.mubr.bf16.gmra.mrb[0].mxu0 %v4423
    %v4554 = vpop.f32.mrb[0].mxu0
    %v4555 = vadd.f32 0.0, %v4554
    %v4556 = vpop.f32.mrb[0].mxu0
    %v4557 = vpop.f32.mrb[0].mxu0
    %v4558 = vadd.f32 0.0, %v4557
    %v4559 = vpop.f32.mrb[0].mxu0
    %4560 = vmatprep.mubr.bf16.mxu0 0
    %4561 = vmatmul.mubr.bf16.gmra.mrb[0].mxu0 %v4426
    %v4562 = vpop.f32.mrb[0].mxu0
    %v4563 = vadd.f32 0.0, %v4562
    %v4564 = vpop.f32.mrb[0].mxu0
    %v4565 = vpop.f32.mrb[0].mxu0
    %v4566 = vadd.f32 0.0, %v4565
    %v4567 = vpop.f32.mrb[0].mxu0
    %4568 = vmatprep.mubr.bf16.mxu0 0
    %4569 = vmatmul.mubr.bf16.gmra.mrb[0].mxu0 %v4429
    %v4570 = vpop.f32.mrb[0].mxu0
    %v4571 = vadd.f32 0.0, %v4570
    %v4572 = vpop.f32.mrb[0].mxu0
    %v4573 = vpop.f32.mrb[0].mxu0
    %v4574 = vadd.f32 0.0, %v4573
    %v4575 = vpop.f32.mrb[0].mxu0
    %4576 = vmatprep.mubr.bf16.mxu0 0
    %4577 = vmatmul.mubr.bf16.gmra.mrb[0].mxu0 %v4432
    %v4578 = vpop.f32.mrb[0].mxu0
    %v4579 = vadd.f32 0.0, %v4578
    %v4580 = vpop.f32.mrb[0].mxu0
    %v4581 = vpop.f32.mrb[0].mxu0
    %v4582 = vadd.f32 0.0, %v4581
    %v4583 = vpop.f32.mrb[0].mxu0
    %4584 = vmatprep.mubr.bf16.mxu0 0
    %4585 = vmatmul.mubr.bf16.gmra.mrb[0].mxu0 %v4435
    %v4586 = vpop.f32.mrb[0].mxu0
    %v4587 = vadd.f32 0.0, %v4586
    %v4588 = vpop.f32.mrb[0].mxu0
    %v4589 = vpop.f32.mrb[0].mxu0
    %v4590 = vadd.f32 0.0, %v4589
    %v4591 = vpop.f32.mrb[0].mxu0
    %4592 = vmatprep.mubr.bf16.mxu0 0
    %4593 = vmatmul.mubr.bf16.gmra.mrb[0].mxu0 %v4438
    %v4594 = vpop.f32.mrb[0].mxu0
    %v4595 = vadd.f32 0.0, %v4594
    %v4596 = vpop.f32.mrb[0].mxu0
    %v4597 = vpop.f32.mrb[0].mxu0
    %v4598 = vadd.f32 0.0, %v4597
    %v4599 = vpop.f32.mrb[0].mxu0
    %4600 = vdwg.mxu0
    %v4603 = vcombine.high %v4342, %v4342
    %v4605 = vunpack.c.l.s4 1966171168
    %v4606 = vunpack.c.0.s8 %v4605
    %v4607 = vlaneseq
    %v4608 = vshrl.u32 %v4607, 7
    %v4609 = vsub.s32 %v4606, %v4608
    %v4610 = vrot.slane %v4342, %v4609
    %v4612 = vunpack.c.l.s4 1966171168
    %v4613 = vunpack.c.0.s8 %v4612
    %v4614 = vlaneseq
    %v4615 = vshrl.u32 %v4614, 7
    %v4616 = vsub.s32 %v4613, %v4615
    %v4617 = vrot.slane %v4603, %v4616
    %v4618 = vcombine.high %v4610, %v4610
    %v4619 = vcombine.high %v4617, %v4617
    %v4621 = vunpack.c.l.s4 1966171168
    %v4622 = vunpack.c.0.s8 %v4621
    %v4623 = vlaneseq
    %v4624 = vshrl.u32 %v4623, 7
    %v4625 = vsub.s32 %v4622, %v4624
    %v4626 = vrot.slane %v4610, %v4625
    %v4628 = vunpack.c.l.s4 1966171168
    %v4629 = vunpack.c.0.s8 %v4628
    %v4630 = vlaneseq
    %v4631 = vshrl.u32 %v4630, 7
    %v4632 = vsub.s32 %v4629, %v4631
    %v4633 = vrot.slane %v4617, %v4632
    %v4635 = vunpack.c.l.s4 1966171168
    %v4636 = vunpack.c.0.s8 %v4635
    %v4637 = vlaneseq
    %v4638 = vshrl.u32 %v4637, 7
    %v4639 = vsub.s32 %v4636, %v4638
    %v4640 = vrot.slane %v4618, %v4639
    %v4642 = vunpack.c.l.s4 1966171168
    %v4643 = vunpack.c.0.s8 %v4642
    %v4644 = vlaneseq
    %v4645 = vshrl.u32 %v4644, 7
    %v4646 = vsub.s32 %v4643, %v4645
    %v4647 = vrot.slane %v4619, %v4646
    %v4648 = vcombine.high %v4626, %v4626
    %v4649 = vcombine.high %v4633, %v4633
    %v4650 = vcombine.high %v4640, %v4640
    %v4651 = vcombine.high %v4647, %v4647
    %v4652 = vcombine.high %v4343, %v4343
    %v4654 = vunpack.c.l.s4 1966171168
    %v4655 = vunpack.c.0.s8 %v4654
    %v4656 = vlaneseq
    %v4657 = vshrl.u32 %v4656, 7
    %v4658 = vsub.s32 %v4655, %v4657
    %v4659 = vrot.slane %v4343, %v4658
    %v4661 = vunpack.c.l.s4 1966171168
    %v4662 = vunpack.c.0.s8 %v4661
    %v4663 = vlaneseq
    %v4664 = vshrl.u32 %v4663, 7
    %v4665 = vsub.s32 %v4662, %v4664
    %v4666 = vrot.slane %v4652, %v4665
    %v4667 = vcombine.high %v4659, %v4659
    %v4668 = vcombine.high %v4666, %v4666
    %v4670 = vunpack.c.l.s4 1966171168
    %v4671 = vunpack.c.0.s8 %v4670
    %v4672 = vlaneseq
    %v4673 = vshrl.u32 %v4672, 7
    %v4674 = vsub.s32 %v4671, %v4673
    %v4675 = vrot.slane %v4659, %v4674
    %v4677 = vunpack.c.l.s4 1966171168
    %v4678 = vunpack.c.0.s8 %v4677
    %v4679 = vlaneseq
    %v4680 = vshrl.u32 %v4679, 7
    %v4681 = vsub.s32 %v4678, %v4680
    %v4682 = vrot.slane %v4666, %v4681
    %v4684 = vunpack.c.l.s4 1966171168
    %v4685 = vunpack.c.0.s8 %v4684
    %v4686 = vlaneseq
    %v4687 = vshrl.u32 %v4686, 7
    %v4688 = vsub.s32 %v4685, %v4687
    %v4689 = vrot.slane %v4667, %v4688
    %v4691 = vunpack.c.l.s4 1966171168
    %v4692 = vunpack.c.0.s8 %v4691
    %v4693 = vlaneseq
    %v4694 = vshrl.u32 %v4693, 7
    %v4695 = vsub.s32 %v4692, %v4694
    %v4696 = vrot.slane %v4668, %v4695
    %v4697 = vcombine.high %v4675, %v4675
    %v4698 = vcombine.high %v4682, %v4682
    %v4699 = vcombine.high %v4689, %v4689
    %v4700 = vcombine.high %v4696, %v4696
    %v4701 = vlaneseq
    %v4702 = vshrl.u32 %v4701, 7
    %v4703 = vsub.s32 0, %v4702
    %v4704 = vrot.slane %v4626, %v4703
    %v4705 = vlaneseq
    %v4706 = vshrl.u32 %v4705, 7
    %v4707 = vsub.s32 0, %v4706
    %v4708 = vrot.slane %v4640, %v4707
    %v4709 = vlaneseq
    %v4710 = vshrl.u32 %v4709, 7
    %v4711 = vsub.s32 0, %v4710
    %v4712 = vrot.slane %v4648, %v4711
    %v4713 = vlaneseq
    %v4714 = vshrl.u32 %v4713, 7
    %v4715 = vsub.s32 0, %v4714
    %v4716 = vrot.slane %v4650, %v4715
    %v4717 = vlaneseq
    %v4718 = vshrl.u32 %v4717, 7
    %v4719 = vsub.s32 0, %v4718
    %v4720 = vrot.slane %v4633, %v4719
    %v4721 = vlaneseq
    %v4722 = vshrl.u32 %v4721, 7
    %v4723 = vsub.s32 0, %v4722
    %v4724 = vrot.slane %v4647, %v4723
    %v4725 = vlaneseq
    %v4726 = vshrl.u32 %v4725, 7
    %v4727 = vsub.s32 0, %v4726
    %v4728 = vrot.slane %v4649, %v4727
    %v4729 = vlaneseq
    %v4730 = vshrl.u32 %v4729, 7
    %v4731 = vsub.s32 0, %v4730
    %v4732 = vrot.slane %v4651, %v4731
    %v4733 = vlaneseq
    %v4734 = vshrl.u32 %v4733, 7
    %v4735 = vsub.s32 0, %v4734
    %v4736 = vrot.slane %v4675, %v4735
    %v4737 = vlaneseq
    %v4738 = vshrl.u32 %v4737, 7
    %v4739 = vsub.s32 0, %v4738
    %v4740 = vrot.slane %v4689, %v4739
    %v4741 = vlaneseq
    %v4742 = vshrl.u32 %v4741, 7
    %v4743 = vsub.s32 0, %v4742
    %v4744 = vrot.slane %v4697, %v4743
    %v4745 = vlaneseq
    %v4746 = vshrl.u32 %v4745, 7
    %v4747 = vsub.s32 0, %v4746
    %v4748 = vrot.slane %v4699, %v4747
    %v4749 = vlaneseq
    %v4750 = vshrl.u32 %v4749, 7
    %v4751 = vsub.s32 0, %v4750
    %v4752 = vrot.slane %v4682, %v4751
    %v4753 = vlaneseq
    %v4754 = vshrl.u32 %v4753, 7
    %v4755 = vsub.s32 0, %v4754
    %v4756 = vrot.slane %v4696, %v4755
    %v4757 = vlaneseq
    %v4758 = vshrl.u32 %v4757, 7
    %v4759 = vsub.s32 0, %v4758
    %v4760 = vrot.slane %v4698, %v4759
    %v4761 = vlaneseq
    %v4762 = vshrl.u32 %v4761, 7
    %v4763 = vsub.s32 0, %v4762
    %v4764 = vrot.slane %v4700, %v4763
    %v4781 = vadd.f32 %v4704, %v4295
    %v4782 = vadd.f32 %v4704, %v4299
    %v4783 = vadd.f32 %v4708, %v4295
    %v4784 = vadd.f32 %v4708, %v4299
    %v4785 = vadd.f32 %v4712, %v4295
    %v4786 = vadd.f32 %v4712, %v4299
    %v4787 = vadd.f32 %v4716, %v4295
    %v4788 = vadd.f32 %v4716, %v4299
    %v4789 = vadd.f32 %v4720, %v4295
    %v4790 = vadd.f32 %v4720, %v4299
    %v4791 = vadd.f32 %v4724, %v4295
    %v4792 = vadd.f32 %v4724, %v4299
    %v4793 = vadd.f32 %v4728, %v4295
    %v4794 = vadd.f32 %v4728, %v4299
    %v4795 = vadd.f32 %v4732, %v4295
    %v4796 = vadd.f32 %v4732, %v4299
    %v4797 = vadd.f32 %v4736, %v4295
    %v4798 = vadd.f32 %v4736, %v4299
    %v4799 = vadd.f32 %v4740, %v4295
    %v4800 = vadd.f32 %v4740, %v4299
    %v4801 = vadd.f32 %v4744, %v4295
    %v4802 = vadd.f32 %v4744, %v4299
    %v4803 = vadd.f32 %v4748, %v4295
    %v4804 = vadd.f32 %v4748, %v4299
    %v4805 = vadd.f32 %v4752, %v4295
    %v4806 = vadd.f32 %v4752, %v4299
    %v4807 = vadd.f32 %v4756, %v4295
    %v4808 = vadd.f32 %v4756, %v4299
    %v4809 = vadd.f32 %v4760, %v4295
    %v4810 = vadd.f32 %v4760, %v4299
    %v4811 = vadd.f32 %v4764, %v4295
    %v4812 = vadd.f32 %v4764, %v4299
    %v4813 = vadd.f32 %v4781, %v4475
    %v4814 = vadd.f32 %v4782, %v4478
    %v4815 = vadd.f32 %v4783, %v4483
    %v4816 = vadd.f32 %v4784, %v4486
    %v4817 = vadd.f32 %v4785, %v4491
    %v4818 = vadd.f32 %v4786, %v4494
    %v4819 = vadd.f32 %v4787, %v4499
    %v4820 = vadd.f32 %v4788, %v4502
    %v4821 = vadd.f32 %v4789, %v4507
    %v4822 = vadd.f32 %v4790, %v4510
    %v4823 = vadd.f32 %v4791, %v4515
    %v4824 = vadd.f32 %v4792, %v4518
    %v4825 = vadd.f32 %v4793, %v4523
    %v4826 = vadd.f32 %v4794, %v4526
    %v4827 = vadd.f32 %v4795, %v4531
    %v4828 = vadd.f32 %v4796, %v4534
    %v4829 = vadd.f32 %v4797, %v4539
    %v4830 = vadd.f32 %v4798, %v4542
    %v4831 = vadd.f32 %v4799, %v4547
    %v4832 = vadd.f32 %v4800, %v4550
    %v4833 = vadd.f32 %v4801, %v4555
    %v4834 = vadd.f32 %v4802, %v4558
    %v4835 = vadd.f32 %v4803, %v4563
    %v4836 = vadd.f32 %v4804, %v4566
    %v4837 = vadd.f32 %v4805, %v4571
    %v4838 = vadd.f32 %v4806, %v4574
    %v4839 = vadd.f32 %v4807, %v4579
    %v4840 = vadd.f32 %v4808, %v4582
    %v4841 = vadd.f32 %v4809, %v4587
    %v4842 = vadd.f32 %v4810, %v4590
    %v4843 = vadd.f32 %v4811, %v4595
    %v4844 = vadd.f32 %v4812, %v4598
    %v4845 = vmul.f32 %v4813, 0.01
    %v4846 = vmul.f32 %v4814, 0.01
    %v4847 = vmul.f32 %v4815, 0.01
    %v4848 = vmul.f32 %v4816, 0.01
    %v4849 = vmul.f32 %v4817, 0.01
    %v4850 = vmul.f32 %v4818, 0.01
    %v4851 = vmul.f32 %v4819, 0.01
    %v4852 = vmul.f32 %v4820, 0.01
    %v4853 = vmul.f32 %v4821, 0.01
    %v4854 = vmul.f32 %v4822, 0.01
    %v4855 = vmul.f32 %v4823, 0.01
    %v4856 = vmul.f32 %v4824, 0.01
    %v4857 = vmul.f32 %v4825, 0.01
    %v4858 = vmul.f32 %v4826, 0.01
    %v4859 = vmul.f32 %v4827, 0.01
    %v4860 = vmul.f32 %v4828, 0.01
    %v4861 = vmul.f32 %v4829, 0.01
    %v4862 = vmul.f32 %v4830, 0.01
    %v4863 = vmul.f32 %v4831, 0.01
    %v4864 = vmul.f32 %v4832, 0.01
    %v4865 = vmul.f32 %v4833, 0.01
    %v4866 = vmul.f32 %v4834, 0.01
    %v4867 = vmul.f32 %v4835, 0.01
    %v4868 = vmul.f32 %v4836, 0.01
    %v4869 = vmul.f32 %v4837, 0.01
    %v4870 = vmul.f32 %v4838, 0.01
    %v4871 = vmul.f32 %v4839, 0.01
    %v4872 = vmul.f32 %v4840, 0.01
    %v4873 = vmul.f32 %v4841, 0.01
    %v4874 = vmul.f32 %v4842, 0.01
    %v4875 = vmul.f32 %v4843, 0.01
    %v4876 = vmul.f32 %v4844, 0.01
    %v4877 = vmax.f32 %v4813, %v4845
    %v4878 = vmax.f32 %v4814, %v4846
    %v4879 = vmax.f32 %v4815, %v4847
    %v4880 = vmax.f32 %v4816, %v4848
    %v4881 = vmax.f32 %v4817, %v4849
    %v4882 = vmax.f32 %v4818, %v4850
    %v4883 = vmax.f32 %v4819, %v4851
    %v4884 = vmax.f32 %v4820, %v4852
    %v4885 = vmax.f32 %v4821, %v4853
    %v4886 = vmax.f32 %v4822, %v4854
    %v4887 = vmax.f32 %v4823, %v4855
    %v4888 = vmax.f32 %v4824, %v4856
    %v4889 = vmax.f32 %v4825, %v4857
    %v4890 = vmax.f32 %v4826, %v4858
    %v4891 = vmax.f32 %v4827, %v4859
    %v4892 = vmax.f32 %v4828, %v4860
    %v4893 = vmax.f32 %v4829, %v4861
    %v4894 = vmax.f32 %v4830, %v4862
    %v4895 = vmax.f32 %v4831, %v4863
    %v4896 = vmax.f32 %v4832, %v4864
    %v4897 = vmax.f32 %v4833, %v4865
    %v4898 = vmax.f32 %v4834, %v4866
    %v4899 = vmax.f32 %v4835, %v4867
    %v4900 = vmax.f32 %v4836, %v4868
    %v4901 = vmax.f32 %v4837, %v4869
    %v4902 = vmax.f32 %v4838, %v4870
    %v4903 = vmax.f32 %v4839, %v4871
    %v4904 = vmax.f32 %v4840, %v4872
    %v4905 = vmax.f32 %v4841, %v4873
    %v4906 = vmax.f32 %v4842, %v4874
    %v4907 = vmax.f32 %v4843, %v4875
    %v4908 = vmax.f32 %v4844, %v4876
    %v4909 = vpack.c.bf16 %v4878, %v4877
    %v4910 = vpack.c.bf16 %v4880, %v4879
    %v4911 = vpack.c.bf16 %v4882, %v4881
    %v4912 = vpack.c.bf16 %v4884, %v4883
    %v4913 = vpack.c.bf16 %v4886, %v4885
    %v4914 = vpack.c.bf16 %v4888, %v4887
    %v4915 = vpack.c.bf16 %v4890, %v4889
    %v4916 = vpack.c.bf16 %v4892, %v4891
    %v4917 = vpack.c.bf16 %v4894, %v4893
    %v4918 = vpack.c.bf16 %v4896, %v4895
    %v4919 = vpack.c.bf16 %v4898, %v4897
    %v4920 = vpack.c.bf16 %v4900, %v4899
    %v4921 = vpack.c.bf16 %v4902, %v4901
    %v4922 = vpack.c.bf16 %v4904, %v4903
    %v4923 = vpack.c.bf16 %v4906, %v4905
    %v4924 = vpack.c.bf16 %v4908, %v4907
    %4925 = vmatprep.subr.bf16.mxu0 0
    %4926 = vmatpush1.bf16.msra.mxu0 %v3188
    %4927 = vmatprep.subr.bf16.mxu0 0
    %4928 = vmatpush1.bf16.msra.mxu0 %v3189
    %4929 = vmatprep.subr.bf16.mxu0 0
    %4930 = vmatpush1.bf16.msra.mxu0 %v3190
    %4931 = vmatprep.subr.bf16.mxu0 0
    %4932 = vmatpush1.bf16.msra.mxu0 %v3191
    %4933 = vmatprep.subr.bf16.mxu0 0
    %4934 = vmatpush1.bf16.msra.mxu0 %v3192
    %4935 = vmatprep.subr.bf16.mxu0 0
    %4936 = vmatpush1.bf16.msra.mxu0 %v3193
    %4937 = vmatprep.subr.bf16.mxu0 0
    %4938 = vmatpush1.bf16.msra.mxu0 %v3194
    %4939 = vmatprep.subr.bf16.mxu0 0
    %4940 = vmatpush1.bf16.msra.mxu0 %v3195
    %4941 = vmatprep.subr.bf16.mxu0 0
    %4942 = vmatpush1.bf16.msra.mxu0 0
    %4943 = vmatprep.subr.bf16.mxu0 0
    %4944 = vmatpush1.bf16.msra.mxu0 0
    %4945 = vmatprep.subr.bf16.mxu0 0
    %4946 = vmatpush1.bf16.msra.mxu0 0
    %4947 = vmatprep.subr.bf16.mxu0 0
    %4948 = vmatpush1.bf16.msra.mxu0 0
    %4949 = vmatprep.subr.bf16.mxu0 0
    %4950 = vmatpush1.bf16.msra.mxu0 0
    %4951 = vmatprep.subr.bf16.mxu0 0
    %4952 = vmatpush1.bf16.msra.mxu0 0
    %4953 = vmatprep.subr.bf16.mxu0 0
    %4954 = vmatpush1.bf16.msra.mxu0 0
    %4955 = vmatprep.subr.bf16.mxu0 0
    %4956 = vmatpush1.bf16.msra.mxu0 0
    %4957 = vmatprep.mubr.bf16.mxu0 0
    %4958 = vmatmul.mubr.bf16.gmra.mrb[0].mxu0 %v4909
    %v4959 = vpop.f32.mrb[0].mxu0
    %v4960 = vadd.f32 0.0, %v4959
    %v4961 = vpop.f32.mrb[0].mxu0
    %v4962 = vpop.f32.mrb[0].mxu0
    %v4963 = vadd.f32 0.0, %v4962
    %v4964 = vpop.f32.mrb[0].mxu0
    %4965 = vmatprep.mubr.bf16.mxu0 0
    %4966 = vmatmul.mubr.bf16.gmra.mrb[0].mxu0 %v4910
    %v4967 = vpop.f32.mrb[0].mxu0
    %v4968 = vadd.f32 0.0, %v4967
    %v4969 = vpop.f32.mrb[0].mxu0
    %v4970 = vpop.f32.mrb[0].mxu0
    %v4971 = vadd.f32 0.0, %v4970
    %v4972 = vpop.f32.mrb[0].mxu0
    %4973 = vmatprep.mubr.bf16.mxu0 0
    %4974 = vmatmul.mubr.bf16.gmra.mrb[0].mxu0 %v4911
    %v4975 = vpop.f32.mrb[0].mxu0
    %v4976 = vadd.f32 0.0, %v4975
    %v4977 = vpop.f32.mrb[0].mxu0
    %v4978 = vpop.f32.mrb[0].mxu0
    %v4979 = vadd.f32 0.0, %v4978
    %v4980 = vpop.f32.mrb[0].mxu0
    %4981 = vmatprep.mubr.bf16.mxu0 0
    %4982 = vmatmul.mubr.bf16.gmra.mrb[0].mxu0 %v4912
    %v4983 = vpop.f32.mrb[0].mxu0
    %v4984 = vadd.f32 0.0, %v4983
    %v4985 = vpop.f32.mrb[0].mxu0
    %v4986 = vpop.f32.mrb[0].mxu0
    %v4987 = vadd.f32 0.0, %v4986
    %v4988 = vpop.f32.mrb[0].mxu0
    %4989 = vmatprep.mubr.bf16.mxu0 0
    %4990 = vmatmul.mubr.bf16.gmra.mrb[0].mxu0 %v4913
    %v4991 = vpop.f32.mrb[0].mxu0
    %v4992 = vadd.f32 0.0, %v4991
    %v4993 = vpop.f32.mrb[0].mxu0
    %v4994 = vpop.f32.mrb[0].mxu0
    %v4995 = vadd.f32 0.0, %v4994
    %v4996 = vpop.f32.mrb[0].mxu0
    %4997 = vmatprep.mubr.bf16.mxu0 0
    %4998 = vmatmul.mubr.bf16.gmra.mrb[0].mxu0 %v4914
    %v4999 = vpop.f32.mrb[0].mxu0
    %v5000 = vadd.f32 0.0, %v4999
    %v5001 = vpop.f32.mrb[0].mxu0
    %v5002 = vpop.f32.mrb[0].mxu0
    %v5003 = vadd.f32 0.0, %v5002
    %v5004 = vpop.f32.mrb[0].mxu0
    %5005 = vmatprep.mubr.bf16.mxu0 0
    %5006 = vmatmul.mubr.bf16.gmra.mrb[0].mxu0 %v4915
    %v5007 = vpop.f32.mrb[0].mxu0
    %v5008 = vadd.f32 0.0, %v5007
    %v5009 = vpop.f32.mrb[0].mxu0
    %v5010 = vpop.f32.mrb[0].mxu0
    %v5011 = vadd.f32 0.0, %v5010
    %v5012 = vpop.f32.mrb[0].mxu0
    %5013 = vmatprep.mubr.bf16.mxu0 0
    %5014 = vmatmul.mubr.bf16.gmra.mrb[0].mxu0 %v4916
    %v5015 = vpop.f32.mrb[0].mxu0
    %v5016 = vadd.f32 0.0, %v5015
    %v5017 = vpop.f32.mrb[0].mxu0
    %v5018 = vpop.f32.mrb[0].mxu0
    %v5019 = vadd.f32 0.0, %v5018
    %v5020 = vpop.f32.mrb[0].mxu0
    %5021 = vmatprep.mubr.bf16.mxu0 0
    %5022 = vmatmul.mubr.bf16.gmra.mrb[0].mxu0 %v4917
    %v5023 = vpop.f32.mrb[0].mxu0
    %v5024 = vadd.f32 0.0, %v5023
    %v5025 = vpop.f32.mrb[0].mxu0
    %v5026 = vpop.f32.mrb[0].mxu0
    %v5027 = vadd.f32 0.0, %v5026
    %v5028 = vpop.f32.mrb[0].mxu0
    %5029 = vmatprep.mubr.bf16.mxu0 0
    %5030 = vmatmul.mubr.bf16.gmra.mrb[0].mxu0 %v4918
    %v5031 = vpop.f32.mrb[0].mxu0
    %v5032 = vadd.f32 0.0, %v5031
    %v5033 = vpop.f32.mrb[0].mxu0
    %v5034 = vpop.f32.mrb[0].mxu0
    %v5035 = vadd.f32 0.0, %v5034
    %v5036 = vpop.f32.mrb[0].mxu0
    %5037 = vmatprep.mubr.bf16.mxu0 0
    %5038 = vmatmul.mubr.bf16.gmra.mrb[0].mxu0 %v4919
    %v5039 = vpop.f32.mrb[0].mxu0
    %v5040 = vadd.f32 0.0, %v5039
    %v5041 = vpop.f32.mrb[0].mxu0
    %v5042 = vpop.f32.mrb[0].mxu0
    %v5043 = vadd.f32 0.0, %v5042
    %v5044 = vpop.f32.mrb[0].mxu0
    %5045 = vmatprep.mubr.bf16.mxu0 0
    %5046 = vmatmul.mubr.bf16.gmra.mrb[0].mxu0 %v4920
    %v5047 = vpop.f32.mrb[0].mxu0
    %v5048 = vadd.f32 0.0, %v5047
    %v5049 = vpop.f32.mrb[0].mxu0
    %v5050 = vpop.f32.mrb[0].mxu0
    %v5051 = vadd.f32 0.0, %v5050
    %v5052 = vpop.f32.mrb[0].mxu0
    %5053 = vmatprep.mubr.bf16.mxu0 0
    %5054 = vmatmul.mubr.bf16.gmra.mrb[0].mxu0 %v4921
    %v5055 = vpop.f32.mrb[0].mxu0
    %v5056 = vadd.f32 0.0, %v5055
    %v5057 = vpop.f32.mrb[0].mxu0
    %v5058 = vpop.f32.mrb[0].mxu0
    %v5059 = vadd.f32 0.0, %v5058
    %v5060 = vpop.f32.mrb[0].mxu0
    %5061 = vmatprep.mubr.bf16.mxu0 0
    %5062 = vmatmul.mubr.bf16.gmra.mrb[0].mxu0 %v4922
    %v5063 = vpop.f32.mrb[0].mxu0
    %v5064 = vadd.f32 0.0, %v5063
    %v5065 = vpop.f32.mrb[0].mxu0
    %v5066 = vpop.f32.mrb[0].mxu0
    %v5067 = vadd.f32 0.0, %v5066
    %v5068 = vpop.f32.mrb[0].mxu0
    %5069 = vmatprep.mubr.bf16.mxu0 0
    %5070 = vmatmul.mubr.bf16.gmra.mrb[0].mxu0 %v4923
    %v5071 = vpop.f32.mrb[0].mxu0
    %v5072 = vadd.f32 0.0, %v5071
    %v5073 = vpop.f32.mrb[0].mxu0
    %v5074 = vpop.f32.mrb[0].mxu0
    %v5075 = vadd.f32 0.0, %v5074
    %v5076 = vpop.f32.mrb[0].mxu0
    %5077 = vmatprep.mubr.bf16.mxu0 0
    %5078 = vmatmul.mubr.bf16.gmra.mrb[0].mxu0 %v4924
    %v5079 = vpop.f32.mrb[0].mxu0
    %v5080 = vadd.f32 0.0, %v5079
    %v5081 = vpop.f32.mrb[0].mxu0
    %v5082 = vpop.f32.mrb[0].mxu0
    %v5083 = vadd.f32 0.0, %v5082
    %v5084 = vpop.f32.mrb[0].mxu0
    %5085 = vdwg.mxu0
    %v5086 = vadd.f32 %v4960, %v70
    %v5087 = vadd.f32 %v4963, %v74
    %v5088 = vadd.f32 %v4968, %v81
    %v5089 = vadd.f32 %v4971, %v85
    %v5090 = vadd.f32 %v4976, %v92
    %v5091 = vadd.f32 %v4979, %v96
    %v5092 = vadd.f32 %v4984, %v103
    %v5093 = vadd.f32 %v4987, %v107
    %v5094 = vadd.f32 %v4992, %v114
    %v5095 = vadd.f32 %v4995, %v118
    %v5096 = vadd.f32 %v5000, %v125
    %v5097 = vadd.f32 %v5003, %v129
    %v5098 = vadd.f32 %v5008, %v136
    %v5099 = vadd.f32 %v5011, %v140
    %v5100 = vadd.f32 %v5016, %v147
    %v5101 = vadd.f32 %v5019, %v151
    %v5102 = vadd.f32 %v5024, %v158
    %v5103 = vadd.f32 %v5027, %v162
    %v5104 = vadd.f32 %v5032, %v169
    %v5105 = vadd.f32 %v5035, %v173
    %v5106 = vadd.f32 %v5040, %v180
    %v5107 = vadd.f32 %v5043, %v184
    %v5108 = vadd.f32 %v5048, %v191
    %v5109 = vadd.f32 %v5051, %v195
    %v5110 = vadd.f32 %v5056, %v202
    %v5111 = vadd.f32 %v5059, %v206
    %v5112 = vadd.f32 %v5064, %v213
    %v5113 = vadd.f32 %v5067, %v217
    %v5114 = vadd.f32 %v5072, %v224
    %v5115 = vadd.f32 %v5075, %v228
    %v5116 = vadd.f32 %v5080, %v235
    %v5117 = vadd.f32 %v5083, %v239
    %v5118 = vsel %vm1509, %v5086, -inf
    %v5119 = vsel %vm1509, %v5088, -inf
    %v5120 = vsel %vm1509, %v5090, -inf
    %v5121 = vmax.f32 %v5118, %v5120
    %v5122 = vsel %vm1509, %v5092, -inf
    %v5123 = vmax.f32 %v5119, %v5122
    %v5124 = vsel %vm1509, %v5094, -inf
    %v5125 = vmax.f32 %v5121, %v5124
    %v5126 = vsel %vm1509, %v5096, -inf
    %v5127 = vmax.f32 %v5123, %v5126
    %v5128 = vsel %vm1509, %v5098, -inf
    %v5129 = vmax.f32 %v5125, %v5128
    %v5130 = vsel %vm1509, %v5100, -inf
    %v5131 = vmax.f32 %v5127, %v5130
    %v5132 = vsel %vm1509, %v5102, -inf
    %v5133 = vmax.f32 %v5129, %v5132
    %v5134 = vsel %vm1509, %v5104, -inf
    %v5135 = vmax.f32 %v5131, %v5134
    %v5136 = vsel %vm1509, %v5106, -inf
    %v5137 = vmax.f32 %v5133, %v5136
    %v5138 = vsel %vm1509, %v5108, -inf
    %v5139 = vmax.f32 %v5135, %v5138
    %v5140 = vsel %vm1509, %v5110, -inf
    %v5141 = vmax.f32 %v5137, %v5140
    %v5142 = vsel %vm1509, %v5112, -inf
    %v5143 = vmax.f32 %v5139, %v5142
    %v5144 = vsel %vm1509, %v5114, -inf
    %v5145 = vmax.f32 %v5141, %v5144
    %v5146 = vsel %vm1509, %v5116, -inf
    %v5147 = vmax.f32 %v5143, %v5146
    %v5148 = vmax.f32 %v5145, %v5147
    %v5149 = vsel %vm1509, %v5087, -inf
    %v5150 = vsel %vm1509, %v5089, -inf
    %v5151 = vsel %vm1509, %v5091, -inf
    %v5152 = vmax.f32 %v5149, %v5151
    %v5153 = vsel %vm1509, %v5093, -inf
    %v5154 = vmax.f32 %v5150, %v5153
    %v5155 = vsel %vm1509, %v5095, -inf
    %v5156 = vmax.f32 %v5152, %v5155
    %v5157 = vsel %vm1509, %v5097, -inf
    %v5158 = vmax.f32 %v5154, %v5157
    %v5159 = vsel %vm1509, %v5099, -inf
    %v5160 = vmax.f32 %v5156, %v5159
    %v5161 = vsel %vm1509, %v5101, -inf
    %v5162 = vmax.f32 %v5158, %v5161
    %v5163 = vsel %vm1509, %v5103, -inf
    %v5164 = vmax.f32 %v5160, %v5163
    %v5165 = vsel %vm1509, %v5105, -inf
    %v5166 = vmax.f32 %v5162, %v5165
    %v5167 = vsel %vm1509, %v5107, -inf
    %v5168 = vmax.f32 %v5164, %v5167
    %v5169 = vsel %vm1509, %v5109, -inf
    %v5170 = vmax.f32 %v5166, %v5169
    %v5171 = vsel %vm1509, %v5111, -inf
    %v5172 = vmax.f32 %v5168, %v5171
    %v5173 = vsel %vm1509, %v5113, -inf
    %v5174 = vmax.f32 %v5170, %v5173
    %v5175 = vsel %vm1509, %v5115, -inf
    %v5176 = vmax.f32 %v5172, %v5175
    %v5177 = vsel %vm1509, %v5117, -inf
    %v5178 = vmax.f32 %v5174, %v5177
    %v5179 = vmax.f32 %v5176, %v5178
    %v5180 = vsub.f32 %v5086, %v5148
    %v5181 = vsub.f32 %v5087, %v5179
    %v5182 = vsub.f32 %v5088, %v5148
    %v5183 = vsub.f32 %v5089, %v5179
    %v5184 = vsub.f32 %v5090, %v5148
    %v5185 = vsub.f32 %v5091, %v5179
    %v5186 = vsub.f32 %v5092, %v5148
    %v5187 = vsub.f32 %v5093, %v5179
    %v5188 = vsub.f32 %v5094, %v5148
    %v5189 = vsub.f32 %v5095, %v5179
    %v5190 = vsub.f32 %v5096, %v5148
    %v5191 = vsub.f32 %v5097, %v5179
    %v5192 = vsub.f32 %v5098, %v5148
    %v5193 = vsub.f32 %v5099, %v5179
    %v5194 = vsub.f32 %v5100, %v5148
    %v5195 = vsub.f32 %v5101, %v5179
    %v5196 = vsub.f32 %v5102, %v5148
    %v5197 = vsub.f32 %v5103, %v5179
    %v5198 = vsub.f32 %v5104, %v5148
    %v5199 = vsub.f32 %v5105, %v5179
    %v5200 = vsub.f32 %v5106, %v5148
    %v5201 = vsub.f32 %v5107, %v5179
    %v5202 = vsub.f32 %v5108, %v5148
    %v5203 = vsub.f32 %v5109, %v5179
    %v5204 = vsub.f32 %v5110, %v5148
    %v5205 = vsub.f32 %v5111, %v5179
    %v5206 = vsub.f32 %v5112, %v5148
    %v5207 = vsub.f32 %v5113, %v5179
    %v5208 = vsub.f32 %v5114, %v5148
    %v5209 = vsub.f32 %v5115, %v5179
    %v5210 = vsub.f32 %v5116, %v5148
    %v5211 = vsub.f32 %v5117, %v5179
    %v5212 = vmul.f32 %v5180, 1.442695
    %v5213 = vpow.pop %v5212
    %v5214 = vmul.f32 %v5181, 1.442695
    %v5215 = vpow.pop %v5214
    %v5216 = vmul.f32 %v5182, 1.442695
    %v5217 = vpow.pop %v5216
    %v5218 = vmul.f32 %v5183, 1.442695
    %v5219 = vpow.pop %v5218
    %v5220 = vmul.f32 %v5184, 1.442695
    %v5221 = vpow.pop %v5220
    %v5222 = vmul.f32 %v5185, 1.442695
    %v5223 = vpow.pop %v5222
    %v5224 = vmul.f32 %v5186, 1.442695
    %v5225 = vpow.pop %v5224
    %v5226 = vmul.f32 %v5187, 1.442695
    %v5227 = vpow.pop %v5226
    %v5228 = vmul.f32 %v5188, 1.442695
    %v5229 = vpow.pop %v5228
    %v5230 = vmul.f32 %v5189, 1.442695
    %v5231 = vpow.pop %v5230
    %v5232 = vmul.f32 %v5190, 1.442695
    %v5233 = vpow.pop %v5232
    %v5234 = vmul.f32 %v5191, 1.442695
    %v5235 = vpow.pop %v5234
    %v5236 = vmul.f32 %v5192, 1.442695
    %v5237 = vpow.pop %v5236
    %v5238 = vmul.f32 %v5193, 1.442695
    %v5239 = vpow.pop %v5238
    %v5240 = vmul.f32 %v5194, 1.442695
    %v5241 = vpow.pop %v5240
    %v5242 = vmul.f32 %v5195, 1.442695
    %v5243 = vpow.pop %v5242
    %v5244 = vmul.f32 %v5196, 1.442695
    %v5245 = vpow.pop %v5244
    %v5246 = vmul.f32 %v5197, 1.442695
    %v5247 = vpow.pop %v5246
    %v5248 = vmul.f32 %v5198, 1.442695
    %v5249 = vpow.pop %v5248
    %v5250 = vmul.f32 %v5199, 1.442695
    %v5251 = vpow.pop %v5250
    %v5252 = vmul.f32 %v5200, 1.442695
    %v5253 = vpow.pop %v5252
    %v5254 = vmul.f32 %v5201, 1.442695
    %v5255 = vpow.pop %v5254
    %v5256 = vmul.f32 %v5202, 1.442695
    %v5257 = vpow.pop %v5256
    %v5258 = vmul.f32 %v5203, 1.442695
    %v5259 = vpow.pop %v5258
    %v5260 = vmul.f32 %v5204, 1.442695
    %v5261 = vpow.pop %v5260
    %v5262 = vmul.f32 %v5205, 1.442695
    %v5263 = vpow.pop %v5262
    %v5264 = vmul.f32 %v5206, 1.442695
    %v5265 = vpow.pop %v5264
    %v5266 = vmul.f32 %v5207, 1.442695
    %v5267 = vpow.pop %v5266
    %v5268 = vmul.f32 %v5208, 1.442695
    %v5269 = vpow.pop %v5268
    %v5270 = vmul.f32 %v5209, 1.442695
    %v5271 = vpow.pop %v5270
    %v5272 = vmul.f32 %v5210, 1.442695
    %v5273 = vpow.pop %v5272
    %v5274 = vmul.f32 %v5211, 1.442695
    %v5275 = vpow.pop %v5274
    %v5276 = vmul.f32 %v5213, %v246
    %v5277 = vmul.f32 %v5215, %v250
    %v5278 = vmul.f32 %v5217, %v257
    %v5279 = vmul.f32 %v5219, %v261
    %v5280 = vmul.f32 %v5221, %v268
    %v5281 = vmul.f32 %v5223, %v272
    %v5282 = vmul.f32 %v5225, %v279
    %v5283 = vmul.f32 %v5227, %v283
    %v5284 = vmul.f32 %v5229, %v290
    %v5285 = vmul.f32 %v5231, %v294
    %v5286 = vmul.f32 %v5233, %v301
    %v5287 = vmul.f32 %v5235, %v305
    %v5288 = vmul.f32 %v5237, %v312
    %v5289 = vmul.f32 %v5239, %v316
    %v5290 = vmul.f32 %v5241, %v323
    %v5291 = vmul.f32 %v5243, %v327
    %v5292 = vmul.f32 %v5245, %v334
    %v5293 = vmul.f32 %v5247, %v338
    %v5294 = vmul.f32 %v5249, %v345
    %v5295 = vmul.f32 %v5251, %v349
    %v5296 = vmul.f32 %v5253, %v356
    %v5297 = vmul.f32 %v5255, %v360
    %v5298 = vmul.f32 %v5257, %v367
    %v5299 = vmul.f32 %v5259, %v371
    %v5300 = vmul.f32 %v5261, %v378
    %v5301 = vmul.f32 %v5263, %v382
    %v5302 = vmul.f32 %v5265, %v389
    %v5303 = vmul.f32 %v5267, %v393
    %v5304 = vmul.f32 %v5269, %v400
    %v5305 = vmul.f32 %v5271, %v404
    %v5306 = vmul.f32 %v5273, %v411
    %v5307 = vmul.f32 %v5275, %v415
    %v5308 = vsel %vm1509, %v5276, 0.0
    %v5309 = vsel %vm1509, %v5278, 0.0
    %v5310 = vadd.f32 %v5308, %v5309
    %v5311 = vsel %vm1509, %v5280, 0.0
    %v5312 = vadd.f32 %v5310, %v5311
    %v5313 = vsel %vm1509, %v5282, 0.0
    %v5314 = vadd.f32 %v5312, %v5313
    %v5315 = vsel %vm1509, %v5284, 0.0
    %v5316 = vadd.f32 %v5314, %v5315
    %v5317 = vsel %vm1509, %v5286, 0.0
    %v5318 = vadd.f32 %v5316, %v5317
    %v5319 = vsel %vm1509, %v5288, 0.0
    %v5320 = vadd.f32 %v5318, %v5319
    %v5321 = vsel %vm1509, %v5290, 0.0
    %v5322 = vadd.f32 %v5320, %v5321
    %v5323 = vsel %vm1509, %v5292, 0.0
    %v5324 = vadd.f32 %v5322, %v5323
    %v5325 = vsel %vm1509, %v5294, 0.0
    %v5326 = vadd.f32 %v5324, %v5325
    %v5327 = vsel %vm1509, %v5296, 0.0
    %v5328 = vadd.f32 %v5326, %v5327
    %v5329 = vsel %vm1509, %v5298, 0.0
    %v5330 = vadd.f32 %v5328, %v5329
    %v5331 = vsel %vm1509, %v5300, 0.0
    %v5332 = vadd.f32 %v5330, %v5331
    %v5333 = vsel %vm1509, %v5302, 0.0
    %v5334 = vadd.f32 %v5332, %v5333
    %v5335 = vsel %vm1509, %v5304, 0.0
    %v5336 = vadd.f32 %v5334, %v5335
    %v5337 = vsel %vm1509, %v5306, 0.0
    %v5338 = vadd.f32 %v5336, %v5337
    %v5339 = vsel %vm1509, %v5277, 0.0
    %v5340 = vsel %vm1509, %v5279, 0.0
    %v5341 = vadd.f32 %v5339, %v5340
    %v5342 = vsel %vm1509, %v5281, 0.0
    %v5343 = vadd.f32 %v5341, %v5342
    %v5344 = vsel %vm1509, %v5283, 0.0
    %v5345 = vadd.f32 %v5343, %v5344
    %v5346 = vsel %vm1509, %v5285, 0.0
    %v5347 = vadd.f32 %v5345, %v5346
    %v5348 = vsel %vm1509, %v5287, 0.0
    %v5349 = vadd.f32 %v5347, %v5348
    %v5350 = vsel %vm1509, %v5289, 0.0
    %v5351 = vadd.f32 %v5349, %v5350
    %v5352 = vsel %vm1509, %v5291, 0.0
    %v5353 = vadd.f32 %v5351, %v5352
    %v5354 = vsel %vm1509, %v5293, 0.0
    %v5355 = vadd.f32 %v5353, %v5354
    %v5356 = vsel %vm1509, %v5295, 0.0
    %v5357 = vadd.f32 %v5355, %v5356
    %v5358 = vsel %vm1509, %v5297, 0.0
    %v5359 = vadd.f32 %v5357, %v5358
    %v5360 = vsel %vm1509, %v5299, 0.0
    %v5361 = vadd.f32 %v5359, %v5360
    %v5362 = vsel %vm1509, %v5301, 0.0
    %v5363 = vadd.f32 %v5361, %v5362
    %v5364 = vsel %vm1509, %v5303, 0.0
    %v5365 = vadd.f32 %v5363, %v5364
    %v5366 = vsel %vm1509, %v5305, 0.0
    %v5367 = vadd.f32 %v5365, %v5366
    %v5368 = vsel %vm1509, %v5307, 0.0
    %v5369 = vadd.f32 %v5367, %v5368
    %v5370 = vmax.f32 %v5338, 1e-30
    %v5371 = vmax.f32 %v5369, 1e-30
    %v5372 = vrcp.pop %v5370
    %v5373 = vrcp.pop %v5371
    %v5374 = vmul.f32 %v5276, %v5372
    %v5375 = vmul.f32 %v5277, %v5373
    %v5376 = vmul.f32 %v5278, %v5372
    %v5377 = vmul.f32 %v5279, %v5373
    %v5378 = vmul.f32 %v5280, %v5372
    %v5379 = vmul.f32 %v5281, %v5373
    %v5380 = vmul.f32 %v5282, %v5372
    %v5381 = vmul.f32 %v5283, %v5373
    %v5382 = vmul.f32 %v5284, %v5372
    %v5383 = vmul.f32 %v5285, %v5373
    %v5384 = vmul.f32 %v5286, %v5372
    %v5385 = vmul.f32 %v5287, %v5373
    %v5386 = vmul.f32 %v5288, %v5372
    %v5387 = vmul.f32 %v5289, %v5373
    %v5388 = vmul.f32 %v5290, %v5372
    %v5389 = vmul.f32 %v5291, %v5373
    %v5390 = vmul.f32 %v5292, %v5372
    %v5391 = vmul.f32 %v5293, %v5373
    %v5392 = vmul.f32 %v5294, %v5372
    %v5393 = vmul.f32 %v5295, %v5373
    %v5394 = vmul.f32 %v5296, %v5372
    %v5395 = vmul.f32 %v5297, %v5373
    %v5396 = vmul.f32 %v5298, %v5372
    %v5397 = vmul.f32 %v5299, %v5373
    %v5398 = vmul.f32 %v5300, %v5372
    %v5399 = vmul.f32 %v5301, %v5373
    %v5400 = vmul.f32 %v5302, %v5372
    %v5401 = vmul.f32 %v5303, %v5373
    %v5402 = vmul.f32 %v5304, %v5372
    %v5403 = vmul.f32 %v5305, %v5373
    %v5404 = vmul.f32 %v5306, %v5372
    %v5405 = vmul.f32 %v5307, %v5373
    %v5406 = vpack.c.bf16 %v5375, %v5374
    %v5407 = vpack.c.bf16 %v5377, %v5376
    %v5408 = vpack.c.bf16 %v5379, %v5378
    %v5409 = vpack.c.bf16 %v5381, %v5380
    %v5410 = vpack.c.bf16 %v5383, %v5382
    %v5411 = vpack.c.bf16 %v5385, %v5384
    %v5412 = vpack.c.bf16 %v5387, %v5386
    %v5413 = vpack.c.bf16 %v5389, %v5388
    %v5414 = vpack.c.bf16 %v5391, %v5390
    %v5415 = vpack.c.bf16 %v5393, %v5392
    %v5416 = vpack.c.bf16 %v5395, %v5394
    %v5417 = vpack.c.bf16 %v5397, %v5396
    %v5418 = vpack.c.bf16 %v5399, %v5398
    %v5419 = vpack.c.bf16 %v5401, %v5400
    %v5420 = vpack.c.bf16 %v5403, %v5402
    %v5421 = vpack.c.bf16 %v5405, %v5404
    %v5423 = vsel %vm1509, %v5406, 0
    %v5426 = vsel %vm1509, %v5407, 0
    %v5429 = vsel %vm1509, %v5408, 0
    %v5432 = vsel %vm1509, %v5409, 0
    %v5435 = vsel %vm1509, %v5410, 0
    %v5438 = vsel %vm1509, %v5411, 0
    %v5441 = vsel %vm1509, %v5412, 0
    %v5444 = vsel %vm1509, %v5413, 0
    %v5447 = vsel %vm1509, %v5414, 0
    %v5450 = vsel %vm1509, %v5415, 0
    %v5453 = vsel %vm1509, %v5416, 0
    %v5456 = vsel %vm1509, %v5417, 0
    %v5459 = vsel %vm1509, %v5418, 0
    %v5462 = vsel %vm1509, %v5419, 0
    %v5465 = vsel %vm1509, %v5420, 0
    %v5468 = vsel %vm1509, %v5421, 0
    %5470 = vmatprep.subr.bf16.mxu0 0
    %5471 = vmatpush1.bf16.msra.mxu0 %v1864
    %5472 = vmatprep.subr.bf16.mxu0 0
    %5473 = vmatpush1.bf16.msra.mxu0 0
    %5474 = vmatprep.subr.bf16.mxu0 0
    %5475 = vmatpush1.bf16.msra.mxu0 0
    %5476 = vmatprep.subr.bf16.mxu0 0
    %5477 = vmatpush1.bf16.msra.mxu0 0
    %5478 = vmatprep.subr.bf16.mxu0 0
    %5479 = vmatpush1.bf16.msra.mxu0 0
    %5480 = vmatprep.subr.bf16.mxu0 0
    %5481 = vmatpush1.bf16.msra.mxu0 0
    %5482 = vmatprep.subr.bf16.mxu0 0
    %5483 = vmatpush1.bf16.msra.mxu0 0
    %5484 = vmatprep.subr.bf16.mxu0 0
    %5485 = vmatpush1.bf16.msra.mxu0 0
    %5486 = vmatprep.subr.bf16.mxu0 0
    %5487 = vmatpush1.bf16.msra.mxu0 0
    %5488 = vmatprep.subr.bf16.mxu0 0
    %5489 = vmatpush1.bf16.msra.mxu0 0
    %5490 = vmatprep.subr.bf16.mxu0 0
    %5491 = vmatpush1.bf16.msra.mxu0 0
    %5492 = vmatprep.subr.bf16.mxu0 0
    %5493 = vmatpush1.bf16.msra.mxu0 0
    %5494 = vmatprep.subr.bf16.mxu0 0
    %5495 = vmatpush1.bf16.msra.mxu0 0
    %5496 = vmatprep.subr.bf16.mxu0 0
    %5497 = vmatpush1.bf16.msra.mxu0 0
    %5498 = vmatprep.subr.bf16.mxu0 0
    %5499 = vmatpush1.bf16.msra.mxu0 0
    %5500 = vmatprep.subr.bf16.mxu0 0
    %5501 = vmatpush1.bf16.msra.mxu0 0
    %5502 = vmatprep.mubr.bf16.mxu0 0
    %5503 = vmatmul.mubr.bf16.gmra.mrb[0].mxu0 %v5423
    %v5504 = vpop.f32.mrb[0].mxu0
    %v5505 = vadd.f32 0.0, %v5504
    %v5506 = vpop.f32.mrb[0].mxu0
    %v5507 = vpop.f32.mrb[0].mxu0
    %v5508 = vadd.f32 0.0, %v5507
    %v5509 = vpop.f32.mrb[0].mxu0
    %5510 = vmatprep.mubr.bf16.mxu0 0
    %5511 = vmatmul.mubr.bf16.gmra.mrb[0].mxu0 %v5426
    %v5512 = vpop.f32.mrb[0].mxu0
    %v5513 = vadd.f32 0.0, %v5512
    %v5514 = vpop.f32.mrb[0].mxu0
    %v5515 = vpop.f32.mrb[0].mxu0
    %v5516 = vadd.f32 0.0, %v5515
    %v5517 = vpop.f32.mrb[0].mxu0
    %5518 = vmatprep.mubr.bf16.mxu0 0
    %5519 = vmatmul.mubr.bf16.gmra.mrb[0].mxu0 %v5429
    %v5520 = vpop.f32.mrb[0].mxu0
    %v5521 = vadd.f32 0.0, %v5520
    %v5522 = vpop.f32.mrb[0].mxu0
    %v5523 = vpop.f32.mrb[0].mxu0
    %v5524 = vadd.f32 0.0, %v5523
    %v5525 = vpop.f32.mrb[0].mxu0
    %5526 = vmatprep.mubr.bf16.mxu0 0
    %5527 = vmatmul.mubr.bf16.gmra.mrb[0].mxu0 %v5432
    %v5528 = vpop.f32.mrb[0].mxu0
    %v5529 = vadd.f32 0.0, %v5528
    %v5530 = vpop.f32.mrb[0].mxu0
    %v5531 = vpop.f32.mrb[0].mxu0
    %v5532 = vadd.f32 0.0, %v5531
    %v5533 = vpop.f32.mrb[0].mxu0
    %5534 = vmatprep.mubr.bf16.mxu0 0
    %5535 = vmatmul.mubr.bf16.gmra.mrb[0].mxu0 %v5435
    %v5536 = vpop.f32.mrb[0].mxu0
    %v5537 = vadd.f32 0.0, %v5536
    %v5538 = vpop.f32.mrb[0].mxu0
    %v5539 = vpop.f32.mrb[0].mxu0
    %v5540 = vadd.f32 0.0, %v5539
    %v5541 = vpop.f32.mrb[0].mxu0
    %5542 = vmatprep.mubr.bf16.mxu0 0
    %5543 = vmatmul.mubr.bf16.gmra.mrb[0].mxu0 %v5438
    %v5544 = vpop.f32.mrb[0].mxu0
    %v5545 = vadd.f32 0.0, %v5544
    %v5546 = vpop.f32.mrb[0].mxu0
    %v5547 = vpop.f32.mrb[0].mxu0
    %v5548 = vadd.f32 0.0, %v5547
    %v5549 = vpop.f32.mrb[0].mxu0
    %5550 = vmatprep.mubr.bf16.mxu0 0
    %5551 = vmatmul.mubr.bf16.gmra.mrb[0].mxu0 %v5441
    %v5552 = vpop.f32.mrb[0].mxu0
    %v5553 = vadd.f32 0.0, %v5552
    %v5554 = vpop.f32.mrb[0].mxu0
    %v5555 = vpop.f32.mrb[0].mxu0
    %v5556 = vadd.f32 0.0, %v5555
    %v5557 = vpop.f32.mrb[0].mxu0
    %5558 = vmatprep.mubr.bf16.mxu0 0
    %5559 = vmatmul.mubr.bf16.gmra.mrb[0].mxu0 %v5444
    %v5560 = vpop.f32.mrb[0].mxu0
    %v5561 = vadd.f32 0.0, %v5560
    %v5562 = vpop.f32.mrb[0].mxu0
    %v5563 = vpop.f32.mrb[0].mxu0
    %v5564 = vadd.f32 0.0, %v5563
    %v5565 = vpop.f32.mrb[0].mxu0
    %5566 = vmatprep.mubr.bf16.mxu0 0
    %5567 = vmatmul.mubr.bf16.gmra.mrb[0].mxu0 %v5447
    %v5568 = vpop.f32.mrb[0].mxu0
    %v5569 = vadd.f32 0.0, %v5568
    %v5570 = vpop.f32.mrb[0].mxu0
    %v5571 = vpop.f32.mrb[0].mxu0
    %v5572 = vadd.f32 0.0, %v5571
    %v5573 = vpop.f32.mrb[0].mxu0
    %5574 = vmatprep.mubr.bf16.mxu0 0
    %5575 = vmatmul.mubr.bf16.gmra.mrb[0].mxu0 %v5450
    %v5576 = vpop.f32.mrb[0].mxu0
    %v5577 = vadd.f32 0.0, %v5576
    %v5578 = vpop.f32.mrb[0].mxu0
    %v5579 = vpop.f32.mrb[0].mxu0
    %v5580 = vadd.f32 0.0, %v5579
    %v5581 = vpop.f32.mrb[0].mxu0
    %5582 = vmatprep.mubr.bf16.mxu0 0
    %5583 = vmatmul.mubr.bf16.gmra.mrb[0].mxu0 %v5453
    %v5584 = vpop.f32.mrb[0].mxu0
    %v5585 = vadd.f32 0.0, %v5584
    %v5586 = vpop.f32.mrb[0].mxu0
    %v5587 = vpop.f32.mrb[0].mxu0
    %v5588 = vadd.f32 0.0, %v5587
    %v5589 = vpop.f32.mrb[0].mxu0
    %5590 = vmatprep.mubr.bf16.mxu0 0
    %5591 = vmatmul.mubr.bf16.gmra.mrb[0].mxu0 %v5456
    %v5592 = vpop.f32.mrb[0].mxu0
    %v5593 = vadd.f32 0.0, %v5592
    %v5594 = vpop.f32.mrb[0].mxu0
    %v5595 = vpop.f32.mrb[0].mxu0
    %v5596 = vadd.f32 0.0, %v5595
    %v5597 = vpop.f32.mrb[0].mxu0
    %5598 = vmatprep.mubr.bf16.mxu0 0
    %5599 = vmatmul.mubr.bf16.gmra.mrb[0].mxu0 %v5459
    %v5600 = vpop.f32.mrb[0].mxu0
    %v5601 = vadd.f32 0.0, %v5600
    %v5602 = vpop.f32.mrb[0].mxu0
    %v5603 = vpop.f32.mrb[0].mxu0
    %v5604 = vadd.f32 0.0, %v5603
    %v5605 = vpop.f32.mrb[0].mxu0
    %5606 = vmatprep.mubr.bf16.mxu0 0
    %5607 = vmatmul.mubr.bf16.gmra.mrb[0].mxu0 %v5462
    %v5608 = vpop.f32.mrb[0].mxu0
    %v5609 = vadd.f32 0.0, %v5608
    %v5610 = vpop.f32.mrb[0].mxu0
    %v5611 = vpop.f32.mrb[0].mxu0
    %v5612 = vadd.f32 0.0, %v5611
    %v5613 = vpop.f32.mrb[0].mxu0
    %5614 = vmatprep.mubr.bf16.mxu0 0
    %5615 = vmatmul.mubr.bf16.gmra.mrb[0].mxu0 %v5465
    %v5616 = vpop.f32.mrb[0].mxu0
    %v5617 = vadd.f32 0.0, %v5616
    %v5618 = vpop.f32.mrb[0].mxu0
    %v5619 = vpop.f32.mrb[0].mxu0
    %v5620 = vadd.f32 0.0, %v5619
    %v5621 = vpop.f32.mrb[0].mxu0
    %5622 = vmatprep.mubr.bf16.mxu0 0
    %5623 = vmatmul.mubr.bf16.gmra.mrb[0].mxu0 %v5468
    %v5624 = vpop.f32.mrb[0].mxu0
    %v5625 = vadd.f32 0.0, %v5624
    %v5626 = vpop.f32.mrb[0].mxu0
    %v5627 = vpop.f32.mrb[0].mxu0
    %v5628 = vadd.f32 0.0, %v5627
    %v5629 = vpop.f32.mrb[0].mxu0
    %5630 = vdwg.mxu0
    %v5633 = vcombine.high %v4336, %v4336
    %v5635 = vunpack.c.l.s4 1966171168
    %v5636 = vunpack.c.0.s8 %v5635
    %v5637 = vlaneseq
    %v5638 = vshrl.u32 %v5637, 7
    %v5639 = vsub.s32 %v5636, %v5638
    %v5640 = vrot.slane %v4336, %v5639
    %v5642 = vunpack.c.l.s4 1966171168
    %v5643 = vunpack.c.0.s8 %v5642
    %v5644 = vlaneseq
    %v5645 = vshrl.u32 %v5644, 7
    %v5646 = vsub.s32 %v5643, %v5645
    %v5647 = vrot.slane %v5633, %v5646
    %v5648 = vcombine.high %v5640, %v5640
    %v5649 = vcombine.high %v5647, %v5647
    %v5651 = vunpack.c.l.s4 1966171168
    %v5652 = vunpack.c.0.s8 %v5651
    %v5653 = vlaneseq
    %v5654 = vshrl.u32 %v5653, 7
    %v5655 = vsub.s32 %v5652, %v5654
    %v5656 = vrot.slane %v5640, %v5655
    %v5658 = vunpack.c.l.s4 1966171168
    %v5659 = vunpack.c.0.s8 %v5658
    %v5660 = vlaneseq
    %v5661 = vshrl.u32 %v5660, 7
    %v5662 = vsub.s32 %v5659, %v5661
    %v5663 = vrot.slane %v5647, %v5662
    %v5665 = vunpack.c.l.s4 1966171168
    %v5666 = vunpack.c.0.s8 %v5665
    %v5667 = vlaneseq
    %v5668 = vshrl.u32 %v5667, 7
    %v5669 = vsub.s32 %v5666, %v5668
    %v5670 = vrot.slane %v5648, %v5669
    %v5672 = vunpack.c.l.s4 1966171168
    %v5673 = vunpack.c.0.s8 %v5672
    %v5674 = vlaneseq
    %v5675 = vshrl.u32 %v5674, 7
    %v5676 = vsub.s32 %v5673, %v5675
    %v5677 = vrot.slane %v5649, %v5676
    %v5678 = vcombine.high %v5656, %v5656
    %v5679 = vcombine.high %v5663, %v5663
    %v5680 = vcombine.high %v5670, %v5670
    %v5681 = vcombine.high %v5677, %v5677
    %v5682 = vcombine.high %v4339, %v4339
    %v5684 = vunpack.c.l.s4 1966171168
    %v5685 = vunpack.c.0.s8 %v5684
    %v5686 = vlaneseq
    %v5687 = vshrl.u32 %v5686, 7
    %v5688 = vsub.s32 %v5685, %v5687
    %v5689 = vrot.slane %v4339, %v5688
    %v5691 = vunpack.c.l.s4 1966171168
    %v5692 = vunpack.c.0.s8 %v5691
    %v5693 = vlaneseq
    %v5694 = vshrl.u32 %v5693, 7
    %v5695 = vsub.s32 %v5692, %v5694
    %v5696 = vrot.slane %v5682, %v5695
    %v5697 = vcombine.high %v5689, %v5689
    %v5698 = vcombine.high %v5696, %v5696
    %v5700 = vunpack.c.l.s4 1966171168
    %v5701 = vunpack.c.0.s8 %v5700
    %v5702 = vlaneseq
    %v5703 = vshrl.u32 %v5702, 7
    %v5704 = vsub.s32 %v5701, %v5703
    %v5705 = vrot.slane %v5689, %v5704
    %v5707 = vunpack.c.l.s4 1966171168
    %v5708 = vunpack.c.0.s8 %v5707
    %v5709 = vlaneseq
    %v5710 = vshrl.u32 %v5709, 7
    %v5711 = vsub.s32 %v5708, %v5710
    %v5712 = vrot.slane %v5696, %v5711
    %v5714 = vunpack.c.l.s4 1966171168
    %v5715 = vunpack.c.0.s8 %v5714
    %v5716 = vlaneseq
    %v5717 = vshrl.u32 %v5716, 7
    %v5718 = vsub.s32 %v5715, %v5717
    %v5719 = vrot.slane %v5697, %v5718
    %v5721 = vunpack.c.l.s4 1966171168
    %v5722 = vunpack.c.0.s8 %v5721
    %v5723 = vlaneseq
    %v5724 = vshrl.u32 %v5723, 7
    %v5725 = vsub.s32 %v5722, %v5724
    %v5726 = vrot.slane %v5698, %v5725
    %v5727 = vcombine.high %v5705, %v5705
    %v5728 = vcombine.high %v5712, %v5712
    %v5729 = vcombine.high %v5719, %v5719
    %v5730 = vcombine.high %v5726, %v5726
    %v5731 = vlaneseq
    %v5732 = vshrl.u32 %v5731, 7
    %v5733 = vsub.s32 0, %v5732
    %v5734 = vrot.slane %v5656, %v5733
    %v5735 = vlaneseq
    %v5736 = vshrl.u32 %v5735, 7
    %v5737 = vsub.s32 0, %v5736
    %v5738 = vrot.slane %v5670, %v5737
    %v5739 = vlaneseq
    %v5740 = vshrl.u32 %v5739, 7
    %v5741 = vsub.s32 0, %v5740
    %v5742 = vrot.slane %v5678, %v5741
    %v5743 = vlaneseq
    %v5744 = vshrl.u32 %v5743, 7
    %v5745 = vsub.s32 0, %v5744
    %v5746 = vrot.slane %v5680, %v5745
    %v5747 = vlaneseq
    %v5748 = vshrl.u32 %v5747, 7
    %v5749 = vsub.s32 0, %v5748
    %v5750 = vrot.slane %v5663, %v5749
    %v5751 = vlaneseq
    %v5752 = vshrl.u32 %v5751, 7
    %v5753 = vsub.s32 0, %v5752
    %v5754 = vrot.slane %v5677, %v5753
    %v5755 = vlaneseq
    %v5756 = vshrl.u32 %v5755, 7
    %v5757 = vsub.s32 0, %v5756
    %v5758 = vrot.slane %v5679, %v5757
    %v5759 = vlaneseq
    %v5760 = vshrl.u32 %v5759, 7
    %v5761 = vsub.s32 0, %v5760
    %v5762 = vrot.slane %v5681, %v5761
    %v5763 = vlaneseq
    %v5764 = vshrl.u32 %v5763, 7
    %v5765 = vsub.s32 0, %v5764
    %v5766 = vrot.slane %v5705, %v5765
    %v5767 = vlaneseq
    %v5768 = vshrl.u32 %v5767, 7
    %v5769 = vsub.s32 0, %v5768
    %v5770 = vrot.slane %v5719, %v5769
    %v5771 = vlaneseq
    %v5772 = vshrl.u32 %v5771, 7
    %v5773 = vsub.s32 0, %v5772
    %v5774 = vrot.slane %v5727, %v5773
    %v5775 = vlaneseq
    %v5776 = vshrl.u32 %v5775, 7
    %v5777 = vsub.s32 0, %v5776
    %v5778 = vrot.slane %v5729, %v5777
    %v5779 = vlaneseq
    %v5780 = vshrl.u32 %v5779, 7
    %v5781 = vsub.s32 0, %v5780
    %v5782 = vrot.slane %v5712, %v5781
    %v5783 = vlaneseq
    %v5784 = vshrl.u32 %v5783, 7
    %v5785 = vsub.s32 0, %v5784
    %v5786 = vrot.slane %v5726, %v5785
    %v5787 = vlaneseq
    %v5788 = vshrl.u32 %v5787, 7
    %v5789 = vsub.s32 0, %v5788
    %v5790 = vrot.slane %v5728, %v5789
    %v5791 = vlaneseq
    %v5792 = vshrl.u32 %v5791, 7
    %v5793 = vsub.s32 0, %v5792
    %v5794 = vrot.slane %v5730, %v5793
    %v5811 = vmul.f32 %v5505, %v5734
    %v5812 = vmul.f32 %v5508, %v5734
    %v5813 = vmul.f32 %v5513, %v5738
    %v5814 = vmul.f32 %v5516, %v5738
    %v5815 = vmul.f32 %v5521, %v5742
    %v5816 = vmul.f32 %v5524, %v5742
    %v5817 = vmul.f32 %v5529, %v5746
    %v5818 = vmul.f32 %v5532, %v5746
    %v5819 = vmul.f32 %v5537, %v5750
    %v5820 = vmul.f32 %v5540, %v5750
    %v5821 = vmul.f32 %v5545, %v5754
    %v5822 = vmul.f32 %v5548, %v5754
    %v5823 = vmul.f32 %v5553, %v5758
    %v5824 = vmul.f32 %v5556, %v5758
    %v5825 = vmul.f32 %v5561, %v5762
    %v5826 = vmul.f32 %v5564, %v5762
    %v5827 = vmul.f32 %v5569, %v5766
    %v5828 = vmul.f32 %v5572, %v5766
    %v5829 = vmul.f32 %v5577, %v5770
    %v5830 = vmul.f32 %v5580, %v5770
    %v5831 = vmul.f32 %v5585, %v5774
    %v5832 = vmul.f32 %v5588, %v5774
    %v5833 = vmul.f32 %v5593, %v5778
    %v5834 = vmul.f32 %v5596, %v5778
    %v5835 = vmul.f32 %v5601, %v5782
    %v5836 = vmul.f32 %v5604, %v5782
    %v5837 = vmul.f32 %v5609, %v5786
    %v5838 = vmul.f32 %v5612, %v5786
    %v5839 = vmul.f32 %v5617, %v5790
    %v5840 = vmul.f32 %v5620, %v5790
    %v5841 = vmul.f32 %v5625, %v5794
    %v5842 = vmul.f32 %v5628, %v5794
    %v5843 = vadd.f32 %v5811, %v5813
    %v5844 = vadd.f32 %v5843, %v5815
    %v5845 = vadd.f32 %v5844, %v5817
    %v5846 = vadd.f32 %v5845, %v5819
    %v5847 = vadd.f32 %v5846, %v5821
    %v5848 = vadd.f32 %v5847, %v5823
    %v5849 = vadd.f32 %v5848, %v5825
    %v5850 = vadd.f32 %v5849, %v5827
    %v5851 = vadd.f32 %v5850, %v5829
    %v5852 = vadd.f32 %v5851, %v5831
    %v5853 = vadd.f32 %v5852, %v5833
    %v5854 = vadd.f32 %v5853, %v5835
    %v5855 = vadd.f32 %v5854, %v5837
    %v5856 = vadd.f32 %v5855, %v5839
    %v5857 = vadd.f32 %v5856, %v5841
    %v5858 = vadd.f32 %v5812, %v5814
    %v5859 = vadd.f32 %v5858, %v5816
    %v5860 = vadd.f32 %v5859, %v5818
    %v5861 = vadd.f32 %v5860, %v5820
    %v5862 = vadd.f32 %v5861, %v5822
    %v5863 = vadd.f32 %v5862, %v5824
    %v5864 = vadd.f32 %v5863, %v5826
    %v5865 = vadd.f32 %v5864, %v5828
    %v5866 = vadd.f32 %v5865, %v5830
    %v5867 = vadd.f32 %v5866, %v5832
    %v5868 = vadd.f32 %v5867, %v5834
    %v5869 = vadd.f32 %v5868, %v5836
    %v5870 = vadd.f32 %v5869, %v5838
    %v5871 = vadd.f32 %v5870, %v5840
    %v5872 = vadd.f32 %v5871, %v5842
    %v5873 = vpack.c.bf16 %v5872, %v5857
    %5874 = vmatprep.subr.bf16.mxu0 0
    %5875 = vmatpush1.bf16.msra.mxu0 %v2302
    %5876 = vmatprep.subr.bf16.mxu0 0
    %5877 = vmatpush1.bf16.msra.mxu0 %v2303
    %5878 = vmatprep.subr.bf16.mxu0 0
    %5879 = vmatpush1.bf16.msra.mxu0 %v2304
    %5880 = vmatprep.subr.bf16.mxu0 0
    %5881 = vmatpush1.bf16.msra.mxu0 %v2305
    %5882 = vmatprep.subr.bf16.mxu0 0
    %5883 = vmatpush1.bf16.msra.mxu0 %v2306
    %5884 = vmatprep.subr.bf16.mxu0 0
    %5885 = vmatpush1.bf16.msra.mxu0 %v2307
    %5886 = vmatprep.subr.bf16.mxu0 0
    %5887 = vmatpush1.bf16.msra.mxu0 %v2308
    %5888 = vmatprep.subr.bf16.mxu0 0
    %5889 = vmatpush1.bf16.msra.mxu0 %v2309
    %5890 = vmatprep.subr.bf16.mxu0 0
    %5891 = vmatpush1.bf16.msra.mxu0 0
    %5892 = vmatprep.subr.bf16.mxu0 0
    %5893 = vmatpush1.bf16.msra.mxu0 0
    %5894 = vmatprep.subr.bf16.mxu0 0
    %5895 = vmatpush1.bf16.msra.mxu0 0
    %5896 = vmatprep.subr.bf16.mxu0 0
    %5897 = vmatpush1.bf16.msra.mxu0 0
    %5898 = vmatprep.subr.bf16.mxu0 0
    %5899 = vmatpush1.bf16.msra.mxu0 0
    %5900 = vmatprep.subr.bf16.mxu0 0
    %5901 = vmatpush1.bf16.msra.mxu0 0
    %5902 = vmatprep.subr.bf16.mxu0 0
    %5903 = vmatpush1.bf16.msra.mxu0 0
    %5904 = vmatprep.subr.bf16.mxu0 0
    %5905 = vmatpush1.bf16.msra.mxu0 0
    %5906 = vmatprep.mubr.bf16.mxu0 0
    %5907 = vmatmul.mubr.bf16.gmra.mrb[0].mxu0 %v5873
    %v5908 = vpop.f32.mrb[0].mxu0
    %v5909 = vadd.f32 %v433, %v5908
    %v5910 = vpop.f32.mrb[0].mxu0
    %v5911 = vpop.f32.mrb[0].mxu0
    %v5912 = vadd.f32 %v434, %v5911
    %v5913 = vpop.f32.mrb[0].mxu0
    %5914 = vdwg.mxu0
    %5915 = vst.msk [vmem:[#allocation2] sm:$0xff] %vm531, %v5909
    %5916 = vst.msk [vmem:[#allocation2 + $0x8] sm:$0xff] %vm531, %v5912
    // Predicated region
    $region70: #{tpu_custom_call.1} parent=1 // pred_check
      _
    $region71: #{tpu_custom_call.1} parent=1 // pred_check_branch
      %5918 = sbr.rel (0) target = $region73
    $region72: #{tpu_custom_call.1} parent=1 // pred_region
      %s5920 = ssub.s32 256, 256
      %5921 = vsyncadd [#allocation3], %s5920
      %s5922 = sshll.u32 [#allocation2], 4
      %s5923 = int_to_ptr.vmem [resolvable:$true] %s5922
      %5928 = dma.vmem_to_hbm [thread:$0]  %s5923, 256, %s17, [#allocation3], 128, 128, 8
    $region73: #{tpu_custom_call.1} parent=1 // pred_fallthru
      _
    // Predicated region
    $region74: #{tpu_custom_call.1} parent=1 // pred_check
      _
    $region75: #{tpu_custom_call.1} parent=1 // pred_check_branch
      %5930 = sbr.rel (0) target = $region77
    $region76: #{tpu_custom_call.1} parent=1 // pred_region
      %5931 = dma.done [#allocation3], 256
    $region77: #{tpu_custom_call.1} parent=1 // pred_fallthru
      _
    %5932 = vsyncpa [#allocation3], 1

</llo_original>
